<compile_context>
chip_gen: v5e
topology: v5e:2x2
jax: 0.10.0
libtpu: 0.0.40
codegen_flags: <defaults>
</compile_context>

<pallas_src>
import functools

import jax
import jax.numpy as jnp
from jax.experimental import pallas as pl
from jax.experimental.pallas import tpu as pltpu


# ----------------------------- small helpers -------------------------------

def _vmem_specs(n):
    return [pl.BlockSpec(memory_space=pltpu.MemorySpace.VMEM) for _ in range(n)]


def _const_spec(arr):
    """Whole-array block whose block index never changes across the grid
    (Pallas skips the re-DMA, so the array stays resident in VMEM)."""
    nd = arr.ndim
    return pl.BlockSpec(tuple(arr.shape), lambda t, _n=nd: (0,) * _n)


# --------------------------- plain dense kernels ----------------------------

def _linear_kernel(x_ref, w_ref, o_ref):
    o_ref[...] = jnp.dot(x_ref[...], w_ref[...], preferred_element_type=jnp.float32)


def linear(x, w):
    return pl.pallas_call(
        _linear_kernel,
        out_shape=jax.ShapeDtypeStruct((x.shape[0], w.shape[1]), jnp.float32),
        in_specs=_vmem_specs(2),
        out_specs=pl.BlockSpec(memory_space=pltpu.MemorySpace.VMEM),
    )(x, w)


def _linear_bias_kernel(x_ref, w_ref, b_ref, o_ref):
    o_ref[...] = (jnp.dot(x_ref[...], w_ref[...], preferred_element_type=jnp.float32)
                  + b_ref[...])


def linear_bias(x, w, b):
    return pl.pallas_call(
        _linear_bias_kernel,
        out_shape=jax.ShapeDtypeStruct((x.shape[0], w.shape[1]), jnp.float32),
        in_specs=_vmem_specs(3),
        out_specs=pl.BlockSpec(memory_space=pltpu.MemorySpace.VMEM),
    )(x, w, b)


# ----------------------- fused BiLSTM encoder kernel ------------------------
# grid = (S,); fwd direction walks t = s, bwd direction walks t = S-1-s.
# Input gates (x @ W_ih + b) are precomputed outside for every timestep, so the
# per-step serial path is only h @ W_hh + elementwise gates for BOTH directions
# in one kernel invocation.  h/c state lives in VMEM scratch.

def _bilstm_step_kernel(xgf_ref, xgb_ref, vf_ref, vb_ref, whhf_ref, whhb_ref,
                        outf_ref, outb_ref, hf_ref, cf_ref, hb_ref, cb_ref,
                        hf_sc, cf_sc, hb_sc, cb_sc):
    s = pl.program_id(0)

    @pl.when(s == 0)
    def _():
        hf_sc[...] = jnp.zeros_like(hf_sc)
        cf_sc[...] = jnp.zeros_like(cf_sc)
        hb_sc[...] = jnp.zeros_like(hb_sc)
        cb_sc[...] = jnp.zeros_like(cb_sc)

    H = hf_sc.shape[-1]

    def one_dir(xg, h, c, whh_ref, valid):
        # PyTorch gate order: i, f, g, o.  xg already contains x@W_ih + b.
        gates = xg + jnp.dot(h, whh_ref[...], preferred_element_type=jnp.float32)
        i = jax.nn.sigmoid(gates[:, 0:H])
        f = jax.nn.sigmoid(gates[:, H:2 * H])
        g = jnp.tanh(gates[:, 2 * H:3 * H])
        o = jax.nn.sigmoid(gates[:, 3 * H:4 * H])
        c_new = f * c + i * g
        h_new = o * jnp.tanh(c_new)
        # pack_padded semantics: padded steps keep previous state, output zeros
        h_keep = valid * h_new + (1.0 - valid) * h
        c_keep = valid * c_new + (1.0 - valid) * c
        return h_keep, c_keep, valid * h_new

    vf = vf_ref[0]                                    # (B, 1)
    vb = vb_ref[0]
    hf, cf, of = one_dir(xgf_ref[0], hf_sc[...], cf_sc[...], whhf_ref, vf)
    hb, cb, ob = one_dir(xgb_ref[0], hb_sc[...], cb_sc[...], whhb_ref, vb)

    hf_sc[...] = hf
    cf_sc[...] = cf
    hb_sc[...] = hb
    cb_sc[...] = cb

    outf_ref[0] = of                                  # hidden at time t = s
    outb_ref[0] = ob                                  # hidden at time t = S-1-s
    # final states (constant output block -> only last value reaches HBM)
    hf_ref[...] = hf
    cf_ref[...] = cf
    hb_ref[...] = hb
    cb_ref[...] = cb


def run_encoder(params, x, lengths):
    """Bidirectional LSTM with pack_padded/pad_packed semantics."""
    B, S, E = x.shape
    H = params['h_proj'].shape[-1]

    # (3) precompute input gates for all timesteps / both directions: one matmul
    wih_all = jnp.concatenate([params['enc_wih_f'], params['enc_wih_b']], axis=1)  # (E, 8H)
    b_all = jnp.concatenate([params['enc_b_f'], params['enc_b_b']], axis=1)        # (1, 8H)
    x_tb = jnp.transpose(x, (1, 0, 2))                                             # (S, B, E)
    xg = linear_bias(x_tb.reshape(S * B, E), wih_all, b_all).reshape(S, B, 8 * H)
    xg_f = xg[..., :4 * H]
    xg_b = xg[..., 4 * H:]

    valid = (jnp.arange(S)[:, None] < lengths[None, :]).astype(jnp.float32)[:, :, None]  # (S,B,1)

    out_shapes = (jax.ShapeDtypeStruct((S, B, H), jnp.float32),   # fwd outputs (time-major)
                  jax.ShapeDtypeStruct((S, B, H), jnp.float32),   # bwd outputs (time-major)
                  jax.ShapeDtypeStruct((B, H), jnp.float32),      # final h fwd
                  jax.ShapeDtypeStruct((B, H), jnp.float32),      # final c fwd
                  jax.ShapeDtypeStruct((B, H), jnp.float32),      # final h bwd
                  jax.ShapeDtypeStruct((B, H), jnp.float32))      # final c bwd
    in_specs = [
        pl.BlockSpec((1, B, 4 * H), lambda s: (s, 0, 0)),
        pl.BlockSpec((1, B, 4 * H), lambda s, _S=S: (_S - 1 - s, 0, 0)),
        pl.BlockSpec((1, B, 1), lambda s: (s, 0, 0)),
        pl.BlockSpec((1, B, 1), lambda s, _S=S: (_S - 1 - s, 0, 0)),
        _const_spec(params['enc_whh_f']),
        _const_spec(params['enc_whh_b']),
    ]
    out_specs = (
        pl.BlockSpec((1, B, H), lambda s: (s, 0, 0)),
        pl.BlockSpec((1, B, H), lambda s, _S=S: (_S - 1 - s, 0, 0)),
        pl.BlockSpec((B, H), lambda s: (0, 0)),
        pl.BlockSpec((B, H), lambda s: (0, 0)),
        pl.BlockSpec((B, H), lambda s: (0, 0)),
        pl.BlockSpec((B, H), lambda s: (0, 0)),
    )
    out_f, out_b, hf, cf, hb, cb = pl.pallas_call(
        _bilstm_step_kernel,
        grid=(S,),
        out_shape=out_shapes,
        in_specs=in_specs,
        out_specs=out_specs,
        scratch_shapes=[pltpu.VMEM((B, H), jnp.float32),
                        pltpu.VMEM((B, H), jnp.float32),
                        pltpu.VMEM((B, H), jnp.float32),
                        pltpu.VMEM((B, H), jnp.float32)],
        compiler_params=pltpu.CompilerParams(dimension_semantics=("arbitrary",)),
    )(xg_f, xg_b, valid, valid, params['enc_whh_f'], params['enc_whh_b'])

    enc_h = jnp.transpose(jnp.concatenate([out_f, out_b], axis=-1), (1, 0, 2))  # (B, S, 2H)
    dec_h = linear(jnp.concatenate([hf, hb], axis=-1), params['h_proj'])
    dec_c = linear(jnp.concatenate([cf, cb], axis=-1), params['c_proj'])
    return enc_h, dec_h, dec_c


# ------------------------ fused decoder step kernel --------------------------
# grid = (T,) marked "arbitrary"; h, c and coverage are carried in VMEM scratch
# across decode steps.  proj_enc (enc_h @ W_enc) is precomputed once outside.

def _decoder_step_kernel(x_ref, h0_ref, c0_ref, enc_ref, penc_ref, negm_ref,
                         wih_ref, whh_ref, b_ref,
                         wdec_ref, wcov_ref, abias_ref, v_ref,
                         pg_whs_ref, pg_wh_ref, pg_wx_ref, pg_b_ref,
                         f1_whs_ref, f1_wh_ref, f1_b_ref,
                         f2_w_ref, f2_b_ref,
                         pv_ref, addw_ref, cl_ref,
                         h_sc, c_sc, cov_sc,
                         *, update_coverage: bool):
    t = pl.program_id(0)

    @pl.when(t == 0)
    def _():
        h_sc[...] = h0_ref[...]
        c_sc[...] = c0_ref[...]
        cov_sc[...] = jnp.zeros_like(cov_sc)

    H = h_sc.shape[-1]
    x = x_ref[0]                                        # (B, E)

    # ---- LSTMCell (PyTorch gate order i, f, g, o; biases fused) ----
    gates = (jnp.dot(x, wih_ref[...], preferred_element_type=jnp.float32)
             + jnp.dot(h_sc[...], whh_ref[...], preferred_element_type=jnp.float32)
             + b_ref[...])
    i = jax.nn.sigmoid(gates[:, 0:H])
    f = jax.nn.sigmoid(gates[:, H:2 * H])
    g = jnp.tanh(gates[:, 2 * H:3 * H])
    o = jax.nn.sigmoid(gates[:, 3 * H:4 * H])
    c_new = f * c_sc[...] + i * g
    h_new = o * jnp.tanh(c_new)
    h_sc[...] = h_new
    c_sc[...] = c_new

    # ---- attention with coverage (encoder projection hoisted) ----
    cov = cov_sc[...]                                   # (B, S)
    enc = enc_ref[...]                                  # (B, S, 2H)
    proj_dec = jnp.dot(h_new, wdec_ref[...], preferred_element_type=jnp.float32)  # (B, H)
    s = jnp.tanh(penc_ref[...] + proj_dec[:, None, :]
                 + cov[:, :, None] * wcov_ref[...] + abias_ref[...])              # (B, S, H)
    v = v_ref[...][:, 0]                                # (H,)
    e = jnp.sum(s * v[None, None, :], axis=-1) + negm_ref[...]                    # (B, S)
    m = jnp.max(e, axis=-1, keepdims=True)
    p = jnp.exp(e - m)
    a = p * pl.reciprocal(jnp.sum(p, axis=-1, keepdims=True), approx=True)        # (B, S)
    h_star = jnp.sum(a[:, :, None] * enc, axis=1)                                 # (B, 2H)
    covloss = jnp.sum(jnp.minimum(a, cov), axis=-1, keepdims=True)                # (B, 1)
    if update_coverage:
        cov_sc[...] = cov + a

    # ---- p_gen (concat matmul split into three small matmuls) ----
    p_gen = jax.nn.sigmoid(
        jnp.dot(h_star, pg_whs_ref[...], preferred_element_type=jnp.float32)
        + jnp.dot(h_new, pg_wh_ref[...], preferred_element_type=jnp.float32)
        + jnp.dot(x, pg_wx_ref[...], preferred_element_type=jnp.float32)
        + pg_b_ref[...])                                                          # (B, 1)

    # ---- vocab head: fc1 -> fc2 -> softmax, fused (logits never hit HBM) ----
    h1 = (jnp.dot(h_star, f1_whs_ref[...], preferred_element_type=jnp.float32)
          + jnp.dot(h_new, f1_wh_ref[...], preferred_element_type=jnp.float32)
          + f1_b_ref[...])                                                        # (B, 2H)
    logits = jnp.dot(h1, f2_w_ref[...], preferred_element_type=jnp.float32) + f2_b_ref[...]
    lm = jnp.max(logits, axis=-1, keepdims=True)
    lp = jnp.exp(logits - lm)
    p_vocab = lp * pl.reciprocal(jnp.sum(lp, axis=-1, keepdims=True), approx=True)

    pv_ref[0] = p_vocab * p_gen                         # generation distribution
    addw_ref[0] = a * (1.0 - p_gen)                     # copy weights to scatter
    cl_ref[0] = covloss


def run_decoder(params, x_extend, dec_inp, dec_tgt, enc_h, proj_enc, h0, c0,
                p_extend, mask, lambda_, is_coverage):
    T, B, E = dec_inp.shape
    S = enc_h.shape[1]
    H = h0.shape[-1]
    V = params['fc2_w'].shape[-1]

    negmask = jnp.where(mask, -1e30, 0.0).astype(jnp.float32)       # (B, S)

    # split concat-input weight matrices (cat([h_star, h, x]) @ W  ==  sum of 3 matmuls)
    pg_w = params['pgen_w']                   # (3H+E, 1):  [h_star | h | x]
    pg_whs, pg_wh, pg_wx = pg_w[:2 * H], pg_w[2 * H:3 * H], pg_w[3 * H:]
    f1_w = params['fc1_w']                    # (3H, 2H):   [h_star | h]
    f1_whs, f1_wh = f1_w[:2 * H], f1_w[2 * H:]

    consts = [h0, c0, enc_h, proj_enc, negmask,
              params['dec_wih'], params['dec_whh'], params['dec_b'],
              params['attn_wdec'], params['attn_wcov'], params['attn_bias'],
              params['attn_v'],
              pg_whs, pg_wh, pg_wx, params['pgen_b'],
              f1_whs, f1_wh, params['fc1_b'],
              params['fc2_w'], params['fc2_b']]

    kernel = functools.partial(_decoder_step_kernel, update_coverage=bool(is_coverage))
    out_shapes = (jax.ShapeDtypeStruct((T, B, V), jnp.float32),
                  jax.ShapeDtypeStruct((T, B, S), jnp.float32),
                  jax.ShapeDtypeStruct((T, B, 1), jnp.float32))
    in_specs = [pl.BlockSpec((1, B, E), lambda t: (t, 0, 0))] + [_const_spec(c) for c in consts]
    out_specs = (pl.BlockSpec((1, B, V), lambda t: (t, 0, 0)),
                 pl.BlockSpec((1, B, S), lambda t: (t, 0, 0)),
                 pl.BlockSpec((1, B, 1), lambda t: (t, 0, 0)))

    pv, addw, covloss = pl.pallas_call(
        kernel,
        grid=(T,),
        out_shape=out_shapes,
        in_specs=in_specs,
        out_specs=out_specs,
        scratch_shapes=[pltpu.VMEM((B, H), jnp.float32),   # h
                        pltpu.VMEM((B, H), jnp.float32),   # c
                        pltpu.VMEM((B, S), jnp.float32)],  # coverage
        compiler_params=pltpu.CompilerParams(
            dimension_semantics=("arbitrary",),
            vmem_limit_bytes=32 * 1024 * 1024),
    )(dec_inp, *consts)

    # TODO(synk): data-dependent scatter_add_/gather over the extended vocab has
    # no clean auto-BlockSpec Pallas form; done once, vectorized over T, in JAX.
    p_ext = jnp.broadcast_to(p_extend[None], (T,) + p_extend.shape)
    p = jnp.concatenate([pv, p_ext], axis=-1)                        # (T, B, V+oov)
    b_idx = jnp.arange(B)[:, None]
    p = p.at[:, b_idx, x_extend].add(addw)                           # scatter-add copy probs
    p_star = jnp.take_along_axis(p, dec_tgt[:, :, None], axis=-1)[..., 0]   # (T, B)

    label_mask = (dec_tgt != 0).astype(jnp.float32)                  # (T, B)
    denom = label_mask.sum(axis=0)
    loss = -(jnp.log(p_star + 1e-30) * label_mask).sum(axis=0) / denom
    if is_coverage:
        cov_loss = (lambda_ * covloss[:, :, 0] * label_mask).sum(axis=0) / denom
        return (loss + cov_loss, loss, cov_loss)
    return (loss,)


# ------------------------------ model wiring --------------------------------

def init_params(key, vocab_size, emb_dim, hidden):
    V, E, H = vocab_size, emb_dim, hidden
    keys = iter(jax.random.split(key, 32))

    def w(shape, scale=0.1):
        return (scale * jax.random.normal(next(keys), shape)).astype(jnp.float32)

    return dict(
        emb=w((V, E)),
        # encoder BiLSTM (weights stored transposed: (in, 4H); b = b_ih + b_hh)
        enc_wih_f=w((E, 4 * H)), enc_whh_f=w((H, 4 * H)), enc_b_f=jnp.zeros((1, 4 * H), jnp.float32),
        enc_wih_b=w((E, 4 * H)), enc_whh_b=w((H, 4 * H)), enc_b_b=jnp.zeros((1, 4 * H), jnp.float32),
        h_proj=w((2 * H, H)), c_proj=w((2 * H, H)),
        # decoder LSTMCell
        dec_wih=w((E, 4 * H)), dec_whh=w((H, 4 * H)), dec_b=jnp.zeros((1, 4 * H), jnp.float32),
        # attention
        attn_wenc=w((2 * H, H)), attn_wdec=w((H, H)), attn_wcov=w((1, H)),
        attn_bias=jnp.zeros((1, 1), jnp.float32), attn_v=w((H, 1)),
        # vocab projection + p_gen
        fc1_w=w((3 * H, 2 * H)), fc1_b=jnp.zeros((1, 2 * H), jnp.float32),
        fc2_w=w((2 * H, V)), fc2_b=jnp.zeros((1, V), jnp.float32),
        pgen_w=w((3 * H + E, 1)), pgen_b=jnp.zeros((1, 1), jnp.float32),
    )


def summary_forward(params, article, article_extend_vocab, summary_inp, summary_tgt,
                    lambda_, is_coverage, max_article_oovs):
    mask = (article == 0)
    B, S = article.shape
    H = params['h_proj'].shape[-1]
    p_extend = jnp.zeros((B, max_article_oovs), jnp.float32)
    lengths = jnp.sum(~mask, axis=-1)
    # NOTE: no data-dependent max-length slicing (would host-sync and break jit);
    # padded columns are exactly neutralized by the valid / -inf attention masks.
    summary_inp = summary_inp.T                       # (T, B)
    summary_tgt = summary_tgt.T                       # (T, B)
    # TODO(synk): embedding gather (data-dependent row lookup) stays plain JAX.
    article_emb = params['emb'][article]              # (B, S, E)
    dec_inp_emb = params['emb'][summary_inp]          # (T, B, E)

    enc_h, dec_h, dec_c = run_encoder(params, article_emb, lengths)

    # hoisted out of the decode loop: enc_h @ W_enc computed once for all steps
    proj_enc = linear(enc_h.reshape(B * S, 2 * H), params['attn_wenc']).reshape(B, S, H)

    return run_decoder(params, article_extend_vocab, dec_inp_emb, summary_tgt,
                       enc_h, proj_enc, dec_h, dec_c, p_extend, mask,
                       lambda_, is_coverage)


# ---------------------------------- main -------------------------------------

if __name__ == "__main__":
    V, E, H = 32, 16, 16
    B, S, T = 2, 8, 4
    MAX_OOVS = 4

    key = jax.random.PRNGKey(0)
    pkey, akey, skey, tkey = jax.random.split(key, 4)
    params = init_params(pkey, V, E, H)

    article = jax.random.randint(akey, (B, S), 1, V)
    article = article.at[1, 6:].set(0)            # second example padded (length 6)
    oov_pos = jnp.zeros((B, S), dtype=bool).at[0, 3].set(True).at[1, 2].set(True)
    article_extend = jnp.where(oov_pos, V + 1, article)          # one OOV id per example
    article_extend = jnp.where(article == 0, 0, article_extend)

    summary_inp = jax.random.randint(skey, (B, T), 1, V)
    summary_tgt = jax.random.randint(tkey, (B, T), 1, V)
    summary_tgt = summary_tgt.at[1, 3].set(0)     # one padded target position

    fwd = jax.jit(summary_forward,
                  static_argnames=("is_coverage", "max_article_oovs"))
    out = fwd(params, article, article_extend, summary_inp, summary_tgt,
              lambda_=1.0, is_coverage=True, max_article_oovs=MAX_OOVS)
    out = jax.block_until_ready(out)
    print("KERNEL_OK")
</pallas_src>

<mosaic_0001>
module attributes {stable_mosaic.version = 11 : i64} {
  func.func @_linear_bias_kernel(%arg0: memref<16x16xf32, #tpu.memory_space<vmem>>, %arg1: memref<16x128xf32, #tpu.memory_space<vmem>>, %arg2: memref<1x128xf32, #tpu.memory_space<vmem>>, %arg3: memref<16x128xf32, #tpu.memory_space<vmem>>) attributes {dimension_semantics = [], scalar_prefetch = 0 : i64, scratch_operands = 0 : i64, tpu.core_type = #tpu.core_type<tc>} {
    %c0 = arith.constant 0 : index
    %c0_0 = arith.constant 0 : index
    %0 = vector.load %arg0[%c0, %c0_0] : memref<16x16xf32, #tpu.memory_space<vmem>>, vector<16x16xf32>
    %c0_1 = arith.constant 0 : index
    %c0_2 = arith.constant 0 : index
    %1 = vector.load %arg1[%c0_1, %c0_2] : memref<16x128xf32, #tpu.memory_space<vmem>>, vector<16x128xf32>
    %cst = arith.constant dense<0.000000e+00> : vector<16x128xf32>
    %2 = tpu.matmul %0, %1, %cst {dimension_numbers = #tpu.dot_dimension_numbers<[1], [0], [0], [1], [0, 0, 1, 1], [], []>} : vector<16x16xf32>, vector<16x128xf32>, vector<16x128xf32> -> vector<16x128xf32>
    %c0_3 = arith.constant 0 : index
    %c0_4 = arith.constant 0 : index
    %3 = vector.load %arg2[%c0_3, %c0_4] : memref<1x128xf32, #tpu.memory_space<vmem>>, vector<1x128xf32>
    %4 = vector.broadcast %3 : vector<1x128xf32> to vector<16x128xf32>
    %5 = arith.addf %2, %4 : vector<16x128xf32>
    %c0_5 = arith.constant 0 : index
    %c0_6 = arith.constant 0 : index
    %6 = vector.load %arg3[%c0_5, %c0_6] : memref<16x128xf32, #tpu.memory_space<vmem>>, vector<16x128xf32>
    tpu.vector_store %arg3[%c0_5, %c0_6], %5 {strides = array<i32>} : memref<16x128xf32, #tpu.memory_space<vmem>>, vector<16x128xf32>,
    return
  }
}

module attributes {stable_mosaic.version = 11 : i64} {
  func.func @_linear_kernel(%arg0: memref<2x32xf32, #tpu.memory_space<vmem>>, %arg1: memref<32x16xf32, #tpu.memory_space<vmem>>, %arg2: memref<2x16xf32, #tpu.memory_space<vmem>>) attributes {dimension_semantics = [], scalar_prefetch = 0 : i64, scratch_operands = 0 : i64, tpu.core_type = #tpu.core_type<tc>} {
    %c0 = arith.constant 0 : index
    %c0_0 = arith.constant 0 : index
    %0 = vector.load %arg0[%c0, %c0_0] : memref<2x32xf32, #tpu.memory_space<vmem>>, vector<2x32xf32>
    %c0_1 = arith.constant 0 : index
    %c0_2 = arith.constant 0 : index
    %1 = vector.load %arg1[%c0_1, %c0_2] : memref<32x16xf32, #tpu.memory_space<vmem>>, vector<32x16xf32>
    %cst = arith.constant dense<0.000000e+00> : vector<2x16xf32>
    %2 = tpu.matmul %0, %1, %cst {dimension_numbers = #tpu.dot_dimension_numbers<[1], [0], [0], [1], [0, 0, 1, 1], [], []>} : vector<2x32xf32>, vector<32x16xf32>, vector<2x16xf32> -> vector<2x16xf32>
    %c0_3 = arith.constant 0 : index
    %c0_4 = arith.constant 0 : index
    %3 = vector.load %arg2[%c0_3, %c0_4] : memref<2x16xf32, #tpu.memory_space<vmem>>, vector<2x16xf32>
    tpu.vector_store %arg2[%c0_3, %c0_4], %2 {strides = array<i32>} : memref<2x16xf32, #tpu.memory_space<vmem>>, vector<2x16xf32>,
    return
  }
}

module attributes {stable_mosaic.version = 11 : i64} {
  func.func @_bilstm_step_kernel(%arg0: i32, %arg1: memref<1x2x64xf32, #tpu.memory_space<vmem>>, %arg2: memref<1x2x64xf32, #tpu.memory_space<vmem>>, %arg3: memref<1x2x1xf32, #tpu.memory_space<vmem>>, %arg4: memref<1x2x1xf32, #tpu.memory_space<vmem>>, %arg5: memref<16x64xf32, #tpu.memory_space<vmem>>, %arg6: memref<16x64xf32, #tpu.memory_space<vmem>>, %arg7: memref<1x2x16xf32, #tpu.memory_space<vmem>>, %arg8: memref<1x2x16xf32, #tpu.memory_space<vmem>>, %arg9: memref<2x16xf32, #tpu.memory_space<vmem>>, %arg10: memref<2x16xf32, #tpu.memory_space<vmem>>, %arg11: memref<2x16xf32, #tpu.memory_space<vmem>>, %arg12: memref<2x16xf32, #tpu.memory_space<vmem>>, %arg13: memref<2x16xf32, #tpu.memory_space<vmem>>, %arg14: memref<2x16xf32, #tpu.memory_space<vmem>>, %arg15: memref<2x16xf32, #tpu.memory_space<vmem>>, %arg16: memref<2x16xf32, #tpu.memory_space<vmem>>) attributes {dimension_semantics = [#tpu.dimension_semantics<arbitrary>], iteration_bounds = array<i64: 8>, scalar_prefetch = 0 : i64, scratch_operands = 4 : i64, tpu.core_type = #tpu.core_type<tc>, window_params = [{transform_indices = @transform_0, window_bounds = array<i64: 1, 2, 64>}, {transform_indices = @transform_1, window_bounds = array<i64: 1, 2, 64>}, {transform_indices = @transform_2, window_bounds = array<i64: 1, 2, 1>}, {transform_indices = @transform_3, window_bounds = array<i64: 1, 2, 1>}, {pipeline_mode = #tpu.pipeline_mode<synchronous>, transform_indices = @transform_4, window_bounds = array<i64: 16, 64>}, {pipeline_mode = #tpu.pipeline_mode<synchronous>, transform_indices = @transform_5, window_bounds = array<i64: 16, 64>}, {transform_indices = @transform_6, window_bounds = array<i64: 1, 2, 16>}, {transform_indices = @transform_7, window_bounds = array<i64: 1, 2, 16>}, {pipeline_mode = #tpu.pipeline_mode<synchronous>, transform_indices = @transform_8, window_bounds = array<i64: 2, 16>}, {pipeline_mode = #tpu.pipeline_mode<synchronous>, transform_indices = @transform_9, window_bounds = array<i64: 2, 16>}, {pipeline_mode = #tpu.pipeline_mode<synchronous>, transform_indices = @transform_10, window_bounds = array<i64: 2, 16>}, {pipeline_mode = #tpu.pipeline_mode<synchronous>, transform_indices = @transform_11, window_bounds = array<i64: 2, 16>}]} {
    %c0_i32 = arith.constant 0 : i32
    %0 = arith.cmpi eq, %arg0, %c0_i32 : i32
    %1 = arith.extui %0 : i1 to i32
    %c0_i32_0 = arith.constant 0 : i32
    %2 = arith.cmpi ne, %1, %c0_i32_0 : i32
    scf.if %2 {
      %cst_57 = arith.constant 0.000000e+00 : f32
      %117 = vector.broadcast %cst_57 : f32 to vector<2x16xf32>
      %c0_58 = arith.constant 0 : index
      %c0_59 = arith.constant 0 : index
      %118 = vector.load %arg13[%c0_58, %c0_59] : memref<2x16xf32, #tpu.memory_space<vmem>>, vector<2x16xf32>
      tpu.vector_store %arg13[%c0_58, %c0_59], %117 {strides = array<i32>} : memref<2x16xf32, #tpu.memory_space<vmem>>, vector<2x16xf32>,
      %cst_60 = arith.constant 0.000000e+00 : f32
      %119 = vector.broadcast %cst_60 : f32 to vector<2x16xf32>
      %c0_61 = arith.constant 0 : index
      %c0_62 = arith.constant 0 : index
      %120 = vector.load %arg14[%c0_61, %c0_62] : memref<2x16xf32, #tpu.memory_space<vmem>>, vector<2x16xf32>
      tpu.vector_store %arg14[%c0_61, %c0_62], %119 {strides = array<i32>} : memref<2x16xf32, #tpu.memory_space<vmem>>, vector<2x16xf32>,
      %cst_63 = arith.constant 0.000000e+00 : f32
      %121 = vector.broadcast %cst_63 : f32 to vector<2x16xf32>
      %c0_64 = arith.constant 0 : index
      %c0_65 = arith.constant 0 : index
      %122 = vector.load %arg15[%c0_64, %c0_65] : memref<2x16xf32, #tpu.memory_space<vmem>>, vector<2x16xf32>
      tpu.vector_store %arg15[%c0_64, %c0_65], %121 {strides = array<i32>} : memref<2x16xf32, #tpu.memory_space<vmem>>, vector<2x16xf32>,
      %cst_66 = arith.constant 0.000000e+00 : f32
      %123 = vector.broadcast %cst_66 : f32 to vector<2x16xf32>
      %c0_67 = arith.constant 0 : index
      %c0_68 = arith.constant 0 : index
      %124 = vector.load %arg16[%c0_67, %c0_68] : memref<2x16xf32, #tpu.memory_space<vmem>>, vector<2x16xf32>
      tpu.vector_store %arg16[%c0_67, %c0_68], %123 {strides = array<i32>} : memref<2x16xf32, #tpu.memory_space<vmem>>, vector<2x16xf32>,
    } else {
    }
    %c0 = arith.constant 0 : index
    %c0_1 = arith.constant 0 : index
    %c0_2 = arith.constant 0 : index
    %3 = vector.load %arg3[%c0, %c0_1, %c0_2] : memref<1x2x1xf32, #tpu.memory_space<vmem>>, vector<1x2x1xf32>
    %4 = vector.shape_cast %3 : vector<1x2x1xf32> to vector<2x1xf32>
    %c0_3 = arith.constant 0 : index
    %c0_4 = arith.constant 0 : index
    %c0_5 = arith.constant 0 : index
    %5 = vector.load %arg4[%c0_3, %c0_4, %c0_5] : memref<1x2x1xf32, #tpu.memory_space<vmem>>, vector<1x2x1xf32>
    %6 = vector.shape_cast %5 : vector<1x2x1xf32> to vector<2x1xf32>
    %c0_6 = arith.constant 0 : index
    %c0_7 = arith.constant 0 : index
    %c0_8 = arith.constant 0 : index
    %7 = vector.load %arg1[%c0_6, %c0_7, %c0_8] : memref<1x2x64xf32, #tpu.memory_space<vmem>>, vector<1x2x64xf32>
    %8 = vector.shape_cast %7 : vector<1x2x64xf32> to vector<2x64xf32>
    %c0_9 = arith.constant 0 : index
    %c0_10 = arith.constant 0 : index
    %9 = vector.load %arg13[%c0_9, %c0_10] : memref<2x16xf32, #tpu.memory_space<vmem>>, vector<2x16xf32>
    %c0_11 = arith.constant 0 : index
    %c0_12 = arith.constant 0 : index
    %10 = vector.load %arg14[%c0_11, %c0_12] : memref<2x16xf32, #tpu.memory_space<vmem>>, vector<2x16xf32>
    %c0_13 = arith.constant 0 : index
    %c0_14 = arith.constant 0 : index
    %11 = vector.load %arg5[%c0_13, %c0_14] : memref<16x64xf32, #tpu.memory_space<vmem>>, vector<16x64xf32>
    %cst = arith.constant dense<0.000000e+00> : vector<2x64xf32>
    %12 = tpu.matmul %9, %11, %cst {dimension_numbers = #tpu.dot_dimension_numbers<[1], [0], [0], [1], [0, 0, 1, 1], [], []>} : vector<2x16xf32>, vector<16x64xf32>, vector<2x64xf32> -> vector<2x64xf32>
    %13 = arith.addf %8, %12 : vector<2x64xf32>
    %14 = vector.extract_strided_slice %13 {offsets = [0, 0], sizes = [2, 16], strides = [1, 1]} : vector<2x64xf32> to vector<2x16xf32>
    %15 = arith.negf %14 : vector<2x16xf32>
    %16 = math.exp %15 : vector<2x16xf32>
    %cst_15 = arith.constant 1.000000e+00 : f32
    %17 = vector.broadcast %cst_15 : f32 to vector<2x16xf32>
    %18 = arith.addf %17, %16 : vector<2x16xf32>
    %19 = arith.divf %17, %18 : vector<2x16xf32>
    %20 = vector.extract_strided_slice %13 {offsets = [0, 16], sizes = [2, 16], strides = [1, 1]} : vector<2x64xf32> to vector<2x16xf32>
    %21 = arith.negf %20 : vector<2x16xf32>
    %22 = math.exp %21 : vector<2x16xf32>
    %cst_16 = arith.constant 1.000000e+00 : f32
    %23 = vector.broadcast %cst_16 : f32 to vector<2x16xf32>
    %24 = arith.addf %23, %22 : vector<2x16xf32>
    %25 = arith.divf %23, %24 : vector<2x16xf32>
    %26 = vector.extract_strided_slice %13 {offsets = [0, 32], sizes = [2, 16], strides = [1, 1]} : vector<2x64xf32> to vector<2x16xf32>
    %27 = math.tanh %26 : vector<2x16xf32>
    %28 = vector.extract_strided_slice %13 {offsets = [0, 48], sizes = [2, 16], strides = [1, 1]} : vector<2x64xf32> to vector<2x16xf32>
    %29 = arith.negf %28 : vector<2x16xf32>
    %30 = math.exp %29 : vector<2x16xf32>
    %cst_17 = arith.constant 1.000000e+00 : f32
    %31 = vector.broadcast %cst_17 : f32 to vector<2x16xf32>
    %32 = arith.addf %31, %30 : vector<2x16xf32>
    %33 = arith.divf %31, %32 : vector<2x16xf32>
    %34 = arith.mulf %25, %10 : vector<2x16xf32>
    %35 = arith.mulf %19, %27 : vector<2x16xf32>
    %36 = arith.addf %34, %35 : vector<2x16xf32>
    %37 = math.tanh %36 : vector<2x16xf32>
    %38 = arith.mulf %33, %37 : vector<2x16xf32>
    %39 = vector.broadcast %4 : vector<2x1xf32> to vector<2x16xf32>
    %40 = arith.mulf %39, %38 : vector<2x16xf32>
    %cst_18 = arith.constant 1.000000e+00 : f32
    %41 = vector.broadcast %cst_18 : f32 to vector<2x1xf32>
    %42 = arith.subf %41, %4 : vector<2x1xf32>
    %43 = vector.broadcast %42 : vector<2x1xf32> to vector<2x16xf32>
    %44 = arith.mulf %43, %9 : vector<2x16xf32>
    %45 = arith.addf %40, %44 : vector<2x16xf32>
    %46 = vector.broadcast %4 : vector<2x1xf32> to vector<2x16xf32>
    %47 = arith.mulf %46, %36 : vector<2x16xf32>
    %cst_19 = arith.constant 1.000000e+00 : f32
    %48 = vector.broadcast %cst_19 : f32 to vector<2x1xf32>
    %49 = arith.subf %48, %4 : vector<2x1xf32>
    %50 = vector.broadcast %49 : vector<2x1xf32> to vector<2x16xf32>
    %51 = arith.mulf %50, %10 : vector<2x16xf32>
    %52 = arith.addf %47, %51 : vector<2x16xf32>
    %53 = vector.broadcast %4 : vector<2x1xf32> to vector<2x16xf32>
    %54 = arith.mulf %53, %38 : vector<2x16xf32>
    %c0_20 = arith.constant 0 : index
    %c0_21 = arith.constant 0 : index
    %c0_22 = arith.constant 0 : index
    %55 = vector.load %arg2[%c0_20, %c0_21, %c0_22] : memref<1x2x64xf32, #tpu.memory_space<vmem>>, vector<1x2x64xf32>
    %56 = vector.shape_cast %55 : vector<1x2x64xf32> to vector<2x64xf32>
    %c0_23 = arith.constant 0 : index
    %c0_24 = arith.constant 0 : index
    %57 = vector.load %arg15[%c0_23, %c0_24] : memref<2x16xf32, #tpu.memory_space<vmem>>, vector<2x16xf32>
    %c0_25 = arith.constant 0 : index
    %c0_26 = arith.constant 0 : index
    %58 = vector.load %arg16[%c0_25, %c0_26] : memref<2x16xf32, #tpu.memory_space<vmem>>, vector<2x16xf32>
    %c0_27 = arith.constant 0 : index
    %c0_28 = arith.constant 0 : index
    %59 = vector.load %arg6[%c0_27, %c0_28] : memref<16x64xf32, #tpu.memory_space<vmem>>, vector<16x64xf32>
    %cst_29 = arith.constant dense<0.000000e+00> : vector<2x64xf32>
    %60 = tpu.matmul %57, %59, %cst_29 {dimension_numbers = #tpu.dot_dimension_numbers<[1], [0], [0], [1], [0, 0, 1, 1], [], []>} : vector<2x16xf32>, vector<16x64xf32>, vector<2x64xf32> -> vector<2x64xf32>
    %61 = arith.addf %56, %60 : vector<2x64xf32>
    %62 = vector.extract_strided_slice %61 {offsets = [0, 0], sizes = [2, 16], strides = [1, 1]} : vector<2x64xf32> to vector<2x16xf32>
    %63 = arith.negf %62 : vector<2x16xf32>
    %64 = math.exp %63 : vector<2x16xf32>
    %cst_30 = arith.constant 1.000000e+00 : f32
    %65 = vector.broadcast %cst_30 : f32 to vector<2x16xf32>
    %66 = arith.addf %65, %64 : vector<2x16xf32>
    %67 = arith.divf %65, %66 : vector<2x16xf32>
    %68 = vector.extract_strided_slice %61 {offsets = [0, 16], sizes = [2, 16], strides = [1, 1]} : vector<2x64xf32> to vector<2x16xf32>
    %69 = arith.negf %68 : vector<2x16xf32>
    %70 = math.exp %69 : vector<2x16xf32>
    %cst_31 = arith.constant 1.000000e+00 : f32
    %71 = vector.broadcast %cst_31 : f32 to vector<2x16xf32>
    %72 = arith.addf %71, %70 : vector<2x16xf32>
    %73 = arith.divf %71, %72 : vector<2x16xf32>
    %74 = vector.extract_strided_slice %61 {offsets = [0, 32], sizes = [2, 16], strides = [1, 1]} : vector<2x64xf32> to vector<2x16xf32>
    %75 = math.tanh %74 : vector<2x16xf32>
    %76 = vector.extract_strided_slice %61 {offsets = [0, 48], sizes = [2, 16], strides = [1, 1]} : vector<2x64xf32> to vector<2x16xf32>
    %77 = arith.negf %76 : vector<2x16xf32>
    %78 = math.exp %77 : vector<2x16xf32>
    %cst_32 = arith.constant 1.000000e+00 : f32
    %79 = vector.broadcast %cst_32 : f32 to vector<2x16xf32>
    %80 = arith.addf %79, %78 : vector<2x16xf32>
    %81 = arith.divf %79, %80 : vector<2x16xf32>
    %82 = arith.mulf %73, %58 : vector<2x16xf32>
    %83 = arith.mulf %67, %75 : vector<2x16xf32>
    %84 = arith.addf %82, %83 : vector<2x16xf32>
    %85 = math.tanh %84 : vector<2x16xf32>
    %86 = arith.mulf %81, %85 : vector<2x16xf32>
    %87 = vector.broadcast %6 : vector<2x1xf32> to vector<2x16xf32>
    %88 = arith.mulf %87, %86 : vector<2x16xf32>
    %cst_33 = arith.constant 1.000000e+00 : f32
    %89 = vector.broadcast %cst_33 : f32 to vector<2x1xf32>
    %90 = arith.subf %89, %6 : vector<2x1xf32>
    %91 = vector.broadcast %90 : vector<2x1xf32> to vector<2x16xf32>
    %92 = arith.mulf %91, %57 : vector<2x16xf32>
    %93 = arith.addf %88, %92 : vector<2x16xf32>
    %94 = vector.broadcast %6 : vector<2x1xf32> to vector<2x16xf32>
    %95 = arith.mulf %94, %84 : vector<2x16xf32>
    %cst_34 = arith.constant 1.000000e+00 : f32
    %96 = vector.broadcast %cst_34 : f32 to vector<2x1xf32>
    %97 = arith.subf %96, %6 : vector<2x1xf32>
    %98 = vector.broadcast %97 : vector<2x1xf32> to vector<2x16xf32>
    %99 = arith.mulf %98, %58 : vector<2x16xf32>
    %100 = arith.addf %95, %99 : vector<2x16xf32>
    %101 = vector.broadcast %6 : vector<2x1xf32> to vector<2x16xf32>
    %102 = arith.mulf %101, %86 : vector<2x16xf32>
    %c0_35 = arith.constant 0 : index
    %c0_36 = arith.constant 0 : index
    %103 = vector.load %arg13[%c0_35, %c0_36] : memref<2x16xf32, #tpu.memory_space<vmem>>, vector<2x16xf32>
    tpu.vector_store %arg13[%c0_35, %c0_36], %45 {strides = array<i32>} : memref<2x16xf32, #tpu.memory_space<vmem>>, vector<2x16xf32>,
    %c0_37 = arith.constant 0 : index
    %c0_38 = arith.constant 0 : index
    %104 = vector.load %arg14[%c0_37, %c0_38] : memref<2x16xf32, #tpu.memory_space<vmem>>, vector<2x16xf32>
    tpu.vector_store %arg14[%c0_37, %c0_38], %52 {strides = array<i32>} : memref<2x16xf32, #tpu.memory_space<vmem>>, vector<2x16xf32>,
    %c0_39 = arith.constant 0 : index
    %c0_40 = arith.constant 0 : index
    %105 = vector.load %arg15[%c0_39, %c0_40] : memref<2x16xf32, #tpu.memory_space<vmem>>, vector<2x16xf32>
    tpu.vector_store %arg15[%c0_39, %c0_40], %93 {strides = array<i32>} : memref<2x16xf32, #tpu.memory_space<vmem>>, vector<2x16xf32>,
    %c0_41 = arith.constant 0 : index
    %c0_42 = arith.constant 0 : index
    %106 = vector.load %arg16[%c0_41, %c0_42] : memref<2x16xf32, #tpu.memory_space<vmem>>, vector<2x16xf32>
    tpu.vector_store %arg16[%c0_41, %c0_42], %100 {strides = array<i32>} : memref<2x16xf32, #tpu.memory_space<vmem>>, vector<2x16xf32>,
    %c0_43 = arith.constant 0 : index
    %c0_44 = arith.constant 0 : index
    %c0_45 = arith.constant 0 : index
    %107 = vector.load %arg7[%c0_43, %c0_44, %c0_45] : memref<1x2x16xf32, #tpu.memory_space<vmem>>, vector<1x2x16xf32>
    %108 = vector.shape_cast %107 : vector<1x2x16xf32> to vector<2x16xf32>
    %109 = vector.shape_cast %54 : vector<2x16xf32> to vector<1x2x16xf32>
    tpu.vector_store %arg7[%c0_43, %c0_44, %c0_45], %109 {strides = array<i32>} : memref<1x2x16xf32, #tpu.memory_space<vmem>>, vector<1x2x16xf32>,
    %c0_46 = arith.constant 0 : index
    %c0_47 = arith.constant 0 : index
    %c0_48 = arith.constant 0 : index
    %110 = vector.load %arg8[%c0_46, %c0_47, %c0_48] : memref<1x2x16xf32, #tpu.memory_space<vmem>>, vector<1x2x16xf32>
    %111 = vector.shape_cast %110 : vector<1x2x16xf32> to vector<2x16xf32>
    %112 = vector.shape_cast %102 : vector<2x16xf32> to vector<1x2x16xf32>
    tpu.vector_store %arg8[%c0_46, %c0_47, %c0_48], %112 {strides = array<i32>} : memref<1x2x16xf32, #tpu.memory_space<vmem>>, vector<1x2x16xf32>,
    %c0_49 = arith.constant 0 : index
    %c0_50 = arith.constant 0 : index
    %113 = vector.load %arg9[%c0_49, %c0_50] : memref<2x16xf32, #tpu.memory_space<vmem>>, vector<2x16xf32>
    tpu.vector_store %arg9[%c0_49, %c0_50], %45 {strides = array<i32>} : memref<2x16xf32, #tpu.memory_space<vmem>>, vector<2x16xf32>,
    %c0_51 = arith.constant 0 : index
    %c0_52 = arith.constant 0 : index
    %114 = vector.load %arg10[%c0_51, %c0_52] : memref<2x16xf32, #tpu.memory_space<vmem>>, vector<2x16xf32>
    tpu.vector_store %arg10[%c0_51, %c0_52], %52 {strides = array<i32>} : memref<2x16xf32, #tpu.memory_space<vmem>>, vector<2x16xf32>,
    %c0_53 = arith.constant 0 : index
    %c0_54 = arith.constant 0 : index
    %115 = vector.load %arg11[%c0_53, %c0_54] : memref<2x16xf32, #tpu.memory_space<vmem>>, vector<2x16xf32>
    tpu.vector_store %arg11[%c0_53, %c0_54], %93 {strides = array<i32>} : memref<2x16xf32, #tpu.memory_space<vmem>>, vector<2x16xf32>,
    %c0_55 = arith.constant 0 : index
    %c0_56 = arith.constant 0 : index
    %116 = vector.load %arg12[%c0_55, %c0_56] : memref<2x16xf32, #tpu.memory_space<vmem>>, vector<2x16xf32>
    tpu.vector_store %arg12[%c0_55, %c0_56], %100 {strides = array<i32>} : memref<2x16xf32, #tpu.memory_space<vmem>>, vector<2x16xf32>,
    return
  }
  func.func @transform_0(%arg0: i32) -> (i32, i32, i32) {
    %c0_i32 = arith.constant 0 : i32
    %c0_i32_0 = arith.constant 0 : i32
    %c0_i32_1 = arith.constant 0 : i32
    return %arg0, %c0_i32, %c0_i32_0 : i32, i32, i32
  }
  func.func @transform_1(%arg0: i32) -> (i32, i32, i32) {
    %c7_i32 = arith.constant 7 : i32
    %0 = arith.subi %c7_i32, %arg0 : i32
    %c0_i32 = arith.constant 0 : i32
    %c0_i32_0 = arith.constant 0 : i32
    %c0_i32_1 = arith.constant 0 : i32
    return %0, %c0_i32, %c0_i32_0 : i32, i32, i32
  }
  func.func @transform_2(%arg0: i32) -> (i32, i32, i32) {
    %c0_i32 = arith.constant 0 : i32
    %c0_i32_0 = arith.constant 0 : i32
    %c0_i32_1 = arith.constant 0 : i32
    return %arg0, %c0_i32, %c0_i32_0 : i32, i32, i32
  }
  func.func @transform_3(%arg0: i32) -> (i32, i32, i32) {
    %c7_i32 = arith.constant 7 : i32
    %0 = arith.subi %c7_i32, %arg0 : i32
    %c0_i32 = arith.constant 0 : i32
    %c0_i32_0 = arith.constant 0 : i32
    %c0_i32_1 = arith.constant 0 : i32
    return %0, %c0_i32, %c0_i32_0 : i32, i32, i32
  }
  func.func @transform_4(%arg0: i32) -> (i32, i32) {
    %c0_i32 = arith.constant 0 : i32
    %c0_i32_0 = arith.constant 0 : i32
    %c0_i32_1 = arith.constant 0 : i32
    return %c0_i32, %c0_i32_0 : i32, i32
  }
  func.func @transform_5(%arg0: i32) -> (i32, i32) {
    %c0_i32 = arith.constant 0 : i32
    %c0_i32_0 = arith.constant 0 : i32
    %c0_i32_1 = arith.constant 0 : i32
    return %c0_i32, %c0_i32_0 : i32, i32
  }
  func.func @transform_6(%arg0: i32) -> (i32, i32, i32) {
    %c0_i32 = arith.constant 0 : i32
    %c0_i32_0 = arith.constant 0 : i32
    %c0_i32_1 = arith.constant 0 : i32
    return %arg0, %c0_i32, %c0_i32_0 : i32, i32, i32
  }
  func.func @transform_7(%arg0: i32) -> (i32, i32, i32) {
    %c7_i32 = arith.constant 7 : i32
    %0 = arith.subi %c7_i32, %arg0 : i32
    %c0_i32 = arith.constant 0 : i32
    %c0_i32_0 = arith.constant 0 : i32
    %c0_i32_1 = arith.constant 0 : i32
    return %0, %c0_i32, %c0_i32_0 : i32, i32, i32
  }
  func.func @transform_8(%arg0: i32) -> (i32, i32) {
    %c0_i32 = arith.constant 0 : i32
    %c0_i32_0 = arith.constant 0 : i32
    %c0_i32_1 = arith.constant 0 : i32
    return %c0_i32, %c0_i32_0 : i32, i32
  }
  func.func @transform_9(%arg0: i32) -> (i32, i32) {
    %c0_i32 = arith.constant 0 : i32
    %c0_i32_0 = arith.constant 0 : i32
    %c0_i32_1 = arith.constant 0 : i32
    return %c0_i32, %c0_i32_0 : i32, i32
  }
  func.func @transform_10(%arg0: i32) -> (i32, i32) {
    %c0_i32 = arith.constant 0 : i32
    %c0_i32_0 = arith.constant 0 : i32
    %c0_i32_1 = arith.constant 0 : i32
    return %c0_i32, %c0_i32_0 : i32, i32
  }
  func.func @transform_11(%arg0: i32) -> (i32, i32) {
    %c0_i32 = arith.constant 0 : i32
    %c0_i32_0 = arith.constant 0 : i32
    %c0_i32_1 = arith.constant 0 : i32
    return %c0_i32, %c0_i32_0 : i32, i32
  }
}

module attributes {stable_mosaic.version = 11 : i64} {
  func.func @_linear_kernel(%arg0: memref<16x32xf32, #tpu.memory_space<vmem>>, %arg1: memref<32x16xf32, #tpu.memory_space<vmem>>, %arg2: memref<16x16xf32, #tpu.memory_space<vmem>>) attributes {dimension_semantics = [], scalar_prefetch = 0 : i64, scratch_operands = 0 : i64, tpu.core_type = #tpu.core_type<tc>} {
    %c0 = arith.constant 0 : index
    %c0_0 = arith.constant 0 : index
    %0 = vector.load %arg0[%c0, %c0_0] : memref<16x32xf32, #tpu.memory_space<vmem>>, vector<16x32xf32>
    %c0_1 = arith.constant 0 : index
    %c0_2 = arith.constant 0 : index
    %1 = vector.load %arg1[%c0_1, %c0_2] : memref<32x16xf32, #tpu.memory_space<vmem>>, vector<32x16xf32>
    %cst = arith.constant dense<0.000000e+00> : vector<16x16xf32>
    %2 = tpu.matmul %0, %1, %cst {dimension_numbers = #tpu.dot_dimension_numbers<[1], [0], [0], [1], [0, 0, 1, 1], [], []>} : vector<16x32xf32>, vector<32x16xf32>, vector<16x16xf32> -> vector<16x16xf32>
    %c0_3 = arith.constant 0 : index
    %c0_4 = arith.constant 0 : index
    %3 = vector.load %arg2[%c0_3, %c0_4] : memref<16x16xf32, #tpu.memory_space<vmem>>, vector<16x16xf32>
    tpu.vector_store %arg2[%c0_3, %c0_4], %2 {strides = array<i32>} : memref<16x16xf32, #tpu.memory_space<vmem>>, vector<16x16xf32>,
    return
  }
}

module attributes {stable_mosaic.version = 11 : i64} {
  func.func @_decoder_step_kernel(%arg0: i32, %arg1: memref<1x2x16xf32, #tpu.memory_space<vmem>>, %arg2: memref<2x16xf32, #tpu.memory_space<vmem>>, %arg3: memref<2x16xf32, #tpu.memory_space<vmem>>, %arg4: memref<2x8x32xf32, #tpu.memory_space<vmem>>, %arg5: memref<2x8x16xf32, #tpu.memory_space<vmem>>, %arg6: memref<2x8xf32, #tpu.memory_space<vmem>>, %arg7: memref<16x64xf32, #tpu.memory_space<vmem>>, %arg8: memref<16x64xf32, #tpu.memory_space<vmem>>, %arg9: memref<1x64xf32, #tpu.memory_space<vmem>>, %arg10: memref<16x16xf32, #tpu.memory_space<vmem>>, %arg11: memref<1x16xf32, #tpu.memory_space<vmem>>, %arg12: memref<1x1xf32, #tpu.memory_space<vmem>>, %arg13: memref<16x1xf32, #tpu.memory_space<vmem>>, %arg14: memref<32x1xf32, #tpu.memory_space<vmem>>, %arg15: memref<16x1xf32, #tpu.memory_space<vmem>>, %arg16: memref<16x1xf32, #tpu.memory_space<vmem>>, %arg17: memref<1x1xf32, #tpu.memory_space<vmem>>, %arg18: memref<32x32xf32, #tpu.memory_space<vmem>>, %arg19: memref<16x32xf32, #tpu.memory_space<vmem>>, %arg20: memref<1x32xf32, #tpu.memory_space<vmem>>, %arg21: memref<32x32xf32, #tpu.memory_space<vmem>>, %arg22: memref<1x32xf32, #tpu.memory_space<vmem>>, %arg23: memref<1x2x32xf32, #tpu.memory_space<vmem>>, %arg24: memref<1x2x8xf32, #tpu.memory_space<vmem>>, %arg25: memref<1x2x1xf32, #tpu.memory_space<vmem>>, %arg26: memref<2x16xf32, #tpu.memory_space<vmem>>, %arg27: memref<2x16xf32, #tpu.memory_space<vmem>>, %arg28: memref<2x8xf32, #tpu.memory_space<vmem>>) attributes {dimension_semantics = [#tpu.dimension_semantics<arbitrary>], iteration_bounds = array<i64: 4>, scalar_prefetch = 0 : i64, scratch_operands = 3 : i64, tpu.core_type = #tpu.core_type<tc>, window_params = [{transform_indices = @transform_0, window_bounds = array<i64: 1, 2, 16>}, {pipeline_mode = #tpu.pipeline_mode<synchronous>, transform_indices = @transform_1, window_bounds = array<i64: 2, 16>}, {pipeline_mode = #tpu.pipeline_mode<synchronous>, transform_indices = @transform_2, window_bounds = array<i64: 2, 16>}, {pipeline_mode = #tpu.pipeline_mode<synchronous>, transform_indices = @transform_3, window_bounds = array<i64: 2, 8, 32>}, {pipeline_mode = #tpu.pipeline_mode<synchronous>, transform_indices = @transform_4, window_bounds = array<i64: 2, 8, 16>}, {pipeline_mode = #tpu.pipeline_mode<synchronous>, transform_indices = @transform_5, window_bounds = array<i64: 2, 8>}, {pipeline_mode = #tpu.pipeline_mode<synchronous>, transform_indices = @transform_6, window_bounds = array<i64: 16, 64>}, {pipeline_mode = #tpu.pipeline_mode<synchronous>, transform_indices = @transform_7, window_bounds = array<i64: 16, 64>}, {pipeline_mode = #tpu.pipeline_mode<synchronous>, transform_indices = @transform_8, window_bounds = array<i64: 1, 64>}, {pipeline_mode = #tpu.pipeline_mode<synchronous>, transform_indices = @transform_9, window_bounds = array<i64: 16, 16>}, {pipeline_mode = #tpu.pipeline_mode<synchronous>, transform_indices = @transform_10, window_bounds = array<i64: 1, 16>}, {pipeline_mode = #tpu.pipeline_mode<synchronous>, transform_indices = @transform_11, window_bounds = array<i64: 1, 1>}, {pipeline_mode = #tpu.pipeline_mode<synchronous>, transform_indices = @transform_12, window_bounds = array<i64: 16, 1>}, {pipeline_mode = #tpu.pipeline_mode<synchronous>, transform_indices = @transform_13, window_bounds = array<i64: 32, 1>}, {pipeline_mode = #tpu.pipeline_mode<synchronous>, transform_indices = @transform_14, window_bounds = array<i64: 16, 1>}, {pipeline_mode = #tpu.pipeline_mode<synchronous>, transform_indices = @transform_15, window_bounds = array<i64: 16, 1>}, {pipeline_mode = #tpu.pipeline_mode<synchronous>, transform_indices = @transform_16, window_bounds = array<i64: 1, 1>}, {pipeline_mode = #tpu.pipeline_mode<synchronous>, transform_indices = @transform_17, window_bounds = array<i64: 32, 32>}, {pipeline_mode = #tpu.pipeline_mode<synchronous>, transform_indices = @transform_18, window_bounds = array<i64: 16, 32>}, {pipeline_mode = #tpu.pipeline_mode<synchronous>, transform_indices = @transform_19, window_bounds = array<i64: 1, 32>}, {pipeline_mode = #tpu.pipeline_mode<synchronous>, transform_indices = @transform_20, window_bounds = array<i64: 32, 32>}, {pipeline_mode = #tpu.pipeline_mode<synchronous>, transform_indices = @transform_21, window_bounds = array<i64: 1, 32>}, {transform_indices = @transform_22, window_bounds = array<i64: 1, 2, 32>}, {transform_indices = @transform_23, window_bounds = array<i64: 1, 2, 8>}, {transform_indices = @transform_24, window_bounds = array<i64: 1, 2, 1>}]} {
    %c0_i32 = arith.constant 0 : i32
    %0 = arith.cmpi eq, %arg0, %c0_i32 : i32
    %1 = arith.extui %0 : i1 to i32
    %c0_i32_0 = arith.constant 0 : i32
    %2 = arith.cmpi ne, %1, %c0_i32_0 : i32
    scf.if %2 {
      %c0_84 = arith.constant 0 : index
      %c0_85 = arith.constant 0 : index
      %143 = vector.load %arg2[%c0_84, %c0_85] : memref<2x16xf32, #tpu.memory_space<vmem>>, vector<2x16xf32>
      %c0_86 = arith.constant 0 : index
      %c0_87 = arith.constant 0 : index
      %144 = vector.load %arg26[%c0_86, %c0_87] : memref<2x16xf32, #tpu.memory_space<vmem>>, vector<2x16xf32>
      tpu.vector_store %arg26[%c0_86, %c0_87], %143 {strides = array<i32>} : memref<2x16xf32, #tpu.memory_space<vmem>>, vector<2x16xf32>,
      %c0_88 = arith.constant 0 : index
      %c0_89 = arith.constant 0 : index
      %145 = vector.load %arg3[%c0_88, %c0_89] : memref<2x16xf32, #tpu.memory_space<vmem>>, vector<2x16xf32>
      %c0_90 = arith.constant 0 : index
      %c0_91 = arith.constant 0 : index
      %146 = vector.load %arg27[%c0_90, %c0_91] : memref<2x16xf32, #tpu.memory_space<vmem>>, vector<2x16xf32>
      tpu.vector_store %arg27[%c0_90, %c0_91], %145 {strides = array<i32>} : memref<2x16xf32, #tpu.memory_space<vmem>>, vector<2x16xf32>,
      %cst_92 = arith.constant 0.000000e+00 : f32
      %147 = vector.broadcast %cst_92 : f32 to vector<2x8xf32>
      %c0_93 = arith.constant 0 : index
      %c0_94 = arith.constant 0 : index
      %148 = vector.load %arg28[%c0_93, %c0_94] : memref<2x8xf32, #tpu.memory_space<vmem>>, vector<2x8xf32>
      tpu.vector_store %arg28[%c0_93, %c0_94], %147 {strides = array<i32>} : memref<2x8xf32, #tpu.memory_space<vmem>>, vector<2x8xf32>,
    } else {
    }
    %c0 = arith.constant 0 : index
    %c0_1 = arith.constant 0 : index
    %c0_2 = arith.constant 0 : index
    %3 = vector.load %arg1[%c0, %c0_1, %c0_2] : memref<1x2x16xf32, #tpu.memory_space<vmem>>, vector<1x2x16xf32>
    %4 = vector.shape_cast %3 : vector<1x2x16xf32> to vector<2x16xf32>
    %c0_3 = arith.constant 0 : index
    %c0_4 = arith.constant 0 : index
    %5 = vector.load %arg7[%c0_3, %c0_4] : memref<16x64xf32, #tpu.memory_space<vmem>>, vector<16x64xf32>
    %cst = arith.constant dense<0.000000e+00> : vector<2x64xf32>
    %6 = tpu.matmul %4, %5, %cst {dimension_numbers = #tpu.dot_dimension_numbers<[1], [0], [0], [1], [0, 0, 1, 1], [], []>} : vector<2x16xf32>, vector<16x64xf32>, vector<2x64xf32> -> vector<2x64xf32>
    %c0_5 = arith.constant 0 : index
    %c0_6 = arith.constant 0 : index
    %7 = vector.load %arg26[%c0_5, %c0_6] : memref<2x16xf32, #tpu.memory_space<vmem>>, vector<2x16xf32>
    %c0_7 = arith.constant 0 : index
    %c0_8 = arith.constant 0 : index
    %8 = vector.load %arg8[%c0_7, %c0_8] : memref<16x64xf32, #tpu.memory_space<vmem>>, vector<16x64xf32>
    %cst_9 = arith.constant dense<0.000000e+00> : vector<2x64xf32>
    %9 = tpu.matmul %7, %8, %cst_9 {dimension_numbers = #tpu.dot_dimension_numbers<[1], [0], [0], [1], [0, 0, 1, 1], [], []>} : vector<2x16xf32>, vector<16x64xf32>, vector<2x64xf32> -> vector<2x64xf32>
    %10 = arith.addf %6, %9 : vector<2x64xf32>
    %c0_10 = arith.constant 0 : index
    %c0_11 = arith.constant 0 : index
    %11 = vector.load %arg9[%c0_10, %c0_11] : memref<1x64xf32, #tpu.memory_space<vmem>>, vector<1x64xf32>
    %12 = vector.broadcast %11 : vector<1x64xf32> to vector<2x64xf32>
    %13 = arith.addf %10, %12 : vector<2x64xf32>
    %14 = vector.extract_strided_slice %13 {offsets = [0, 0], sizes = [2, 16], strides = [1, 1]} : vector<2x64xf32> to vector<2x16xf32>
    %15 = arith.negf %14 : vector<2x16xf32>
    %16 = math.exp %15 : vector<2x16xf32>
    %cst_12 = arith.constant 1.000000e+00 : f32
    %17 = vector.broadcast %cst_12 : f32 to vector<2x16xf32>
    %18 = arith.addf %17, %16 : vector<2x16xf32>
    %19 = arith.divf %17, %18 : vector<2x16xf32>
    %20 = vector.extract_strided_slice %13 {offsets = [0, 16], sizes = [2, 16], strides = [1, 1]} : vector<2x64xf32> to vector<2x16xf32>
    %21 = arith.negf %20 : vector<2x16xf32>
    %22 = math.exp %21 : vector<2x16xf32>
    %cst_13 = arith.constant 1.000000e+00 : f32
    %23 = vector.broadcast %cst_13 : f32 to vector<2x16xf32>
    %24 = arith.addf %23, %22 : vector<2x16xf32>
    %25 = arith.divf %23, %24 : vector<2x16xf32>
    %26 = vector.extract_strided_slice %13 {offsets = [0, 32], sizes = [2, 16], strides = [1, 1]} : vector<2x64xf32> to vector<2x16xf32>
    %27 = math.tanh %26 : vector<2x16xf32>
    %28 = vector.extract_strided_slice %13 {offsets = [0, 48], sizes = [2, 16], strides = [1, 1]} : vector<2x64xf32> to vector<2x16xf32>
    %29 = arith.negf %28 : vector<2x16xf32>
    %30 = math.exp %29 : vector<2x16xf32>
    %cst_14 = arith.constant 1.000000e+00 : f32
    %31 = vector.broadcast %cst_14 : f32 to vector<2x16xf32>
    %32 = arith.addf %31, %30 : vector<2x16xf32>
    %33 = arith.divf %31, %32 : vector<2x16xf32>
    %c0_15 = arith.constant 0 : index
    %c0_16 = arith.constant 0 : index
    %34 = vector.load %arg27[%c0_15, %c0_16] : memref<2x16xf32, #tpu.memory_space<vmem>>, vector<2x16xf32>
    %35 = arith.mulf %25, %34 : vector<2x16xf32>
    %36 = arith.mulf %19, %27 : vector<2x16xf32>
    %37 = arith.addf %35, %36 : vector<2x16xf32>
    %38 = math.tanh %37 : vector<2x16xf32>
    %39 = arith.mulf %33, %38 : vector<2x16xf32>
    %c0_17 = arith.constant 0 : index
    %c0_18 = arith.constant 0 : index
    %40 = vector.load %arg26[%c0_17, %c0_18] : memref<2x16xf32, #tpu.memory_space<vmem>>, vector<2x16xf32>
    tpu.vector_store %arg26[%c0_17, %c0_18], %39 {strides = array<i32>} : memref<2x16xf32, #tpu.memory_space<vmem>>, vector<2x16xf32>,
    %c0_19 = arith.constant 0 : index
    %c0_20 = arith.constant 0 : index
    %41 = vector.load %arg27[%c0_19, %c0_20] : memref<2x16xf32, #tpu.memory_space<vmem>>, vector<2x16xf32>
    tpu.vector_store %arg27[%c0_19, %c0_20], %37 {strides = array<i32>} : memref<2x16xf32, #tpu.memory_space<vmem>>, vector<2x16xf32>,
    %c0_21 = arith.constant 0 : index
    %c0_22 = arith.constant 0 : index
    %42 = vector.load %arg28[%c0_21, %c0_22] : memref<2x8xf32, #tpu.memory_space<vmem>>, vector<2x8xf32>
    %c0_23 = arith.constant 0 : index
    %c0_24 = arith.constant 0 : index
    %c0_25 = arith.constant 0 : index
    %43 = vector.load %arg4[%c0_23, %c0_24, %c0_25] : memref<2x8x32xf32, #tpu.memory_space<vmem>>, vector<2x8x32xf32>
    %c0_26 = arith.constant 0 : index
    %c0_27 = arith.constant 0 : index
    %44 = vector.load %arg10[%c0_26, %c0_27] : memref<16x16xf32, #tpu.memory_space<vmem>>, vector<16x16xf32>
    %cst_28 = arith.constant dense<0.000000e+00> : vector<2x16xf32>
    %45 = tpu.matmul %39, %44, %cst_28 {dimension_numbers = #tpu.dot_dimension_numbers<[1], [0], [0], [1], [0, 0, 1, 1], [], []>} : vector<2x16xf32>, vector<16x16xf32>, vector<2x16xf32> -> vector<2x16xf32>
    %c0_29 = arith.constant 0 : index
    %c0_30 = arith.constant 0 : index
    %c0_31 = arith.constant 0 : index
    %46 = vector.load %arg5[%c0_29, %c0_30, %c0_31] : memref<2x8x16xf32, #tpu.memory_space<vmem>>, vector<2x8x16xf32>
    %47 = vector.shape_cast %45 : vector<2x16xf32> to vector<2x1x16xf32>
    %48 = vector.broadcast %47 : vector<2x1x16xf32> to vector<2x8x16xf32>
    %49 = arith.addf %46, %48 : vector<2x8x16xf32>
    %50 = vector.shape_cast %42 : vector<2x8xf32> to vector<2x8x1xf32>
    %c0_32 = arith.constant 0 : index
    %c0_33 = arith.constant 0 : index
    %51 = vector.load %arg11[%c0_32, %c0_33] : memref<1x16xf32, #tpu.memory_space<vmem>>, vector<1x16xf32>
    %52 = vector.shape_cast %51 : vector<1x16xf32> to vector<1x1x16xf32>
    %53 = vector.broadcast %50 : vector<2x8x1xf32> to vector<2x8x16xf32>
    %54 = vector.broadcast %52 : vector<1x1x16xf32> to vector<2x8x16xf32>
    %55 = arith.mulf %53, %54 : vector<2x8x16xf32>
    %56 = arith.addf %49, %55 : vector<2x8x16xf32>
    %c0_34 = arith.constant 0 : index
    %c0_35 = arith.constant 0 : index
    %57 = vector.load %arg12[%c0_34, %c0_35] : memref<1x1xf32, #tpu.memory_space<vmem>>, vector<1x1xf32>
    %58 = vector.shape_cast %57 : vector<1x1xf32> to vector<1x1x1xf32>
    %59 = vector.broadcast %58 : vector<1x1x1xf32> to vector<2x8x16xf32>
    %60 = arith.addf %56, %59 : vector<2x8x16xf32>
    %61 = math.tanh %60 : vector<2x8x16xf32>
    %c0_36 = arith.constant 0 : index
    %c0_37 = arith.constant 0 : index
    %62 = vector.load %arg13[%c0_36, %c0_37] : memref<16x1xf32, #tpu.memory_space<vmem>>, vector<16x1xf32>
    %63 = vector.shape_cast %62 : vector<16x1xf32> to vector<16xf32>
    %64 = vector.shape_cast %63 : vector<16xf32> to vector<1x1x16xf32>
    %65 = vector.broadcast %64 : vector<1x1x16xf32> to vector<2x8x16xf32>
    %66 = arith.mulf %61, %65 : vector<2x8x16xf32>
    %cst_38 = arith.constant dense<0.000000e+00> : vector<2x8xf32>
    %67 = vector.multi_reduction <add>, %66, %cst_38 [2] : vector<2x8x16xf32> to vector<2x8xf32>
    %c0_39 = arith.constant 0 : index
    %c0_40 = arith.constant 0 : index
    %68 = vector.load %arg6[%c0_39, %c0_40] : memref<2x8xf32, #tpu.memory_space<vmem>>, vector<2x8xf32>
    %69 = arith.addf %67, %68 : vector<2x8xf32>
    %cst_41 = arith.constant dense<0xFF800000> : vector<2xf32>
    %70 = vector.multi_reduction <maximumf>, %69, %cst_41 [1] : vector<2x8xf32> to vector<2xf32>
    %71 = vector.shape_cast %70 : vector<2xf32> to vector<2x1xf32>
    %72 = vector.broadcast %71 : vector<2x1xf32> to vector<2x8xf32>
    %73 = arith.subf %69, %72 : vector<2x8xf32>
    %74 = math.exp %73 : vector<2x8xf32>
    %cst_42 = arith.constant dense<0.000000e+00> : vector<2xf32>
    %75 = vector.multi_reduction <add>, %74, %cst_42 [1] : vector<2x8xf32> to vector<2xf32>
    %76 = vector.shape_cast %75 : vector<2xf32> to vector<2x1xf32>
    %77 = tpu.reciprocal %76 {approx = true} : vector<2x1xf32> -> vector<2x1xf32>
    %78 = vector.broadcast %77 : vector<2x1xf32> to vector<2x8xf32>
    %79 = arith.mulf %74, %78 : vector<2x8xf32>
    %80 = vector.shape_cast %79 : vector<2x8xf32> to vector<2x8x1xf32>
    %81 = vector.broadcast %80 : vector<2x8x1xf32> to vector<2x8x32xf32>
    %82 = arith.mulf %81, %43 : vector<2x8x32xf32>
    %cst_43 = arith.constant dense<0.000000e+00> : vector<2x32xf32>
    %83 = vector.multi_reduction <add>, %82, %cst_43 [1] : vector<2x8x32xf32> to vector<2x32xf32>
    %84 = arith.minimumf %79, %42 : vector<2x8xf32>
    %cst_44 = arith.constant dense<0.000000e+00> : vector<2xf32>
    %85 = vector.multi_reduction <add>, %84, %cst_44 [1] : vector<2x8xf32> to vector<2xf32>
    %86 = vector.shape_cast %85 : vector<2xf32> to vector<2x1xf32>
    %87 = arith.addf %42, %79 : vector<2x8xf32>
    %c0_45 = arith.constant 0 : index
    %c0_46 = arith.constant 0 : index
    %88 = vector.load %arg28[%c0_45, %c0_46] : memref<2x8xf32, #tpu.memory_space<vmem>>, vector<2x8xf32>
    tpu.vector_store %arg28[%c0_45, %c0_46], %87 {strides = array<i32>} : memref<2x8xf32, #tpu.memory_space<vmem>>, vector<2x8xf32>,
    %c0_47 = arith.constant 0 : index
    %c0_48 = arith.constant 0 : index
    %89 = vector.load %arg14[%c0_47, %c0_48] : memref<32x1xf32, #tpu.memory_space<vmem>>, vector<32x1xf32>
    %cst_49 = arith.constant dense<0.000000e+00> : vector<2x1xf32>
    %90 = tpu.matmul %83, %89, %cst_49 {dimension_numbers = #tpu.dot_dimension_numbers<[1], [0], [0], [1], [0, 0, 1, 1], [], []>} : vector<2x32xf32>, vector<32x1xf32>, vector<2x1xf32> -> vector<2x1xf32>
    %c0_50 = arith.constant 0 : index
    %c0_51 = arith.constant 0 : index
    %91 = vector.load %arg15[%c0_50, %c0_51] : memref<16x1xf32, #tpu.memory_space<vmem>>, vector<16x1xf32>
    %cst_52 = arith.constant dense<0.000000e+00> : vector<2x1xf32>
    %92 = tpu.matmul %39, %91, %cst_52 {dimension_numbers = #tpu.dot_dimension_numbers<[1], [0], [0], [1], [0, 0, 1, 1], [], []>} : vector<2x16xf32>, vector<16x1xf32>, vector<2x1xf32> -> vector<2x1xf32>
    %93 = arith.addf %90, %92 : vector<2x1xf32>
    %c0_53 = arith.constant 0 : index
    %c0_54 = arith.constant 0 : index
    %94 = vector.load %arg16[%c0_53, %c0_54] : memref<16x1xf32, #tpu.memory_space<vmem>>, vector<16x1xf32>
    %cst_55 = arith.constant dense<0.000000e+00> : vector<2x1xf32>
    %95 = tpu.matmul %4, %94, %cst_55 {dimension_numbers = #tpu.dot_dimension_numbers<[1], [0], [0], [1], [0, 0, 1, 1], [], []>} : vector<2x16xf32>, vector<16x1xf32>, vector<2x1xf32> -> vector<2x1xf32>
    %96 = arith.addf %93, %95 : vector<2x1xf32>
    %c0_56 = arith.constant 0 : index
    %c0_57 = arith.constant 0 : index
    %97 = vector.load %arg17[%c0_56, %c0_57] : memref<1x1xf32, #tpu.memory_space<vmem>>, vector<1x1xf32>
    %98 = vector.broadcast %97 : vector<1x1xf32> to vector<2x1xf32>
    %99 = arith.addf %96, %98 : vector<2x1xf32>
    %100 = arith.negf %99 : vector<2x1xf32>
    %101 = math.exp %100 : vector<2x1xf32>
    %cst_58 = arith.constant 1.000000e+00 : f32
    %102 = vector.broadcast %cst_58 : f32 to vector<2x1xf32>
    %103 = arith.addf %102, %101 : vector<2x1xf32>
    %104 = arith.divf %102, %103 : vector<2x1xf32>
    %c0_59 = arith.constant 0 : index
    %c0_60 = arith.constant 0 : index
    %105 = vector.load %arg18[%c0_59, %c0_60] : memref<32x32xf32, #tpu.memory_space<vmem>>, vector<32x32xf32>
    %cst_61 = arith.constant dense<0.000000e+00> : vector<2x32xf32>
    %106 = tpu.matmul %83, %105, %cst_61 {dimension_numbers = #tpu.dot_dimension_numbers<[1], [0], [0], [1], [0, 0, 1, 1], [], []>} : vector<2x32xf32>, vector<32x32xf32>, vector<2x32xf32> -> vector<2x32xf32>
    %c0_62 = arith.constant 0 : index
    %c0_63 = arith.constant 0 : index
    %107 = vector.load %arg19[%c0_62, %c0_63] : memref<16x32xf32, #tpu.memory_space<vmem>>, vector<16x32xf32>
    %cst_64 = arith.constant dense<0.000000e+00> : vector<2x32xf32>
    %108 = tpu.matmul %39, %107, %cst_64 {dimension_numbers = #tpu.dot_dimension_numbers<[1], [0], [0], [1], [0, 0, 1, 1], [], []>} : vector<2x16xf32>, vector<16x32xf32>, vector<2x32xf32> -> vector<2x32xf32>
    %109 = arith.addf %106, %108 : vector<2x32xf32>
    %c0_65 = arith.constant 0 : index
    %c0_66 = arith.constant 0 : index
    %110 = vector.load %arg20[%c0_65, %c0_66] : memref<1x32xf32, #tpu.memory_space<vmem>>, vector<1x32xf32>
    %111 = vector.broadcast %110 : vector<1x32xf32> to vector<2x32xf32>
    %112 = arith.addf %109, %111 : vector<2x32xf32>
    %c0_67 = arith.constant 0 : index
    %c0_68 = arith.constant 0 : index
    %113 = vector.load %arg21[%c0_67, %c0_68] : memref<32x32xf32, #tpu.memory_space<vmem>>, vector<32x32xf32>
    %cst_69 = arith.constant dense<0.000000e+00> : vector<2x32xf32>
    %114 = tpu.matmul %112, %113, %cst_69 {dimension_numbers = #tpu.dot_dimension_numbers<[1], [0], [0], [1], [0, 0, 1, 1], [], []>} : vector<2x32xf32>, vector<32x32xf32>, vector<2x32xf32> -> vector<2x32xf32>
    %c0_70 = arith.constant 0 : index
    %c0_71 = arith.constant 0 : index
    %115 = vector.load %arg22[%c0_70, %c0_71] : memref<1x32xf32, #tpu.memory_space<vmem>>, vector<1x32xf32>
    %116 = vector.broadcast %115 : vector<1x32xf32> to vector<2x32xf32>
    %117 = arith.addf %114, %116 : vector<2x32xf32>
    %cst_72 = arith.constant dense<0xFF800000> : vector<2xf32>
    %118 = vector.multi_reduction <maximumf>, %117, %cst_72 [1] : vector<2x32xf32> to vector<2xf32>
    %119 = vector.shape_cast %118 : vector<2xf32> to vector<2x1xf32>
    %120 = vector.broadcast %119 : vector<2x1xf32> to vector<2x32xf32>
    %121 = arith.subf %117, %120 : vector<2x32xf32>
    %122 = math.exp %121 : vector<2x32xf32>
    %cst_73 = arith.constant dense<0.000000e+00> : vector<2xf32>
    %123 = vector.multi_reduction <add>, %122, %cst_73 [1] : vector<2x32xf32> to vector<2xf32>
    %124 = vector.shape_cast %123 : vector<2xf32> to vector<2x1xf32>
    %125 = tpu.reciprocal %124 {approx = true} : vector<2x1xf32> -> vector<2x1xf32>
    %126 = vector.broadcast %125 : vector<2x1xf32> to vector<2x32xf32>
    %127 = arith.mulf %122, %126 : vector<2x32xf32>
    %128 = vector.broadcast %104 : vector<2x1xf32> to vector<2x32xf32>
    %129 = arith.mulf %127, %128 : vector<2x32xf32>
    %c0_74 = arith.constant 0 : index
    %c0_75 = arith.constant 0 : index
    %c0_76 = arith.constant 0 : index
    %130 = vector.load %arg23[%c0_74, %c0_75, %c0_76] : memref<1x2x32xf32, #tpu.memory_space<vmem>>, vector<1x2x32xf32>
    %131 = vector.shape_cast %130 : vector<1x2x32xf32> to vector<2x32xf32>
    %132 = vector.shape_cast %129 : vector<2x32xf32> to vector<1x2x32xf32>
    tpu.vector_store %arg23[%c0_74, %c0_75, %c0_76], %132 {strides = array<i32>} : memref<1x2x32xf32, #tpu.memory_space<vmem>>, vector<1x2x32xf32>,
    %cst_77 = arith.constant 1.000000e+00 : f32
    %133 = vector.broadcast %cst_77 : f32 to vector<2x1xf32>
    %134 = arith.subf %133, %104 : vector<2x1xf32>
    %135 = vector.broadcast %134 : vector<2x1xf32> to vector<2x8xf32>
    %136 = arith.mulf %79, %135 : vector<2x8xf32>
    %c0_78 = arith.constant 0 : index
    %c0_79 = arith.constant 0 : index
    %c0_80 = arith.constant 0 : index
    %137 = vector.load %arg24[%c0_78, %c0_79, %c0_80] : memref<1x2x8xf32, #tpu.memory_space<vmem>>, vector<1x2x8xf32>
    %138 = vector.shape_cast %137 : vector<1x2x8xf32> to vector<2x8xf32>
    %139 = vector.shape_cast %136 : vector<2x8xf32> to vector<1x2x8xf32>
    tpu.vector_store %arg24[%c0_78, %c0_79, %c0_80], %139 {strides = array<i32>} : memref<1x2x8xf32, #tpu.memory_space<vmem>>, vector<1x2x8xf32>,
    %c0_81 = arith.constant 0 : index
    %c0_82 = arith.constant 0 : index
    %c0_83 = arith.constant 0 : index
    %140 = vector.load %arg25[%c0_81, %c0_82, %c0_83] : memref<1x2x1xf32, #tpu.memory_space<vmem>>, vector<1x2x1xf32>
    %141 = vector.shape_cast %140 : vector<1x2x1xf32> to vector<2x1xf32>
    %142 = vector.shape_cast %86 : vector<2x1xf32> to vector<1x2x1xf32>
    tpu.vector_store %arg25[%c0_81, %c0_82, %c0_83], %142 {strides = array<i32>} : memref<1x2x1xf32, #tpu.memory_space<vmem>>, vector<1x2x1xf32>,
    return
  }
  func.func @transform_0(%arg0: i32) -> (i32, i32, i32) {
    %c0_i32 = arith.constant 0 : i32
    %c0_i32_0 = arith.constant 0 : i32
    %c0_i32_1 = arith.constant 0 : i32
    return %arg0, %c0_i32, %c0_i32_0 : i32, i32, i32
  }
  func.func @transform_1(%arg0: i32) -> (i32, i32) {
    %c0_i32 = arith.constant 0 : i32
    %c0_i32_0 = arith.constant 0 : i32
    %c0_i32_1 = arith.constant 0 : i32
    return %c0_i32, %c0_i32_0 : i32, i32
  }
  func.func @transform_2(%arg0: i32) -> (i32, i32) {
    %c0_i32 = arith.constant 0 : i32
    %c0_i32_0 = arith.constant 0 : i32
    %c0_i32_1 = arith.constant 0 : i32
    return %c0_i32, %c0_i32_0 : i32, i32
  }
  func.func @transform_3(%arg0: i32) -> (i32, i32, i32) {
    %c0_i32 = arith.constant 0 : i32
    %c0_i32_0 = arith.constant 0 : i32
    %c0_i32_1 = arith.constant 0 : i32
    %c0_i32_2 = arith.constant 0 : i32
    return %c0_i32, %c0_i32_0, %c0_i32_1 : i32, i32, i32
  }
  func.func @transform_4(%arg0: i32) -> (i32, i32, i32) {
    %c0_i32 = arith.constant 0 : i32
    %c0_i32_0 = arith.constant 0 : i32
    %c0_i32_1 = arith.constant 0 : i32
    %c0_i32_2 = arith.constant 0 : i32
    return %c0_i32, %c0_i32_0, %c0_i32_1 : i32, i32, i32
  }
  func.func @transform_5(%arg0: i32) -> (i32, i32) {
    %c0_i32 = arith.constant 0 : i32
    %c0_i32_0 = arith.constant 0 : i32
    %c0_i32_1 = arith.constant 0 : i32
    return %c0_i32, %c0_i32_0 : i32, i32
  }
  func.func @transform_6(%arg0: i32) -> (i32, i32) {
    %c0_i32 = arith.constant 0 : i32
    %c0_i32_0 = arith.constant 0 : i32
    %c0_i32_1 = arith.constant 0 : i32
    return %c0_i32, %c0_i32_0 : i32, i32
  }
  func.func @transform_7(%arg0: i32) -> (i32, i32) {
    %c0_i32 = arith.constant 0 : i32
    %c0_i32_0 = arith.constant 0 : i32
    %c0_i32_1 = arith.constant 0 : i32
    return %c0_i32, %c0_i32_0 : i32, i32
  }
  func.func @transform_8(%arg0: i32) -> (i32, i32) {
    %c0_i32 = arith.constant 0 : i32
    %c0_i32_0 = arith.constant 0 : i32
    %c0_i32_1 = arith.constant 0 : i32
    return %c0_i32, %c0_i32_0 : i32, i32
  }
  func.func @transform_9(%arg0: i32) -> (i32, i32) {
    %c0_i32 = arith.constant 0 : i32
    %c0_i32_0 = arith.constant 0 : i32
    %c0_i32_1 = arith.constant 0 : i32
    return %c0_i32, %c0_i32_0 : i32, i32
  }
  func.func @transform_10(%arg0: i32) -> (i32, i32) {
    %c0_i32 = arith.constant 0 : i32
    %c0_i32_0 = arith.constant 0 : i32
    %c0_i32_1 = arith.constant 0 : i32
    return %c0_i32, %c0_i32_0 : i32, i32
  }
  func.func @transform_11(%arg0: i32) -> (i32, i32) {
    %c0_i32 = arith.constant 0 : i32
    %c0_i32_0 = arith.constant 0 : i32
    %c0_i32_1 = arith.constant 0 : i32
    return %c0_i32, %c0_i32_0 : i32, i32
  }
  func.func @transform_12(%arg0: i32) -> (i32, i32) {
    %c0_i32 = arith.constant 0 : i32
    %c0_i32_0 = arith.constant 0 : i32
    %c0_i32_1 = arith.constant 0 : i32
    return %c0_i32, %c0_i32_0 : i32, i32
  }
  func.func @transform_13(%arg0: i32) -> (i32, i32) {
    %c0_i32 = arith.constant 0 : i32
    %c0_i32_0 = arith.constant 0 : i32
    %c0_i32_1 = arith.constant 0 : i32
    return %c0_i32, %c0_i32_0 : i32, i32
  }
  func.func @transform_14(%arg0: i32) -> (i32, i32) {
    %c0_i32 = arith.constant 0 : i32
    %c0_i32_0 = arith.constant 0 : i32
    %c0_i32_1 = arith.constant 0 : i32
    return %c0_i32, %c0_i32_0 : i32, i32
  }
  func.func @transform_15(%arg0: i32) -> (i32, i32) {
    %c0_i32 = arith.constant 0 : i32
    %c0_i32_0 = arith.constant 0 : i32
    %c0_i32_1 = arith.constant 0 : i32
    return %c0_i32, %c0_i32_0 : i32, i32
  }
  func.func @transform_16(%arg0: i32) -> (i32, i32) {
    %c0_i32 = arith.constant 0 : i32
    %c0_i32_0 = arith.constant 0 : i32
    %c0_i32_1 = arith.constant 0 : i32
    return %c0_i32, %c0_i32_0 : i32, i32
  }
  func.func @transform_17(%arg0: i32) -> (i32, i32) {
    %c0_i32 = arith.constant 0 : i32
    %c0_i32_0 = arith.constant 0 : i32
    %c0_i32_1 = arith.constant 0 : i32
    return %c0_i32, %c0_i32_0 : i32, i32
  }
  func.func @transform_18(%arg0: i32) -> (i32, i32) {
    %c0_i32 = arith.constant 0 : i32
    %c0_i32_0 = arith.constant 0 : i32
    %c0_i32_1 = arith.constant 0 : i32
    return %c0_i32, %c0_i32_0 : i32, i32
  }
  func.func @transform_19(%arg0: i32) -> (i32, i32) {
    %c0_i32 = arith.constant 0 : i32
    %c0_i32_0 = arith.constant 0 : i32
    %c0_i32_1 = arith.constant 0 : i32
    return %c0_i32, %c0_i32_0 : i32, i32
  }
  func.func @transform_20(%arg0: i32) -> (i32, i32) {
    %c0_i32 = arith.constant 0 : i32
    %c0_i32_0 = arith.constant 0 : i32
    %c0_i32_1 = arith.constant 0 : i32
    return %c0_i32, %c0_i32_0 : i32, i32
  }
  func.func @transform_21(%arg0: i32) -> (i32, i32) {
    %c0_i32 = arith.constant 0 : i32
    %c0_i32_0 = arith.constant 0 : i32
    %c0_i32_1 = arith.constant 0 : i32
    return %c0_i32, %c0_i32_0 : i32, i32
  }
  func.func @transform_22(%arg0: i32) -> (i32, i32, i32) {
    %c0_i32 = arith.constant 0 : i32
    %c0_i32_0 = arith.constant 0 : i32
    %c0_i32_1 = arith.constant 0 : i32
    return %arg0, %c0_i32, %c0_i32_0 : i32, i32, i32
  }
  func.func @transform_23(%arg0: i32) -> (i32, i32, i32) {
    %c0_i32 = arith.constant 0 : i32
    %c0_i32_0 = arith.constant 0 : i32
    %c0_i32_1 = arith.constant 0 : i32
    return %arg0, %c0_i32, %c0_i32_0 : i32, i32, i32
  }
  func.func @transform_24(%arg0: i32) -> (i32, i32, i32) {
    %c0_i32 = arith.constant 0 : i32
    %c0_i32_0 = arith.constant 0 : i32
    %c0_i32_1 = arith.constant 0 : i32
    return %arg0, %c0_i32, %c0_i32_0 : i32, i32, i32
  }
}

</mosaic_0001>

<llo_original>
// kernel: summary_forward.8
$region0: #{summary_forward.8}
  #allocation0 [shape = 'u32[]', space=smem, size = 0x4, offset = 0x4, fixed_abs, tag = 'smem constant byte address 0x4 - core index']
  #allocation1 [shape = 'u32[72,128]{1,0:T(1,128)}', space=vmem, size = 0x9000, scoped, tag = 'internal scratch']
  %s0 = inlined_call_operand.vmem [shape: f32[2,32], index: 0, kind: input, shape index: {}]
  %s1 = inlined_call_operand.vmem [shape: f32[32,16], index: 1, kind: input, shape index: {}]
  %s2 = inlined_call_operand.vmem [shape: f32[2,16], index: 2, kind: output, shape index: {}]
  %s3 = sld [smem:[#allocation0]]
  $region18: #{summary_forward.8} parent=0
    _
  %s5 = ssub.s32 1, %s3
  %s6 = scalar_select 0, %s5, %s3
  // Predicated region
  $region2: #{summary_forward.8} parent=0 // pred_check
    _
  $region3: #{summary_forward.8} parent=0 // pred_check_branch
    %8 = sbr.rel (0) target = $region5
  $region4: #{summary_forward.8} parent=0 // pred_region
    _
  $region5: #{summary_forward.8} parent=0 // pred_fallthru
    _
  // Predicated region
  $region6: #{summary_forward.8} parent=0 // pred_check
    _
  $region7: #{summary_forward.8} parent=0 // pred_check_branch
    %10 = sbr.rel (0) target = $region9
  $region8: #{summary_forward.8} parent=0 // pred_region
    _
  $region9: #{summary_forward.8} parent=0 // pred_fallthru
    _
  %v11 = vld [vmem:[%s0] sm:$0x3]
  %v12 = vld [vmem:[%s1] sm:$0xff]
  %v13 = vld [vmem:[%s1 + $0x8] sm:$0xff]
  %v14 = vld [vmem:[%s1 + $0x10] sm:$0xff]
  %v15 = vld [vmem:[%s1 + $0x18] sm:$0xff]
  %vm16 = vcmask 261120
  %v18 = vsel %vm16, %v11, 0
  %20 = vmatpush.msra.mxu0 0.0
  %21 = vmatpush.msra.mxu0 0.0
  %22 = vmatpush.msra.mxu0 0.0
  %23 = vmatpush.msra.mxu0 0.0
  %24 = vmatpush.msra.mxu0 0.0
  %25 = vmatpush.msra.mxu0 0.0
  %26 = vmatpush.msra.mxu0 0.0
  %27 = vmatpush.msra.mxu0 0.0
  %28 = vmatpush.msra.mxu0 0.0
  %29 = vmatpush.msra.mxu0 0.0
  %30 = vmatpush.msra.mxu0 0.0
  %31 = vmatpush.msra.mxu0 0.0
  %32 = vmatpush.msra.mxu0 %v15
  %33 = vmatpush.msra.mxu0 %v14
  %34 = vmatpush.msra.mxu0 %v13
  %35 = vmatpush.msra.mxu0 %v12
  %36 = vmatmul.f32.gmra.mxu0 %v18
  %v37 = vpop.f32.mrf.mxu0
  %v38 = vadd.f32 0.0, %v37
  %39 = vdwg.mxu0
  %vm40 = vcmask 123904
  %41 = vst.msk [vmem:[%s2] sm:$0x3] %vm40, %v38
  // Predicated region
  $region10: #{summary_forward.8} parent=0 // pred_check
    _
  $region11: #{summary_forward.8} parent=0 // pred_check_branch
    %43 = sbr.rel (0) target = $region13
  $region12: #{summary_forward.8} parent=0 // pred_region
    _
  $region13: #{summary_forward.8} parent=0 // pred_fallthru
    _
  // Predicated region
  $region14: #{summary_forward.8} parent=0 // pred_check
    _
  $region15: #{summary_forward.8} parent=0 // pred_check_branch
    %45 = sbr.rel (0) target = $region17
  $region16: #{summary_forward.8} parent=0 // pred_region
    _
  $region17: #{summary_forward.8} parent=0 // pred_fallthru
    _

// kernel: summary_forward.6
$region0: #{summary_forward.6}
  #allocation0 [shape = 'u32[]', space=smem, size = 0x4, offset = 0x4, fixed_abs, tag = 'smem constant byte address 0x4 - core index']
  #allocation1 [shape = 'u32[72,128]{1,0:T(1,128)}', space=vmem, size = 0x9000, scoped, tag = 'internal scratch']
  %s0 = inlined_call_operand.vmem [shape: f32[16,16], index: 0, kind: input, shape index: {}]
  %s1 = inlined_call_operand.vmem [shape: f32[16,128], index: 1, kind: input, shape index: {}]
  %s2 = inlined_call_operand.vmem [shape: f32[1,128], index: 2, kind: input, shape index: {}]
  %s3 = inlined_call_operand.vmem [shape: f32[16,128], index: 3, kind: output, shape index: {}]
  %s4 = sld [smem:[#allocation0]]
  $region22: #{summary_forward.6} parent=0
    _
  %s6 = ssub.s32 1, %s4
  %s7 = scalar_select 0, %s6, %s4
  // Predicated region
  $region2: #{summary_forward.6} parent=0 // pred_check
    _
  $region3: #{summary_forward.6} parent=0 // pred_check_branch
    %9 = sbr.rel (0) target = $region5
  $region4: #{summary_forward.6} parent=0 // pred_region
    _
  $region5: #{summary_forward.6} parent=0 // pred_fallthru
    _
  // Predicated region
  $region6: #{summary_forward.6} parent=0 // pred_check
    _
  $region7: #{summary_forward.6} parent=0 // pred_check_branch
    %11 = sbr.rel (0) target = $region9
  $region8: #{summary_forward.6} parent=0 // pred_region
    _
  $region9: #{summary_forward.6} parent=0 // pred_fallthru
    _
  // Predicated region
  $region10: #{summary_forward.6} parent=0 // pred_check
    _
  $region11: #{summary_forward.6} parent=0 // pred_check_branch
    %13 = sbr.rel (0) target = $region13
  $region12: #{summary_forward.6} parent=0 // pred_region
    _
  $region13: #{summary_forward.6} parent=0 // pred_fallthru
    _
  %v14 = vld [vmem:[%s0] sm:$0xff]
  %v15 = vld [vmem:[%s0 + $0x8] sm:$0xff]
  %v16 = vld [vmem:[%s1] sm:$0xff]
  %v17 = vld [vmem:[%s1 + $0x8] sm:$0xff]
  %v18 = vld [vmem:[%s2] sm:$0x1]
  %v20 = vperm.slane %v18, 0
  %vm22 = vcmask 130048
  %v24 = vsel %vm22, %v14, 0
  %v27 = vsel %vm22, %v15, 0
  %29 = vmatpush.msra.mxu0 0.0
  %30 = vmatpush.msra.mxu0 0.0
  %31 = vmatpush.msra.mxu0 0.0
  %32 = vmatpush.msra.mxu0 0.0
  %33 = vmatpush.msra.mxu0 0.0
  %34 = vmatpush.msra.mxu0 0.0
  %35 = vmatpush.msra.mxu0 0.0
  %36 = vmatpush.msra.mxu0 0.0
  %37 = vmatpush.msra.mxu0 0.0
  %38 = vmatpush.msra.mxu0 0.0
  %39 = vmatpush.msra.mxu0 0.0
  %40 = vmatpush.msra.mxu0 0.0
  %41 = vmatpush.msra.mxu0 0.0
  %42 = vmatpush.msra.mxu0 0.0
  %43 = vmatpush.msra.mxu0 %v17
  %44 = vmatpush.msra.mxu0 %v16
  %45 = vmatmul.f32.gmra.mxu0 %v24
  %v46 = vpop.f32.mrf.mxu0
  %v47 = vadd.f32 %v20, %v46
  %48 = vmatmul.f32.gmra.mxu0 %v27
  %v49 = vpop.f32.mrf.mxu0
  %v50 = vadd.f32 %v20, %v49
  %51 = vdwg.mxu0
  %52 = vst [vmem:[%s3] sm:$0xff] %v47
  %53 = vst [vmem:[%s3 + $0x8] sm:$0xff] %v50
  // Predicated region
  $region14: #{summary_forward.6} parent=0 // pred_check
    _
  $region15: #{summary_forward.6} parent=0 // pred_check_branch
    %55 = sbr.rel (0) target = $region17
  $region16: #{summary_forward.6} parent=0 // pred_region
    _
  $region17: #{summary_forward.6} parent=0 // pred_fallthru
    _
  // Predicated region
  $region18: #{summary_forward.6} parent=0 // pred_check
    _
  $region19: #{summary_forward.6} parent=0 // pred_check_branch
    %57 = sbr.rel (0) target = $region21
  $region20: #{summary_forward.6} parent=0 // pred_region
    _
  $region21: #{summary_forward.6} parent=0 // pred_fallthru
    _

// kernel: summary_forward.10
$region0: #{summary_forward.10}
  #allocation0 [shape = 'u32[]', space=smem, size = 0x4, offset = 0x4, fixed_abs, tag = 'smem constant byte address 0x4 - core index']
  #allocation1 [shape = 'u32[72,128]{1,0:T(1,128)}', space=vmem, size = 0x9000, scoped, tag = 'internal scratch']
  %s0 = inlined_call_operand.vmem [shape: f32[16,32], index: 0, kind: input, shape index: {}]
  %s1 = inlined_call_operand.vmem [shape: f32[32,16], index: 1, kind: input, shape index: {}]
  %s2 = inlined_call_operand.vmem [shape: f32[16,16], index: 2, kind: output, shape index: {}]
  %s3 = sld [smem:[#allocation0]]
  $region18: #{summary_forward.10} parent=0
    _
  %s5 = ssub.s32 1, %s3
  %s6 = scalar_select 0, %s5, %s3
  // Predicated region
  $region2: #{summary_forward.10} parent=0 // pred_check
    _
  $region3: #{summary_forward.10} parent=0 // pred_check_branch
    %8 = sbr.rel (0) target = $region5
  $region4: #{summary_forward.10} parent=0 // pred_region
    _
  $region5: #{summary_forward.10} parent=0 // pred_fallthru
    _
  // Predicated region
  $region6: #{summary_forward.10} parent=0 // pred_check
    _
  $region7: #{summary_forward.10} parent=0 // pred_check_branch
    %10 = sbr.rel (0) target = $region9
  $region8: #{summary_forward.10} parent=0 // pred_region
    _
  $region9: #{summary_forward.10} parent=0 // pred_fallthru
    _
  %v11 = vld [vmem:[%s0] sm:$0xff]
  %v12 = vld [vmem:[%s0 + $0x8] sm:$0xff]
  %v13 = vld [vmem:[%s1] sm:$0xff]
  %v14 = vld [vmem:[%s1 + $0x8] sm:$0xff]
  %v15 = vld [vmem:[%s1 + $0x10] sm:$0xff]
  %v16 = vld [vmem:[%s1 + $0x18] sm:$0xff]
  %vm17 = vcmask 261120
  %v19 = vsel %vm17, %v11, 0
  %v22 = vsel %vm17, %v12, 0
  %24 = vmatpush.msra.mxu0 0.0
  %25 = vmatpush.msra.mxu0 0.0
  %26 = vmatpush.msra.mxu0 0.0
  %27 = vmatpush.msra.mxu0 0.0
  %28 = vmatpush.msra.mxu0 0.0
  %29 = vmatpush.msra.mxu0 0.0
  %30 = vmatpush.msra.mxu0 0.0
  %31 = vmatpush.msra.mxu0 0.0
  %32 = vmatpush.msra.mxu0 0.0
  %33 = vmatpush.msra.mxu0 0.0
  %34 = vmatpush.msra.mxu0 0.0
  %35 = vmatpush.msra.mxu0 0.0
  %36 = vmatpush.msra.mxu0 %v16
  %37 = vmatpush.msra.mxu0 %v15
  %38 = vmatpush.msra.mxu0 %v14
  %39 = vmatpush.msra.mxu0 %v13
  %40 = vmatmul.f32.gmra.mxu0 %v19
  %v41 = vpop.f32.mrf.mxu0
  %v42 = vadd.f32 0.0, %v41
  %43 = vmatmul.f32.gmra.mxu0 %v22
  %v44 = vpop.f32.mrf.mxu0
  %v45 = vadd.f32 0.0, %v44
  %46 = vdwg.mxu0
  %vm47 = vcmask 130048
  %48 = vst.msk [vmem:[%s2] sm:$0xff] %vm47, %v42
  %49 = vst.msk [vmem:[%s2 + $0x8] sm:$0xff] %vm47, %v45
  // Predicated region
  $region10: #{summary_forward.10} parent=0 // pred_check
    _
  $region11: #{summary_forward.10} parent=0 // pred_check_branch
    %51 = sbr.rel (0) target = $region13
  $region12: #{summary_forward.10} parent=0 // pred_region
    _
  $region13: #{summary_forward.10} parent=0 // pred_fallthru
    _
  // Predicated region
  $region14: #{summary_forward.10} parent=0 // pred_check
    _
  $region15: #{summary_forward.10} parent=0 // pred_check_branch
    %53 = sbr.rel (0) target = $region17
  $region16: #{summary_forward.10} parent=0 // pred_region
    _
  $region17: #{summary_forward.10} parent=0 // pred_fallthru
    _

// kernel: summary_forward.7
$region0: #{summary_forward.7}
  #allocation0 [shape = 'u32[]', space=smem, size = 0x4, offset = 0x4, fixed_abs, tag = 'smem constant byte address 0x4 - core index']
  #allocation1 [shape = 'u32[72,128]{1,0:T(1,128)}', space=vmem, size = 0x9000, scoped, tag = 'internal scratch']
  #allocation2 [shape = 'f32[2,16]{1,0:T(2,128)}', space=vmem, size = 0x400, scoped, tag = 'scratch operand']
  #allocation3 [shape = 'f32[2,16]{1,0:T(2,128)}', space=vmem, size = 0x400, scoped, tag = 'scratch operand']
  #allocation4 [shape = 'f32[2,16]{1,0:T(2,128)}', space=vmem, size = 0x400, scoped, tag = 'scratch operand']
  #allocation5 [shape = 'f32[2,16]{1,0:T(2,128)}', space=vmem, size = 0x400, scoped, tag = 'scratch operand']
  %s0 = inlined_call_operand.vmem [shape: f32[8,2,64], index: 0, kind: input, shape index: {}]
  %s1 = inlined_call_operand.vmem [shape: f32[8,2,64], index: 1, kind: input, shape index: {}]
  %s2 = inlined_call_operand.vmem [shape: f32[8,2,1], index: 2, kind: input, shape index: {}, may-alias: {2,3}]
  %s3 = inlined_call_operand.vmem [shape: f32[8,2,1], index: 3, kind: input, shape index: {}, may-alias: {2,3}]
  %s4 = inlined_call_operand.vmem [shape: f32[16,64], index: 4, kind: input, shape index: {}]
  %s5 = inlined_call_operand.vmem [shape: f32[16,64], index: 5, kind: input, shape index: {}]
  %s6 = inlined_call_operand.vmem [shape: f32[8,2,16], index: 6, kind: output, shape index: {0}]
  %s7 = inlined_call_operand.vmem [shape: f32[8,2,16], index: 7, kind: output, shape index: {1}]
  %s8 = inlined_call_operand.vmem [shape: f32[2,16], index: 8, kind: output, shape index: {2}]
  %s9 = inlined_call_operand.vmem [shape: f32[2,16], index: 9, kind: output, shape index: {3}]
  %s10 = inlined_call_operand.vmem [shape: f32[2,16], index: 10, kind: output, shape index: {4}]
  %s11 = inlined_call_operand.vmem [shape: f32[2,16], index: 11, kind: output, shape index: {5}]
  %12 = xla_tuple %s6, %s7, %s8, %s9, %s10, %s11
  %s13 = sld [smem:[#allocation0]]
  $region101: #{summary_forward.7} parent=0
    _
  %s15 = ssub.s32 1, %s13
  %s16 = scalar_select 0, %s15, %s13
  loop: start=0, step=1, limit=10
  $region2: #{summary_forward.7} parent=0 // loop_pre_header
    _
  $region3: #{summary_forward.7} parent=0 // loop_header
    %s18 = sphi 0, %s22
    %p19 = scmp.ge.s32.totalorder %s18, 10
    %s28 = sphi 0, %s30
    %s31 = sphi 0, %s28
    %s32 = sphi 0, %s31
    %s48 = sphi 0, %s32
    %s56 = sphi 0, %s58
    %s59 = sphi 0, %s56
    %s60 = sphi 0, %s59
    %s76 = sphi 0, %s60
    %s82 = sphi 0, %s84
    %s85 = sphi 0, %s82
    %s86 = sphi 0, %s85
    %s102 = sphi 0, %s86
    %s110 = sphi 0, %s112
    %s113 = sphi 0, %s110
    %s114 = sphi 0, %s113
    %s130 = sphi 0, %s114
    %s134 = sphi 0, %s134
    %s136 = sphi 0, %s134
    %s137 = sphi 0, %s136
    %s151 = sphi 0, %s137
    %s155 = sphi 0, %s155
    %s157 = sphi 0, %s155
    %s158 = sphi 0, %s157
    %s172 = sphi 0, %s158
    %s178 = sphi 0, %s180
    %s181 = sphi 0, %s178
    %s182 = sphi 0, %s181
    %s198 = sphi 0, %s182
    %s206 = sphi 0, %s208
    %s209 = sphi 0, %s206
    %s210 = sphi 0, %s209
    %s226 = sphi 0, %s210
    %s230 = sphi 0, %s230
    %s232 = sphi 0, %s230
    %s233 = sphi 0, %s232
    %s247 = sphi 0, %s233
    %s251 = sphi 0, %s251
    %s253 = sphi 0, %s251
    %s254 = sphi 0, %s253
    %s268 = sphi 0, %s254
    %s272 = sphi 0, %s272
    %s274 = sphi 0, %s272
    %s275 = sphi 0, %s274
    %s289 = sphi 0, %s275
    %s293 = sphi 0, %s293
    %s295 = sphi 0, %s293
    %s296 = sphi 0, %s295
    %s310 = sphi 0, %s296
  $region4: #{summary_forward.7} parent=0 // loop_header_branch
    %21 = sbr.rel (%p19) target = $region8
  $region5: #{summary_forward.7} parent=0 // loop_body
    %s23 = ssub.s32 %s18, 1
    %s24 = ssub.s32 %s18, 2
    %s25 = sadd.s32 %s18, 1
    %s26 = ssub.s32 %s18, %s25
    %p27 = scmp.eq.s32.totalorder %s26, 0
    %s29 = sadd.s32 %s28, 1
    %s30 = scalar_select %p27, %s28, %s29
    %p33 = pneg %p27
    %p34 = scmp.eq.s32.totalorder %s18, 7
    %p35 = por %p33, %p34
    %p36 = scmp.ne.s32.totalorder %s28, %s31
    %p37 = scmp.eq.s32.totalorder %s18, 0
    %p38 = por %p36, %p37
    %p39 = scmp.ne.s32.totalorder %s28, %s31
    %p40 = scmp.eq.s32.totalorder %s23, 7
    %p41 = por %p39, %p40
    %p42 = scmp.ne.s32.totalorder %s31, %s32
    %p43 = scmp.eq.s32.totalorder %s23, 0
    %p44 = por %p42, %p43
    %p45 = scmp.ne.s32.totalorder %s31, %s32
    %p46 = scmp.eq.s32.totalorder %s24, 7
    %p47 = por %p45, %p46
    %p49 = scmp.ne.s32.totalorder %s32, %s48
    %p50 = scmp.eq.s32.totalorder %s24, 0
    %p51 = por %p49, %p50
    %s52 = ssub.s32 7, %s18
    %s53 = ssub.s32 7, %s25
    %s54 = ssub.s32 %s52, %s53
    %p55 = scmp.eq.s32.totalorder %s54, 0
    %s57 = sadd.s32 %s56, 1
    %s58 = scalar_select %p55, %s56, %s57
    %p61 = pneg %p55
    %p62 = scmp.eq.s32.totalorder %s18, 7
    %p63 = por %p61, %p62
    %p64 = scmp.ne.s32.totalorder %s56, %s59
    %p65 = scmp.eq.s32.totalorder %s18, 0
    %p66 = por %p64, %p65
    %p67 = scmp.ne.s32.totalorder %s56, %s59
    %p68 = scmp.eq.s32.totalorder %s23, 7
    %p69 = por %p67, %p68
    %p70 = scmp.ne.s32.totalorder %s59, %s60
    %p71 = scmp.eq.s32.totalorder %s23, 0
    %p72 = por %p70, %p71
    %p73 = scmp.ne.s32.totalorder %s59, %s60
    %p74 = scmp.eq.s32.totalorder %s24, 7
    %p75 = por %p73, %p74
    %p77 = scmp.ne.s32.totalorder %s60, %s76
    %p78 = scmp.eq.s32.totalorder %s24, 0
    %p79 = por %p77, %p78
    %s80 = ssub.s32 %s18, %s25
    %p81 = scmp.eq.s32.totalorder %s80, 0
    %s83 = sadd.s32 %s82, 1
    %s84 = scalar_select %p81, %s82, %s83
    %p87 = pneg %p81
    %p88 = scmp.eq.s32.totalorder %s18, 7
    %p89 = por %p87, %p88
    %p90 = scmp.ne.s32.totalorder %s82, %s85
    %p91 = scmp.eq.s32.totalorder %s18, 0
    %p92 = por %p90, %p91
    %p93 = scmp.ne.s32.totalorder %s82, %s85
    %p94 = scmp.eq.s32.totalorder %s23, 7
    %p95 = por %p93, %p94
    %p96 = scmp.ne.s32.totalorder %s85, %s86
    %p97 = scmp.eq.s32.totalorder %s23, 0
    %p98 = por %p96, %p97
    %p99 = scmp.ne.s32.totalorder %s85, %s86
    %p100 = scmp.eq.s32.totalorder %s24, 7
    %p101 = por %p99, %p100
    %p103 = scmp.ne.s32.totalorder %s86, %s102
    %p104 = scmp.eq.s32.totalorder %s24, 0
    %p105 = por %p103, %p104
    %s106 = ssub.s32 7, %s18
    %s107 = ssub.s32 7, %s25
    %s108 = ssub.s32 %s106, %s107
    %p109 = scmp.eq.s32.totalorder %s108, 0
    %s111 = sadd.s32 %s110, 1
    %s112 = scalar_select %p109, %s110, %s111
    %p115 = pneg %p109
    %p116 = scmp.eq.s32.totalorder %s18, 7
    %p117 = por %p115, %p116
    %p118 = scmp.ne.s32.totalorder %s110, %s113
    %p119 = scmp.eq.s32.totalorder %s18, 0
    %p120 = por %p118, %p119
    %p121 = scmp.ne.s32.totalorder %s110, %s113
    %p122 = scmp.eq.s32.totalorder %s23, 7
    %p123 = por %p121, %p122
    %p124 = scmp.ne.s32.totalorder %s113, %s114
    %p125 = scmp.eq.s32.totalorder %s23, 0
    %p126 = por %p124, %p125
    %p127 = scmp.ne.s32.totalorder %s113, %s114
    %p128 = scmp.eq.s32.totalorder %s24, 7
    %p129 = por %p127, %p128
    %p131 = scmp.ne.s32.totalorder %s114, %s130
    %p132 = scmp.eq.s32.totalorder %s24, 0
    %p133 = por %p131, %p132
    %s135 = sadd.s32 %s134, 1
    %p138 = scmp.eq.s32.totalorder %s18, 7
    %p139 = scmp.ne.s32.totalorder %s134, %s136
    %p140 = scmp.eq.s32.totalorder %s18, 0
    %p141 = por %p139, %p140
    %p142 = scmp.ne.s32.totalorder %s134, %s136
    %p143 = scmp.eq.s32.totalorder %s23, 7
    %p144 = por %p142, %p143
    %p145 = scmp.ne.s32.totalorder %s136, %s137
    %p146 = scmp.eq.s32.totalorder %s23, 0
    %p147 = por %p145, %p146
    %p148 = scmp.ne.s32.totalorder %s136, %s137
    %p149 = scmp.eq.s32.totalorder %s24, 7
    %p150 = por %p148, %p149
    %p152 = scmp.ne.s32.totalorder %s137, %s151
    %p153 = scmp.eq.s32.totalorder %s24, 0
    %p154 = por %p152, %p153
    %s156 = sadd.s32 %s155, 1
    %p159 = scmp.eq.s32.totalorder %s18, 7
    %p160 = scmp.ne.s32.totalorder %s155, %s157
    %p161 = scmp.eq.s32.totalorder %s18, 0
    %p162 = por %p160, %p161
    %p163 = scmp.ne.s32.totalorder %s155, %s157
    %p164 = scmp.eq.s32.totalorder %s23, 7
    %p165 = por %p163, %p164
    %p166 = scmp.ne.s32.totalorder %s157, %s158
    %p167 = scmp.eq.s32.totalorder %s23, 0
    %p168 = por %p166, %p167
    %p169 = scmp.ne.s32.totalorder %s157, %s158
    %p170 = scmp.eq.s32.totalorder %s24, 7
    %p171 = por %p169, %p170
    %p173 = scmp.ne.s32.totalorder %s158, %s172
    %p174 = scmp.eq.s32.totalorder %s24, 0
    %p175 = por %p173, %p174
    %s176 = ssub.s32 %s18, %s25
    %p177 = scmp.eq.s32.totalorder %s176, 0
    %s179 = sadd.s32 %s178, 1
    %s180 = scalar_select %p177, %s178, %s179
    %p183 = pneg %p177
    %p184 = scmp.eq.s32.totalorder %s18, 7
    %p185 = por %p183, %p184
    %p186 = scmp.ne.s32.totalorder %s178, %s181
    %p187 = scmp.eq.s32.totalorder %s18, 0
    %p188 = por %p186, %p187
    %p189 = scmp.ne.s32.totalorder %s178, %s181
    %p190 = scmp.eq.s32.totalorder %s23, 7
    %p191 = por %p189, %p190
    %p192 = scmp.ne.s32.totalorder %s181, %s182
    %p193 = scmp.eq.s32.totalorder %s23, 0
    %p194 = por %p192, %p193
    %p195 = scmp.ne.s32.totalorder %s181, %s182
    %p196 = scmp.eq.s32.totalorder %s24, 7
    %p197 = por %p195, %p196
    %p199 = scmp.ne.s32.totalorder %s182, %s198
    %p200 = scmp.eq.s32.totalorder %s24, 0
    %p201 = por %p199, %p200
    %s202 = ssub.s32 7, %s18
    %s203 = ssub.s32 7, %s25
    %s204 = ssub.s32 %s202, %s203
    %p205 = scmp.eq.s32.totalorder %s204, 0
    %s207 = sadd.s32 %s206, 1
    %s208 = scalar_select %p205, %s206, %s207
    %p211 = pneg %p205
    %p212 = scmp.eq.s32.totalorder %s18, 7
    %p213 = por %p211, %p212
    %p214 = scmp.ne.s32.totalorder %s206, %s209
    %p215 = scmp.eq.s32.totalorder %s18, 0
    %p216 = por %p214, %p215
    %p217 = scmp.ne.s32.totalorder %s206, %s209
    %p218 = scmp.eq.s32.totalorder %s23, 7
    %p219 = por %p217, %p218
    %p220 = scmp.ne.s32.totalorder %s209, %s210
    %p221 = scmp.eq.s32.totalorder %s23, 0
    %p222 = por %p220, %p221
    %p223 = scmp.ne.s32.totalorder %s209, %s210
    %p224 = scmp.eq.s32.totalorder %s24, 7
    %p225 = por %p223, %p224
    %p227 = scmp.ne.s32.totalorder %s210, %s226
    %p228 = scmp.eq.s32.totalorder %s24, 0
    %p229 = por %p227, %p228
    %s231 = sadd.s32 %s230, 1
    %p234 = scmp.eq.s32.totalorder %s18, 7
    %p235 = scmp.ne.s32.totalorder %s230, %s232
    %p236 = scmp.eq.s32.totalorder %s18, 0
    %p237 = por %p235, %p236
    %p238 = scmp.ne.s32.totalorder %s230, %s232
    %p239 = scmp.eq.s32.totalorder %s23, 7
    %p240 = por %p238, %p239
    %p241 = scmp.ne.s32.totalorder %s232, %s233
    %p242 = scmp.eq.s32.totalorder %s23, 0
    %p243 = por %p241, %p242
    %p244 = scmp.ne.s32.totalorder %s232, %s233
    %p245 = scmp.eq.s32.totalorder %s24, 7
    %p246 = por %p244, %p245
    %p248 = scmp.ne.s32.totalorder %s233, %s247
    %p249 = scmp.eq.s32.totalorder %s24, 0
    %p250 = por %p248, %p249
    %s252 = sadd.s32 %s251, 1
    %p255 = scmp.eq.s32.totalorder %s18, 7
    %p256 = scmp.ne.s32.totalorder %s251, %s253
    %p257 = scmp.eq.s32.totalorder %s18, 0
    %p258 = por %p256, %p257
    %p259 = scmp.ne.s32.totalorder %s251, %s253
    %p260 = scmp.eq.s32.totalorder %s23, 7
    %p261 = por %p259, %p260
    %p262 = scmp.ne.s32.totalorder %s253, %s254
    %p263 = scmp.eq.s32.totalorder %s23, 0
    %p264 = por %p262, %p263
    %p265 = scmp.ne.s32.totalorder %s253, %s254
    %p266 = scmp.eq.s32.totalorder %s24, 7
    %p267 = por %p265, %p266
    %p269 = scmp.ne.s32.totalorder %s254, %s268
    %p270 = scmp.eq.s32.totalorder %s24, 0
    %p271 = por %p269, %p270
    %s273 = sadd.s32 %s272, 1
    %p276 = scmp.eq.s32.totalorder %s18, 7
    %p277 = scmp.ne.s32.totalorder %s272, %s274
    %p278 = scmp.eq.s32.totalorder %s18, 0
    %p279 = por %p277, %p278
    %p280 = scmp.ne.s32.totalorder %s272, %s274
    %p281 = scmp.eq.s32.totalorder %s23, 7
    %p282 = por %p280, %p281
    %p283 = scmp.ne.s32.totalorder %s274, %s275
    %p284 = scmp.eq.s32.totalorder %s23, 0
    %p285 = por %p283, %p284
    %p286 = scmp.ne.s32.totalorder %s274, %s275
    %p287 = scmp.eq.s32.totalorder %s24, 7
    %p288 = por %p286, %p287
    %p290 = scmp.ne.s32.totalorder %s275, %s289
    %p291 = scmp.eq.s32.totalorder %s24, 0
    %p292 = por %p290, %p291
    %s294 = sadd.s32 %s293, 1
    %p297 = scmp.eq.s32.totalorder %s18, 7
    %p298 = scmp.ne.s32.totalorder %s293, %s295
    %p299 = scmp.eq.s32.totalorder %s18, 0
    %p300 = por %p298, %p299
    %p301 = scmp.ne.s32.totalorder %s293, %s295
    %p302 = scmp.eq.s32.totalorder %s23, 7
    %p303 = por %p301, %p302
    %p304 = scmp.ne.s32.totalorder %s295, %s296
    %p305 = scmp.eq.s32.totalorder %s23, 0
    %p306 = por %p304, %p305
    %p307 = scmp.ne.s32.totalorder %s295, %s296
    %p308 = scmp.eq.s32.totalorder %s24, 7
    %p309 = por %p307, %p308
    %p311 = scmp.ne.s32.totalorder %s296, %s310
    %p312 = scmp.eq.s32.totalorder %s24, 0
    %p313 = por %p311, %p312
    %p314 = scmp.le.s32.totalorder 1, %s18
    %p315 = scmp.lt.s32.totalorder %s18, 9
    %p316 = pnand %p314, %p315
    %p317 = pneg %p316
    // Predicated region
    $region9: #{summary_forward.7} parent=5 // pred_check
      _
    $region10: #{summary_forward.7} parent=5 // pred_check_branch
      %319 = sbr.rel (%p316) target = $region12
    $region11: #{summary_forward.7} parent=5 // pred_region
      %s320 = ssub.s32 %s18, 1
      // Predicated region
      $region13: #{summary_forward.7} parent=11 // pred_check
        %p321 = pneg %p147
      $region14: #{summary_forward.7} parent=11 // pred_check_branch
        %323 = sbr.rel (%p321) target = $region16
      $region15: #{summary_forward.7} parent=11 // pred_region
        _
      $region16: #{summary_forward.7} parent=11 // pred_fallthru
        _
      // Predicated region
      $region17: #{summary_forward.7} parent=11 // pred_check
        %p324 = pneg %p168
      $region18: #{summary_forward.7} parent=11 // pred_check_branch
        %326 = sbr.rel (%p324) target = $region20
      $region19: #{summary_forward.7} parent=11 // pred_region
        _
      $region20: #{summary_forward.7} parent=11 // pred_fallthru
        _
    $region12: #{summary_forward.7} parent=5 // pred_fallthru
      _
    %p327 = scmp.lt.s32.totalorder %s18, 8
    // Predicated region
    $region21: #{summary_forward.7} parent=5 // pred_check
      %p328 = pneg %p327
    $region22: #{summary_forward.7} parent=5 // pred_check_branch
      %330 = sbr.rel (%p328) target = $region24
    $region23: #{summary_forward.7} parent=5 // pred_region
      // Predicated region
      $region25: #{summary_forward.7} parent=23 // pred_check
        %p331 = pneg %p38
      $region26: #{summary_forward.7} parent=23 // pred_check_branch
        %333 = sbr.rel (%p331) target = $region28
      $region27: #{summary_forward.7} parent=23 // pred_region
        %p334 = scmp.lt.s32.totalorder %s18, 7
        %s335 = scalar_select %p334, %s18, 7
        %s336 = smul.addr %s335, 2
        %s337 = scalar_lea.vmem %s0, %s336
      $region28: #{summary_forward.7} parent=23 // pred_fallthru
        _
      // Predicated region
      $region29: #{summary_forward.7} parent=23 // pred_check
        %p338 = pneg %p66
      $region30: #{summary_forward.7} parent=23 // pred_check_branch
        %340 = sbr.rel (%p338) target = $region32
      $region31: #{summary_forward.7} parent=23 // pred_region
        %s341 = ssub.s32 7, %s18
        %p342 = scmp.lt.s32.totalorder %s341, 7
        %s343 = scalar_select %p342, %s341, 7
        %s344 = smul.addr %s343, 2
        %s345 = scalar_lea.vmem %s1, %s344
        %s346 = ssub.s32 7, %s18
      $region32: #{summary_forward.7} parent=23 // pred_fallthru
        _
      // Predicated region
      $region33: #{summary_forward.7} parent=23 // pred_check
        %p347 = pneg %p92
      $region34: #{summary_forward.7} parent=23 // pred_check_branch
        %349 = sbr.rel (%p347) target = $region36
      $region35: #{summary_forward.7} parent=23 // pred_region
        %p350 = scmp.lt.s32.totalorder %s18, 7
        %s351 = scalar_select %p350, %s18, 7
        %s352 = smul.addr %s351, 2
        %s353 = scalar_lea.vmem %s2, %s352
      $region36: #{summary_forward.7} parent=23 // pred_fallthru
        _
      // Predicated region
      $region37: #{summary_forward.7} parent=23 // pred_check
        %p354 = pneg %p120
      $region38: #{summary_forward.7} parent=23 // pred_check_branch
        %356 = sbr.rel (%p354) target = $region40
      $region39: #{summary_forward.7} parent=23 // pred_region
        %s357 = ssub.s32 7, %s18
        %p358 = scmp.lt.s32.totalorder %s357, 7
        %s359 = scalar_select %p358, %s357, 7
        %s360 = smul.addr %s359, 2
        %s361 = scalar_lea.vmem %s3, %s360
        %s362 = ssub.s32 7, %s18
      $region40: #{summary_forward.7} parent=23 // pred_fallthru
        _
    $region24: #{summary_forward.7} parent=5 // pred_fallthru
      _
    %p363 = scmp.le.s32.totalorder 1, %s18
    %p364 = scmp.lt.s32.totalorder %s18, 9
    %p365 = pnand %p363, %p364
    %p366 = pneg %p365
    // Predicated region
    $region41: #{summary_forward.7} parent=5 // pred_check
      _
    $region42: #{summary_forward.7} parent=5 // pred_check_branch
      %368 = sbr.rel (%p365) target = $region44
    $region43: #{summary_forward.7} parent=5 // pred_region
      %s369 = ssub.s32 %s18, 1
      %p370 = scmp.lt.s32.totalorder %s23, 7
      %s371 = scalar_select %p370, %s23, 7
      %s372 = smul.addr %s371, 2
      %s373 = scalar_lea.vmem %s0, %s372
      %p374 = pneg %p44
      %p375 = pneg %p41
      %s376 = ssub.s32 7, %s23
      %p377 = scmp.lt.s32.totalorder %s376, 7
      %s378 = scalar_select %p377, %s376, 7
      %s379 = smul.addr %s378, 2
      %s380 = scalar_lea.vmem %s1, %s379
      %p381 = pneg %p72
      %p382 = pneg %p69
      %p383 = scmp.lt.s32.totalorder %s23, 7
      %s384 = scalar_select %p383, %s23, 7
      %s385 = smul.addr %s384, 2
      %s386 = scalar_lea.vmem %s2, %s385
      %p387 = pneg %p98
      %p388 = pneg %p95
      %s389 = ssub.s32 7, %s23
      %p390 = scmp.lt.s32.totalorder %s389, 7
      %s391 = scalar_select %p390, %s389, 7
      %s392 = smul.addr %s391, 2
      %s393 = scalar_lea.vmem %s3, %s392
      %p394 = pneg %p126
      %p395 = pneg %p123
      %p396 = pneg %p147
      %p397 = pneg %p144
      %p398 = pneg %p168
      %p399 = pneg %p165
      %p400 = pneg %p194
      %p401 = pneg %p191
      %p402 = scmp.lt.s32.totalorder %s23, 7
      %s403 = scalar_select %p402, %s23, 7
      %s404 = smul.addr %s403, 2
      %s405 = scalar_lea.vmem %s6, %s404
      %p406 = pneg %p222
      %p407 = pneg %p219
      %s408 = ssub.s32 7, %s23
      %p409 = scmp.lt.s32.totalorder %s408, 7
      %s410 = scalar_select %p409, %s408, 7
      %s411 = smul.addr %s410, 2
      %s412 = scalar_lea.vmem %s7, %s411
      %p413 = pneg %p243
      %p414 = pneg %p240
      %p415 = pneg %p264
      %p416 = pneg %p261
      %p417 = pneg %p285
      %p418 = pneg %p282
      %p419 = pneg %p306
      %p420 = pneg %p303
      %p421 = scmp.lt.s32.totalorder %s23, 7
      %s422 = scalar_select %p421, %s23, 7
      %s423 = smul.addr %s422, 2
      %s424 = scalar_lea.vmem %s0, %s423
      %s425 = ssub.s32 7, %s23
      %p426 = scmp.lt.s32.totalorder %s425, 7
      %s427 = scalar_select %p426, %s425, 7
      %s428 = smul.addr %s427, 2
      %s429 = scalar_lea.vmem %s1, %s428
      %s430 = ssub.s32 7, %s23
      %p431 = scmp.lt.s32.totalorder %s23, 7
      %s432 = scalar_select %p431, %s23, 7
      %s433 = smul.addr %s432, 2
      %s434 = scalar_lea.vmem %s2, %s433
      %s435 = ssub.s32 7, %s23
      %p436 = scmp.lt.s32.totalorder %s435, 7
      %s437 = scalar_select %p436, %s435, 7
      %s438 = smul.addr %s437, 2
      %s439 = scalar_lea.vmem %s3, %s438
      %s440 = ssub.s32 7, %s23
      %p441 = scmp.lt.s32.totalorder %s23, 7
      %s442 = scalar_select %p441, %s23, 7
      %s443 = smul.addr %s442, 2
      %s444 = scalar_lea.vmem %s6, %s443
      %s445 = ssub.s32 7, %s23
      %p446 = scmp.lt.s32.totalorder %s445, 7
      %s447 = scalar_select %p446, %s445, 7
      %s448 = smul.addr %s447, 2
      %s449 = scalar_lea.vmem %s7, %s448
      %s450 = ssub.s32 7, %s23
      %p451 = scmp.eq.s32.totalorder %s23, 0
      // Predicated region
      $region45: #{summary_forward.7} parent=43 // pred_check
        %p452 = pneg %p451
      $region46: #{summary_forward.7} parent=43 // pred_check_branch
        %454 = sbr.rel (%p452) target = $region48
      $region47: #{summary_forward.7} parent=43 // pred_region
        %vm455 = vcmask 123904
        %456 = vst.msk [vmem:[#allocation2] sm:$0x3] %vm455, 0.0
        %457 = vst.msk [vmem:[#allocation3] sm:$0x3] %vm455, 0.0
        %458 = vst.msk [vmem:[#allocation4] sm:$0x3] %vm455, 0.0
        %459 = vst.msk [vmem:[#allocation5] sm:$0x3] %vm455, 0.0
      $region48: #{summary_forward.7} parent=43 // pred_fallthru
        _
      %v460 = vld [vmem:[%s434] sm:$0x3]
      %v461 = vld [vmem:[%s439] sm:$0x3]
      %v462 = vld [vmem:[%s424] sm:$0x3]
      %v463 = vld [vmem:[#allocation2] sm:$0x3]
      %v464 = vld [vmem:[#allocation3] sm:$0x3]
      %v465 = vld [vmem:[%s4] sm:$0xff]
      %v466 = vld [vmem:[%s4 + $0x8] sm:$0xff]
      %vm467 = vcmask 130048
      %v469 = vsel %vm467, %v463, 0
      %471 = vmatpush.msra.mxu0 0.0
      %472 = vmatpush.msra.mxu0 0.0
      %473 = vmatpush.msra.mxu0 0.0
      %474 = vmatpush.msra.mxu0 0.0
      %475 = vmatpush.msra.mxu0 0.0
      %476 = vmatpush.msra.mxu0 0.0
      %477 = vmatpush.msra.mxu0 0.0
      %478 = vmatpush.msra.mxu0 0.0
      %479 = vmatpush.msra.mxu0 0.0
      %480 = vmatpush.msra.mxu0 0.0
      %481 = vmatpush.msra.mxu0 0.0
      %482 = vmatpush.msra.mxu0 0.0
      %483 = vmatpush.msra.mxu0 0.0
      %484 = vmatpush.msra.mxu0 0.0
      %485 = vmatpush.msra.mxu0 %v466
      %486 = vmatpush.msra.mxu0 %v465
      %487 = vmatmul.f32.gmra.mxu0 %v469
      %v488 = vpop.f32.mrf.mxu0
      %v489 = vadd.f32 0.0, %v488
      %490 = vdwg.mxu0
      %v491 = vadd.f32 %v462, %v489
      %v492 = vxor.u32 %v491, 2147483648
      %v493 = vmul.f32 %v492, 1.442695
      %v494 = vpow.pop %v493
      %v495 = vadd.f32 %v494, 1.0
      %v496 = vrcp.pop %v495
      %v497 = vmul.f32 %v495, %v496
      %v498 = vsub.f32 1.0, %v497
      %v499 = vmul.f32 %v496, %v498
      %v500 = vadd.f32 %v496, %v499
      %vm501 = vweird.f32 %v495
      %vm502 = vweird.f32 %v496
      %vm503 = vmor %vm501, %vm502
      %v504 = vsel %vm503, %v496, %v500
      %v505 = vand.u32 2147483647, %v495
      %vm506 = vcmp.eq.f32.partialorder %v505, 8.507059e+37
      %v507 = vand.u32 %v495, 2147483648
      %v508 = vor.u32 1.1754944e-38, %v507
      %v509 = vsel %vm506, %v508, %v504
      %v510 = vmul.f32 1.0, %v509
      %v511 = vtanh.pop %v491
      %513 = vrot.lane.b32.xlu0 %v464, 16
      %v514 = vpop.permute.xlu0 %513
      %v516 = vmul.f32 %v510, %v514
      %518 = vrot.lane.b32.xlu0 %v511, 96
      %v519 = vpop.permute.xlu0 %518
      %v521 = vmul.f32 %v510, %v519
      %523 = vrot.lane.b32.xlu0 %v521, 16
      %v524 = vpop.permute.xlu0 %523
      %v526 = vadd.f32 %v516, %v524
      %v527 = vtanh.pop %v526
      %529 = vrot.lane.b32.xlu0 %v527, 32
      %v530 = vpop.permute.xlu0 %529
      %v532 = vmul.f32 %v510, %v530
      %534 = vset.pattern.permute.xlu0 0
      %535 = vperm.xlu0 %534, %v460
      %v536 = vpop.permute.xlu0 %535
      %v538 = vmul.f32 %v536, %v532
      %v539 = vsub.f32 1.0, %v460
      %541 = vset.pattern.permute.xlu0 0
      %542 = vperm.xlu0 %541, %v539
      %v543 = vpop.permute.xlu0 %542
      %v545 = vmul.f32 %v543, %v463
      %547 = vrot.lane.b32.xlu0 %v545, 48
      %v548 = vpop.permute.xlu0 %547
      %v550 = vadd.f32 %v538, %v548
      %v551 = vmul.f32 %v536, %v526
      %v552 = vmul.f32 %v543, %v464
      %554 = vrot.lane.b32.xlu0 %v552, 16
      %v555 = vpop.permute.xlu0 %554
      %v557 = vadd.f32 %v551, %v555
      %v558 = vld [vmem:[%s429] sm:$0x3]
      %v559 = vld [vmem:[#allocation4] sm:$0x3]
      %v560 = vld [vmem:[#allocation5] sm:$0x3]
      %v561 = vld [vmem:[%s5] sm:$0xff]
      %v562 = vld [vmem:[%s5 + $0x8] sm:$0xff]
      %v564 = vsel %vm467, %v559, 0
      %566 = vmatpush.msra.mxu0 0.0
      %567 = vmatpush.msra.mxu0 0.0
      %568 = vmatpush.msra.mxu0 0.0
      %569 = vmatpush.msra.mxu0 0.0
      %570 = vmatpush.msra.mxu0 0.0
      %571 = vmatpush.msra.mxu0 0.0
      %572 = vmatpush.msra.mxu0 0.0
      %573 = vmatpush.msra.mxu0 0.0
      %574 = vmatpush.msra.mxu0 0.0
      %575 = vmatpush.msra.mxu0 0.0
      %576 = vmatpush.msra.mxu0 0.0
      %577 = vmatpush.msra.mxu0 0.0
      %578 = vmatpush.msra.mxu0 0.0
      %579 = vmatpush.msra.mxu0 0.0
      %580 = vmatpush.msra.mxu0 %v562
      %581 = vmatpush.msra.mxu0 %v561
      %582 = vmatmul.f32.gmra.mxu0 %v564
      %v583 = vpop.f32.mrf.mxu0
      %v584 = vadd.f32 0.0, %v583
      %585 = vdwg.mxu0
      %v586 = vadd.f32 %v558, %v584
      %v587 = vxor.u32 %v586, 2147483648
      %v588 = vmul.f32 %v587, 1.442695
      %v589 = vpow.pop %v588
      %v590 = vadd.f32 %v589, 1.0
      %v591 = vrcp.pop %v590
      %v592 = vmul.f32 %v590, %v591
      %v593 = vsub.f32 1.0, %v592
      %v594 = vmul.f32 %v591, %v593
      %v595 = vadd.f32 %v591, %v594
      %vm596 = vweird.f32 %v590
      %vm597 = vweird.f32 %v591
      %vm598 = vmor %vm596, %vm597
      %v599 = vsel %vm598, %v591, %v595
      %v600 = vand.u32 2147483647, %v590
      %vm601 = vcmp.eq.f32.partialorder %v600, 8.507059e+37
      %v602 = vand.u32 %v590, 2147483648
      %v603 = vor.u32 1.1754944e-38, %v602
      %v604 = vsel %vm601, %v603, %v599
      %v605 = vmul.f32 1.0, %v604
      %v606 = vtanh.pop %v586
      %608 = vrot.lane.b32.xlu0 %v560, 16
      %v609 = vpop.permute.xlu0 %608
      %v611 = vmul.f32 %v605, %v609
      %613 = vrot.lane.b32.xlu0 %v606, 96
      %v614 = vpop.permute.xlu0 %613
      %v616 = vmul.f32 %v605, %v614
      %618 = vrot.lane.b32.xlu0 %v616, 16
      %v619 = vpop.permute.xlu0 %618
      %v621 = vadd.f32 %v611, %v619
      %v622 = vtanh.pop %v621
      %624 = vrot.lane.b32.xlu0 %v622, 32
      %v625 = vpop.permute.xlu0 %624
      %v627 = vmul.f32 %v605, %v625
      %629 = vset.pattern.permute.xlu0 0
      %630 = vperm.xlu0 %629, %v461
      %v631 = vpop.permute.xlu0 %630
      %v633 = vmul.f32 %v631, %v627
      %v634 = vsub.f32 1.0, %v461
      %636 = vset.pattern.permute.xlu0 0
      %637 = vperm.xlu0 %636, %v634
      %v638 = vpop.permute.xlu0 %637
      %v640 = vmul.f32 %v638, %v559
      %642 = vrot.lane.b32.xlu0 %v640, 48
      %v643 = vpop.permute.xlu0 %642
      %v645 = vadd.f32 %v633, %v643
      %v646 = vmul.f32 %v631, %v621
      %v647 = vmul.f32 %v638, %v560
      %649 = vrot.lane.b32.xlu0 %v647, 16
      %v650 = vpop.permute.xlu0 %649
      %v652 = vadd.f32 %v646, %v650
      %654 = vrot.lane.b32.xlu0 %v550, 80
      %v655 = vpop.permute.xlu0 %654
      %vm657 = vcmask 123904
      %658 = vst.msk [vmem:[#allocation2] sm:$0x3] %vm657, %v655
      %660 = vrot.lane.b32.xlu0 %v557, 112
      %v661 = vpop.permute.xlu0 %660
      %663 = vst.msk [vmem:[#allocation3] sm:$0x3] %vm657, %v661
      %665 = vrot.lane.b32.xlu0 %v645, 80
      %v666 = vpop.permute.xlu0 %665
      %668 = vst.msk [vmem:[#allocation4] sm:$0x3] %vm657, %v666
      %670 = vrot.lane.b32.xlu0 %v652, 112
      %v671 = vpop.permute.xlu0 %670
      %673 = vst.msk [vmem:[#allocation5] sm:$0x3] %vm657, %v671
      %675 = vrot.lane.b32.xlu0 %v538, 80
      %v676 = vpop.permute.xlu0 %675
      %678 = vst.msk [vmem:[%s444] sm:$0x3] %vm657, %v676
      %680 = vrot.lane.b32.xlu0 %v633, 80
      %v681 = vpop.permute.xlu0 %680
      %683 = vst.msk [vmem:[%s449] sm:$0x3] %vm657, %v681
      %684 = vst.msk [vmem:[%s8] sm:$0x3] %vm657, %v655
      %685 = vst.msk [vmem:[%s9] sm:$0x3] %vm657, %v661
      %686 = vst.msk [vmem:[%s10] sm:$0x3] %vm657, %v666
      %687 = vst.msk [vmem:[%s11] sm:$0x3] %vm657, %v671
      %p688 = scmp.lt.s32.totalorder %s23, 7
      %s689 = scalar_select %p688, %s23, 7
      %s690 = smul.addr %s689, 2
      %s691 = scalar_lea.vmem %s6, %s690
      %s692 = ssub.s32 7, %s23
      %p693 = scmp.lt.s32.totalorder %s692, 7
      %s694 = scalar_select %p693, %s692, 7
      %s695 = smul.addr %s694, 2
      %s696 = scalar_lea.vmem %s7, %s695
      // Predicated region
      $region49: #{summary_forward.7} parent=43 // pred_check
        %p697 = pneg %p191
      $region50: #{summary_forward.7} parent=43 // pred_check_branch
        %699 = sbr.rel (%p697) target = $region52
      $region51: #{summary_forward.7} parent=43 // pred_region
        _
      $region52: #{summary_forward.7} parent=43 // pred_fallthru
        _
      // Predicated region
      $region53: #{summary_forward.7} parent=43 // pred_check
        %p700 = pneg %p219
      $region54: #{summary_forward.7} parent=43 // pred_check_branch
        %702 = sbr.rel (%p700) target = $region56
      $region55: #{summary_forward.7} parent=43 // pred_region
        %s703 = ssub.s32 7, %s23
      $region56: #{summary_forward.7} parent=43 // pred_fallthru
        _
      // Predicated region
      $region57: #{summary_forward.7} parent=43 // pred_check
        %p704 = pneg %p240
      $region58: #{summary_forward.7} parent=43 // pred_check_branch
        %706 = sbr.rel (%p704) target = $region60
      $region59: #{summary_forward.7} parent=43 // pred_region
        _
      $region60: #{summary_forward.7} parent=43 // pred_fallthru
        _
      // Predicated region
      $region61: #{summary_forward.7} parent=43 // pred_check
        %p707 = pneg %p261
      $region62: #{summary_forward.7} parent=43 // pred_check_branch
        %709 = sbr.rel (%p707) target = $region64
      $region63: #{summary_forward.7} parent=43 // pred_region
        _
      $region64: #{summary_forward.7} parent=43 // pred_fallthru
        _
      // Predicated region
      $region65: #{summary_forward.7} parent=43 // pred_check
        %p710 = pneg %p282
      $region66: #{summary_forward.7} parent=43 // pred_check_branch
        %712 = sbr.rel (%p710) target = $region68
      $region67: #{summary_forward.7} parent=43 // pred_region
        _
      $region68: #{summary_forward.7} parent=43 // pred_fallthru
        _
      // Predicated region
      $region69: #{summary_forward.7} parent=43 // pred_check
        %p713 = pneg %p303
      $region70: #{summary_forward.7} parent=43 // pred_check_branch
        %715 = sbr.rel (%p713) target = $region72
      $region71: #{summary_forward.7} parent=43 // pred_region
        _
      $region72: #{summary_forward.7} parent=43 // pred_fallthru
        _
      // Predicated region
      $region73: #{summary_forward.7} parent=43 // pred_check
        %p716 = pneg %p240
      $region74: #{summary_forward.7} parent=43 // pred_check_branch
        %718 = sbr.rel (%p716) target = $region76
      $region75: #{summary_forward.7} parent=43 // pred_region
        _
      $region76: #{summary_forward.7} parent=43 // pred_fallthru
        _
      // Predicated region
      $region77: #{summary_forward.7} parent=43 // pred_check
        %p719 = pneg %p261
      $region78: #{summary_forward.7} parent=43 // pred_check_branch
        %721 = sbr.rel (%p719) target = $region80
      $region79: #{summary_forward.7} parent=43 // pred_region
        _
      $region80: #{summary_forward.7} parent=43 // pred_fallthru
        _
      // Predicated region
      $region81: #{summary_forward.7} parent=43 // pred_check
        %p722 = pneg %p282
      $region82: #{summary_forward.7} parent=43 // pred_check_branch
        %724 = sbr.rel (%p722) target = $region84
      $region83: #{summary_forward.7} parent=43 // pred_region
        _
      $region84: #{summary_forward.7} parent=43 // pred_fallthru
        _
      // Predicated region
      $region85: #{summary_forward.7} parent=43 // pred_check
        %p725 = pneg %p303
      $region86: #{summary_forward.7} parent=43 // pred_check_branch
        %727 = sbr.rel (%p725) target = $region88
      $region87: #{summary_forward.7} parent=43 // pred_region
        _
      $region88: #{summary_forward.7} parent=43 // pred_fallthru
        _
    $region44: #{summary_forward.7} parent=5 // pred_fallthru
      _
    %p728 = scmp.le.s32.totalorder 2, %s18
    // Predicated region
    $region89: #{summary_forward.7} parent=5 // pred_check
      %p729 = pneg %p728
    $region90: #{summary_forward.7} parent=5 // pred_check_branch
      %731 = sbr.rel (%p729) target = $region92
    $region91: #{summary_forward.7} parent=5 // pred_region
      %s732 = ssub.s32 %s18, 2
      // Predicated region
      $region93: #{summary_forward.7} parent=91 // pred_check
        %p733 = pneg %p197
      $region94: #{summary_forward.7} parent=91 // pred_check_branch
        %735 = sbr.rel (%p733) target = $region96
      $region95: #{summary_forward.7} parent=91 // pred_region
        %p736 = scmp.lt.s32.totalorder %s24, 7
        %s737 = scalar_select %p736, %s24, 7
        %s738 = smul.addr %s737, 2
        %s739 = scalar_lea.vmem %s6, %s738
      $region96: #{summary_forward.7} parent=91 // pred_fallthru
        _
      // Predicated region
      $region97: #{summary_forward.7} parent=91 // pred_check
        %p740 = pneg %p225
      $region98: #{summary_forward.7} parent=91 // pred_check_branch
        %742 = sbr.rel (%p740) target = $region100
      $region99: #{summary_forward.7} parent=91 // pred_region
        %s743 = ssub.s32 7, %s24
        %p744 = scmp.lt.s32.totalorder %s743, 7
        %s745 = scalar_select %p744, %s743, 7
        %s746 = smul.addr %s745, 2
        %s747 = scalar_lea.vmem %s7, %s746
      $region100: #{summary_forward.7} parent=91 // pred_fallthru
        _
    $region92: #{summary_forward.7} parent=5 // pred_fallthru
      _
  $region6: #{summary_forward.7} parent=0 // loop_footer
    %s22 = sadd.s32 1, %s18
  $region7: #{summary_forward.7} parent=0 // loop_footer_branch
    %17 = sbr.rel target = $region3
  $region8: #{summary_forward.7} parent=0 // loop_exit
    _

// kernel: summary_forward.11
$region0: #{summary_forward.11}
  #allocation0 [shape = 'u32[]', space=smem, size = 0x4, offset = 0x4, fixed_abs, tag = 'smem constant byte address 0x4 - core index']
  #allocation1 [shape = 'u32[72,128]{1,0:T(1,128)}', space=vmem, size = 0x9000, scoped, tag = 'internal scratch']
  #allocation2 [shape = 'f32[2,16]{1,0:T(2,128)}', space=vmem, size = 0x400, scoped, tag = 'scratch operand']
  #allocation3 [shape = 'f32[2,16]{1,0:T(2,128)}', space=vmem, size = 0x400, scoped, tag = 'scratch operand']
  #allocation4 [shape = 'f32[2,8]{1,0:T(2,128)}', space=vmem, size = 0x400, scoped, tag = 'scratch operand']
  #allocation5 [shape = 'f32[1,1]{1,0:T(1,128)S(1)}', space=vmem, size = 0x200, scoped, tag = 'scoped memory for summary_forward.11']
  #allocation6 [shape = 'f32[1,1]{1,0:T(1,128)S(1)}', space=vmem, size = 0x200, scoped, tag = 'scoped memory for summary_forward.11']
  %s0 = inlined_call_operand.vmem [shape: f32[4,2,16], index: 0, kind: input, shape index: {}]
  %s1 = inlined_call_operand.vmem [shape: f32[2,16], index: 1, kind: input, shape index: {}]
  %s2 = inlined_call_operand.vmem [shape: f32[2,16], index: 2, kind: input, shape index: {}]
  %s3 = inlined_call_operand.vmem [shape: f32[2,8,32], index: 3, kind: input, shape index: {}]
  %s4 = inlined_call_operand.vmem [shape: f32[2,8,16], index: 4, kind: input, shape index: {}]
  %s5 = inlined_call_operand.vmem [shape: f32[2,8], index: 5, kind: input, shape index: {}]
  %s6 = inlined_call_operand.vmem [shape: f32[16,64], index: 6, kind: input, shape index: {}]
  %s7 = inlined_call_operand.vmem [shape: f32[16,64], index: 7, kind: input, shape index: {}]
  %s8 = inlined_call_operand.vmem [shape: f32[1,64], index: 8, kind: input, shape index: {}]
  %s9 = inlined_call_operand.vmem [shape: f32[16,16], index: 9, kind: input, shape index: {}]
  %s10 = inlined_call_operand.vmem [shape: f32[1,16], index: 10, kind: input, shape index: {}]
  %s11 = inlined_call_operand.<no memory space> [shape: f32[1,1], index: 11, kind: input, shape index: {}]
  %s12 = inlined_call_operand.vmem [shape: f32[16,1], index: 12, kind: input, shape index: {}]
  %s13 = inlined_call_operand.vmem [shape: f32[32,1], index: 13, kind: input, shape index: {}]
  %s14 = inlined_call_operand.vmem [shape: f32[16,1], index: 14, kind: input, shape index: {}]
  %s15 = inlined_call_operand.vmem [shape: f32[16,1], index: 15, kind: input, shape index: {}]
  %s16 = inlined_call_operand.<no memory space> [shape: f32[1,1], index: 16, kind: input, shape index: {}]
  %s17 = inlined_call_operand.vmem [shape: f32[32,32], index: 17, kind: input, shape index: {}]
  %s18 = inlined_call_operand.vmem [shape: f32[16,32], index: 18, kind: input, shape index: {}]
  %s19 = inlined_call_operand.vmem [shape: f32[1,32], index: 19, kind: input, shape index: {}]
  %s20 = inlined_call_operand.vmem [shape: f32[32,32], index: 20, kind: input, shape index: {}]
  %s21 = inlined_call_operand.vmem [shape: f32[1,32], index: 21, kind: input, shape index: {}]
  %s22 = inlined_call_operand.vmem [shape: f32[4,2,32], index: 22, kind: output, shape index: {0}]
  %s23 = inlined_call_operand.vmem [shape: f32[4,2,8], index: 23, kind: output, shape index: {1}]
  %s24 = inlined_call_operand.vmem [shape: f32[4,2,1], index: 24, kind: output, shape index: {2}]
  %25 = xla_tuple %s22, %s23, %s24
  %s26 = sld [smem:[#allocation0]]
  $region141: #{summary_forward.11} parent=0
    _
  %s28 = ssub.s32 1, %s26
  %s29 = scalar_select 0, %s28, %s26
  %v30 = vstv %s11
  %31 = vst [vmem:[#allocation5] sm:$0x1] %v30
  %v32 = vstv %s16
  %33 = vst [vmem:[#allocation6] sm:$0x1] %v32
  loop: start=0, step=1, limit=6
  $region2: #{summary_forward.11} parent=0 // loop_pre_header
    _
  $region3: #{summary_forward.11} parent=0 // loop_header
    %s35 = sphi 0, %s39
    %p36 = scmp.ge.s32.totalorder %s35, 6
    %s45 = sphi 0, %s47
    %s48 = sphi 0, %s45
    %s49 = sphi 0, %s48
    %s65 = sphi 0, %s49
    %s69 = sphi 0, %s69
    %s71 = sphi 0, %s69
    %s72 = sphi 0, %s71
    %s86 = sphi 0, %s72
    %s90 = sphi 0, %s90
    %s92 = sphi 0, %s90
    %s93 = sphi 0, %s92
    %s107 = sphi 0, %s93
    %s111 = sphi 0, %s111
    %s113 = sphi 0, %s111
    %s114 = sphi 0, %s113
    %s128 = sphi 0, %s114
    %s132 = sphi 0, %s132
    %s134 = sphi 0, %s132
    %s135 = sphi 0, %s134
    %s149 = sphi 0, %s135
    %s153 = sphi 0, %s153
    %s155 = sphi 0, %s153
    %s156 = sphi 0, %s155
    %s170 = sphi 0, %s156
    %s174 = sphi 0, %s174
    %s176 = sphi 0, %s174
    %s177 = sphi 0, %s176
    %s191 = sphi 0, %s177
    %s195 = sphi 0, %s195
    %s197 = sphi 0, %s195
    %s198 = sphi 0, %s197
    %s212 = sphi 0, %s198
    %s216 = sphi 0, %s216
    %s218 = sphi 0, %s216
    %s219 = sphi 0, %s218
    %s233 = sphi 0, %s219
    %s237 = sphi 0, %s237
    %s239 = sphi 0, %s237
    %s240 = sphi 0, %s239
    %s254 = sphi 0, %s240
    %s258 = sphi 0, %s258
    %s260 = sphi 0, %s258
    %s261 = sphi 0, %s260
    %s275 = sphi 0, %s261
    %s279 = sphi 0, %s279
    %s281 = sphi 0, %s279
    %s282 = sphi 0, %s281
    %s296 = sphi 0, %s282
    %s300 = sphi 0, %s300
    %s302 = sphi 0, %s300
    %s303 = sphi 0, %s302
    %s317 = sphi 0, %s303
    %s321 = sphi 0, %s321
    %s323 = sphi 0, %s321
    %s324 = sphi 0, %s323
    %s338 = sphi 0, %s324
    %s342 = sphi 0, %s342
    %s344 = sphi 0, %s342
    %s345 = sphi 0, %s344
    %s359 = sphi 0, %s345
    %s363 = sphi 0, %s363
    %s365 = sphi 0, %s363
    %s366 = sphi 0, %s365
    %s380 = sphi 0, %s366
    %s384 = sphi 0, %s384
    %s386 = sphi 0, %s384
    %s387 = sphi 0, %s386
    %s401 = sphi 0, %s387
    %s405 = sphi 0, %s405
    %s407 = sphi 0, %s405
    %s408 = sphi 0, %s407
    %s422 = sphi 0, %s408
    %s426 = sphi 0, %s426
    %s428 = sphi 0, %s426
    %s429 = sphi 0, %s428
    %s443 = sphi 0, %s429
    %s447 = sphi 0, %s447
    %s449 = sphi 0, %s447
    %s450 = sphi 0, %s449
    %s464 = sphi 0, %s450
    %s468 = sphi 0, %s468
    %s470 = sphi 0, %s468
    %s471 = sphi 0, %s470
    %s485 = sphi 0, %s471
    %s489 = sphi 0, %s489
    %s491 = sphi 0, %s489
    %s492 = sphi 0, %s491
    %s506 = sphi 0, %s492
    %s512 = sphi 0, %s514
    %s515 = sphi 0, %s512
    %s516 = sphi 0, %s515
    %s532 = sphi 0, %s516
    %s538 = sphi 0, %s540
    %s541 = sphi 0, %s538
    %s542 = sphi 0, %s541
    %s558 = sphi 0, %s542
    %s564 = sphi 0, %s566
    %s567 = sphi 0, %s564
    %s568 = sphi 0, %s567
    %s584 = sphi 0, %s568
  $region4: #{summary_forward.11} parent=0 // loop_header_branch
    %38 = sbr.rel (%p36) target = $region8
  $region5: #{summary_forward.11} parent=0 // loop_body
    %s40 = ssub.s32 %s35, 1
    %s41 = ssub.s32 %s35, 2
    %s42 = sadd.s32 %s35, 1
    %s43 = ssub.s32 %s35, %s42
    %p44 = scmp.eq.s32.totalorder %s43, 0
    %s46 = sadd.s32 %s45, 1
    %s47 = scalar_select %p44, %s45, %s46
    %p50 = pneg %p44
    %p51 = scmp.eq.s32.totalorder %s35, 3
    %p52 = por %p50, %p51
    %p53 = scmp.ne.s32.totalorder %s45, %s48
    %p54 = scmp.eq.s32.totalorder %s35, 0
    %p55 = por %p53, %p54
    %p56 = scmp.ne.s32.totalorder %s45, %s48
    %p57 = scmp.eq.s32.totalorder %s40, 3
    %p58 = por %p56, %p57
    %p59 = scmp.ne.s32.totalorder %s48, %s49
    %p60 = scmp.eq.s32.totalorder %s40, 0
    %p61 = por %p59, %p60
    %p62 = scmp.ne.s32.totalorder %s48, %s49
    %p63 = scmp.eq.s32.totalorder %s41, 3
    %p64 = por %p62, %p63
    %p66 = scmp.ne.s32.totalorder %s49, %s65
    %p67 = scmp.eq.s32.totalorder %s41, 0
    %p68 = por %p66, %p67
    %s70 = sadd.s32 %s69, 1
    %p73 = scmp.eq.s32.totalorder %s35, 3
    %p74 = scmp.ne.s32.totalorder %s69, %s71
    %p75 = scmp.eq.s32.totalorder %s35, 0
    %p76 = por %p74, %p75
    %p77 = scmp.ne.s32.totalorder %s69, %s71
    %p78 = scmp.eq.s32.totalorder %s40, 3
    %p79 = por %p77, %p78
    %p80 = scmp.ne.s32.totalorder %s71, %s72
    %p81 = scmp.eq.s32.totalorder %s40, 0
    %p82 = por %p80, %p81
    %p83 = scmp.ne.s32.totalorder %s71, %s72
    %p84 = scmp.eq.s32.totalorder %s41, 3
    %p85 = por %p83, %p84
    %p87 = scmp.ne.s32.totalorder %s72, %s86
    %p88 = scmp.eq.s32.totalorder %s41, 0
    %p89 = por %p87, %p88
    %s91 = sadd.s32 %s90, 1
    %p94 = scmp.eq.s32.totalorder %s35, 3
    %p95 = scmp.ne.s32.totalorder %s90, %s92
    %p96 = scmp.eq.s32.totalorder %s35, 0
    %p97 = por %p95, %p96
    %p98 = scmp.ne.s32.totalorder %s90, %s92
    %p99 = scmp.eq.s32.totalorder %s40, 3
    %p100 = por %p98, %p99
    %p101 = scmp.ne.s32.totalorder %s92, %s93
    %p102 = scmp.eq.s32.totalorder %s40, 0
    %p103 = por %p101, %p102
    %p104 = scmp.ne.s32.totalorder %s92, %s93
    %p105 = scmp.eq.s32.totalorder %s41, 3
    %p106 = por %p104, %p105
    %p108 = scmp.ne.s32.totalorder %s93, %s107
    %p109 = scmp.eq.s32.totalorder %s41, 0
    %p110 = por %p108, %p109
    %s112 = sadd.s32 %s111, 1
    %p115 = scmp.eq.s32.totalorder %s35, 3
    %p116 = scmp.ne.s32.totalorder %s111, %s113
    %p117 = scmp.eq.s32.totalorder %s35, 0
    %p118 = por %p116, %p117
    %p119 = scmp.ne.s32.totalorder %s111, %s113
    %p120 = scmp.eq.s32.totalorder %s40, 3
    %p121 = por %p119, %p120
    %p122 = scmp.ne.s32.totalorder %s113, %s114
    %p123 = scmp.eq.s32.totalorder %s40, 0
    %p124 = por %p122, %p123
    %p125 = scmp.ne.s32.totalorder %s113, %s114
    %p126 = scmp.eq.s32.totalorder %s41, 3
    %p127 = por %p125, %p126
    %p129 = scmp.ne.s32.totalorder %s114, %s128
    %p130 = scmp.eq.s32.totalorder %s41, 0
    %p131 = por %p129, %p130
    %s133 = sadd.s32 %s132, 1
    %p136 = scmp.eq.s32.totalorder %s35, 3
    %p137 = scmp.ne.s32.totalorder %s132, %s134
    %p138 = scmp.eq.s32.totalorder %s35, 0
    %p139 = por %p137, %p138
    %p140 = scmp.ne.s32.totalorder %s132, %s134
    %p141 = scmp.eq.s32.totalorder %s40, 3
    %p142 = por %p140, %p141
    %p143 = scmp.ne.s32.totalorder %s134, %s135
    %p144 = scmp.eq.s32.totalorder %s40, 0
    %p145 = por %p143, %p144
    %p146 = scmp.ne.s32.totalorder %s134, %s135
    %p147 = scmp.eq.s32.totalorder %s41, 3
    %p148 = por %p146, %p147
    %p150 = scmp.ne.s32.totalorder %s135, %s149
    %p151 = scmp.eq.s32.totalorder %s41, 0
    %p152 = por %p150, %p151
    %s154 = sadd.s32 %s153, 1
    %p157 = scmp.eq.s32.totalorder %s35, 3
    %p158 = scmp.ne.s32.totalorder %s153, %s155
    %p159 = scmp.eq.s32.totalorder %s35, 0
    %p160 = por %p158, %p159
    %p161 = scmp.ne.s32.totalorder %s153, %s155
    %p162 = scmp.eq.s32.totalorder %s40, 3
    %p163 = por %p161, %p162
    %p164 = scmp.ne.s32.totalorder %s155, %s156
    %p165 = scmp.eq.s32.totalorder %s40, 0
    %p166 = por %p164, %p165
    %p167 = scmp.ne.s32.totalorder %s155, %s156
    %p168 = scmp.eq.s32.totalorder %s41, 3
    %p169 = por %p167, %p168
    %p171 = scmp.ne.s32.totalorder %s156, %s170
    %p172 = scmp.eq.s32.totalorder %s41, 0
    %p173 = por %p171, %p172
    %s175 = sadd.s32 %s174, 1
    %p178 = scmp.eq.s32.totalorder %s35, 3
    %p179 = scmp.ne.s32.totalorder %s174, %s176
    %p180 = scmp.eq.s32.totalorder %s35, 0
    %p181 = por %p179, %p180
    %p182 = scmp.ne.s32.totalorder %s174, %s176
    %p183 = scmp.eq.s32.totalorder %s40, 3
    %p184 = por %p182, %p183
    %p185 = scmp.ne.s32.totalorder %s176, %s177
    %p186 = scmp.eq.s32.totalorder %s40, 0
    %p187 = por %p185, %p186
    %p188 = scmp.ne.s32.totalorder %s176, %s177
    %p189 = scmp.eq.s32.totalorder %s41, 3
    %p190 = por %p188, %p189
    %p192 = scmp.ne.s32.totalorder %s177, %s191
    %p193 = scmp.eq.s32.totalorder %s41, 0
    %p194 = por %p192, %p193
    %s196 = sadd.s32 %s195, 1
    %p199 = scmp.eq.s32.totalorder %s35, 3
    %p200 = scmp.ne.s32.totalorder %s195, %s197
    %p201 = scmp.eq.s32.totalorder %s35, 0
    %p202 = por %p200, %p201
    %p203 = scmp.ne.s32.totalorder %s195, %s197
    %p204 = scmp.eq.s32.totalorder %s40, 3
    %p205 = por %p203, %p204
    %p206 = scmp.ne.s32.totalorder %s197, %s198
    %p207 = scmp.eq.s32.totalorder %s40, 0
    %p208 = por %p206, %p207
    %p209 = scmp.ne.s32.totalorder %s197, %s198
    %p210 = scmp.eq.s32.totalorder %s41, 3
    %p211 = por %p209, %p210
    %p213 = scmp.ne.s32.totalorder %s198, %s212
    %p214 = scmp.eq.s32.totalorder %s41, 0
    %p215 = por %p213, %p214
    %s217 = sadd.s32 %s216, 1
    %p220 = scmp.eq.s32.totalorder %s35, 3
    %p221 = scmp.ne.s32.totalorder %s216, %s218
    %p222 = scmp.eq.s32.totalorder %s35, 0
    %p223 = por %p221, %p222
    %p224 = scmp.ne.s32.totalorder %s216, %s218
    %p225 = scmp.eq.s32.totalorder %s40, 3
    %p226 = por %p224, %p225
    %p227 = scmp.ne.s32.totalorder %s218, %s219
    %p228 = scmp.eq.s32.totalorder %s40, 0
    %p229 = por %p227, %p228
    %p230 = scmp.ne.s32.totalorder %s218, %s219
    %p231 = scmp.eq.s32.totalorder %s41, 3
    %p232 = por %p230, %p231
    %p234 = scmp.ne.s32.totalorder %s219, %s233
    %p235 = scmp.eq.s32.totalorder %s41, 0
    %p236 = por %p234, %p235
    %s238 = sadd.s32 %s237, 1
    %p241 = scmp.eq.s32.totalorder %s35, 3
    %p242 = scmp.ne.s32.totalorder %s237, %s239
    %p243 = scmp.eq.s32.totalorder %s35, 0
    %p244 = por %p242, %p243
    %p245 = scmp.ne.s32.totalorder %s237, %s239
    %p246 = scmp.eq.s32.totalorder %s40, 3
    %p247 = por %p245, %p246
    %p248 = scmp.ne.s32.totalorder %s239, %s240
    %p249 = scmp.eq.s32.totalorder %s40, 0
    %p250 = por %p248, %p249
    %p251 = scmp.ne.s32.totalorder %s239, %s240
    %p252 = scmp.eq.s32.totalorder %s41, 3
    %p253 = por %p251, %p252
    %p255 = scmp.ne.s32.totalorder %s240, %s254
    %p256 = scmp.eq.s32.totalorder %s41, 0
    %p257 = por %p255, %p256
    %s259 = sadd.s32 %s258, 1
    %p262 = scmp.eq.s32.totalorder %s35, 3
    %p263 = scmp.ne.s32.totalorder %s258, %s260
    %p264 = scmp.eq.s32.totalorder %s35, 0
    %p265 = por %p263, %p264
    %p266 = scmp.ne.s32.totalorder %s258, %s260
    %p267 = scmp.eq.s32.totalorder %s40, 3
    %p268 = por %p266, %p267
    %p269 = scmp.ne.s32.totalorder %s260, %s261
    %p270 = scmp.eq.s32.totalorder %s40, 0
    %p271 = por %p269, %p270
    %p272 = scmp.ne.s32.totalorder %s260, %s261
    %p273 = scmp.eq.s32.totalorder %s41, 3
    %p274 = por %p272, %p273
    %p276 = scmp.ne.s32.totalorder %s261, %s275
    %p277 = scmp.eq.s32.totalorder %s41, 0
    %p278 = por %p276, %p277
    %s280 = sadd.s32 %s279, 1
    %p283 = scmp.eq.s32.totalorder %s35, 3
    %p284 = scmp.ne.s32.totalorder %s279, %s281
    %p285 = scmp.eq.s32.totalorder %s35, 0
    %p286 = por %p284, %p285
    %p287 = scmp.ne.s32.totalorder %s279, %s281
    %p288 = scmp.eq.s32.totalorder %s40, 3
    %p289 = por %p287, %p288
    %p290 = scmp.ne.s32.totalorder %s281, %s282
    %p291 = scmp.eq.s32.totalorder %s40, 0
    %p292 = por %p290, %p291
    %p293 = scmp.ne.s32.totalorder %s281, %s282
    %p294 = scmp.eq.s32.totalorder %s41, 3
    %p295 = por %p293, %p294
    %p297 = scmp.ne.s32.totalorder %s282, %s296
    %p298 = scmp.eq.s32.totalorder %s41, 0
    %p299 = por %p297, %p298
    %s301 = sadd.s32 %s300, 1
    %p304 = scmp.eq.s32.totalorder %s35, 3
    %p305 = scmp.ne.s32.totalorder %s300, %s302
    %p306 = scmp.eq.s32.totalorder %s35, 0
    %p307 = por %p305, %p306
    %p308 = scmp.ne.s32.totalorder %s300, %s302
    %p309 = scmp.eq.s32.totalorder %s40, 3
    %p310 = por %p308, %p309
    %p311 = scmp.ne.s32.totalorder %s302, %s303
    %p312 = scmp.eq.s32.totalorder %s40, 0
    %p313 = por %p311, %p312
    %p314 = scmp.ne.s32.totalorder %s302, %s303
    %p315 = scmp.eq.s32.totalorder %s41, 3
    %p316 = por %p314, %p315
    %p318 = scmp.ne.s32.totalorder %s303, %s317
    %p319 = scmp.eq.s32.totalorder %s41, 0
    %p320 = por %p318, %p319
    %s322 = sadd.s32 %s321, 1
    %p325 = scmp.eq.s32.totalorder %s35, 3
    %p326 = scmp.ne.s32.totalorder %s321, %s323
    %p327 = scmp.eq.s32.totalorder %s35, 0
    %p328 = por %p326, %p327
    %p329 = scmp.ne.s32.totalorder %s321, %s323
    %p330 = scmp.eq.s32.totalorder %s40, 3
    %p331 = por %p329, %p330
    %p332 = scmp.ne.s32.totalorder %s323, %s324
    %p333 = scmp.eq.s32.totalorder %s40, 0
    %p334 = por %p332, %p333
    %p335 = scmp.ne.s32.totalorder %s323, %s324
    %p336 = scmp.eq.s32.totalorder %s41, 3
    %p337 = por %p335, %p336
    %p339 = scmp.ne.s32.totalorder %s324, %s338
    %p340 = scmp.eq.s32.totalorder %s41, 0
    %p341 = por %p339, %p340
    %s343 = sadd.s32 %s342, 1
    %p346 = scmp.eq.s32.totalorder %s35, 3
    %p347 = scmp.ne.s32.totalorder %s342, %s344
    %p348 = scmp.eq.s32.totalorder %s35, 0
    %p349 = por %p347, %p348
    %p350 = scmp.ne.s32.totalorder %s342, %s344
    %p351 = scmp.eq.s32.totalorder %s40, 3
    %p352 = por %p350, %p351
    %p353 = scmp.ne.s32.totalorder %s344, %s345
    %p354 = scmp.eq.s32.totalorder %s40, 0
    %p355 = por %p353, %p354
    %p356 = scmp.ne.s32.totalorder %s344, %s345
    %p357 = scmp.eq.s32.totalorder %s41, 3
    %p358 = por %p356, %p357
    %p360 = scmp.ne.s32.totalorder %s345, %s359
    %p361 = scmp.eq.s32.totalorder %s41, 0
    %p362 = por %p360, %p361
    %s364 = sadd.s32 %s363, 1
    %p367 = scmp.eq.s32.totalorder %s35, 3
    %p368 = scmp.ne.s32.totalorder %s363, %s365
    %p369 = scmp.eq.s32.totalorder %s35, 0
    %p370 = por %p368, %p369
    %p371 = scmp.ne.s32.totalorder %s363, %s365
    %p372 = scmp.eq.s32.totalorder %s40, 3
    %p373 = por %p371, %p372
    %p374 = scmp.ne.s32.totalorder %s365, %s366
    %p375 = scmp.eq.s32.totalorder %s40, 0
    %p376 = por %p374, %p375
    %p377 = scmp.ne.s32.totalorder %s365, %s366
    %p378 = scmp.eq.s32.totalorder %s41, 3
    %p379 = por %p377, %p378
    %p381 = scmp.ne.s32.totalorder %s366, %s380
    %p382 = scmp.eq.s32.totalorder %s41, 0
    %p383 = por %p381, %p382
    %s385 = sadd.s32 %s384, 1
    %p388 = scmp.eq.s32.totalorder %s35, 3
    %p389 = scmp.ne.s32.totalorder %s384, %s386
    %p390 = scmp.eq.s32.totalorder %s35, 0
    %p391 = por %p389, %p390
    %p392 = scmp.ne.s32.totalorder %s384, %s386
    %p393 = scmp.eq.s32.totalorder %s40, 3
    %p394 = por %p392, %p393
    %p395 = scmp.ne.s32.totalorder %s386, %s387
    %p396 = scmp.eq.s32.totalorder %s40, 0
    %p397 = por %p395, %p396
    %p398 = scmp.ne.s32.totalorder %s386, %s387
    %p399 = scmp.eq.s32.totalorder %s41, 3
    %p400 = por %p398, %p399
    %p402 = scmp.ne.s32.totalorder %s387, %s401
    %p403 = scmp.eq.s32.totalorder %s41, 0
    %p404 = por %p402, %p403
    %s406 = sadd.s32 %s405, 1
    %p409 = scmp.eq.s32.totalorder %s35, 3
    %p410 = scmp.ne.s32.totalorder %s405, %s407
    %p411 = scmp.eq.s32.totalorder %s35, 0
    %p412 = por %p410, %p411
    %p413 = scmp.ne.s32.totalorder %s405, %s407
    %p414 = scmp.eq.s32.totalorder %s40, 3
    %p415 = por %p413, %p414
    %p416 = scmp.ne.s32.totalorder %s407, %s408
    %p417 = scmp.eq.s32.totalorder %s40, 0
    %p418 = por %p416, %p417
    %p419 = scmp.ne.s32.totalorder %s407, %s408
    %p420 = scmp.eq.s32.totalorder %s41, 3
    %p421 = por %p419, %p420
    %p423 = scmp.ne.s32.totalorder %s408, %s422
    %p424 = scmp.eq.s32.totalorder %s41, 0
    %p425 = por %p423, %p424
    %s427 = sadd.s32 %s426, 1
    %p430 = scmp.eq.s32.totalorder %s35, 3
    %p431 = scmp.ne.s32.totalorder %s426, %s428
    %p432 = scmp.eq.s32.totalorder %s35, 0
    %p433 = por %p431, %p432
    %p434 = scmp.ne.s32.totalorder %s426, %s428
    %p435 = scmp.eq.s32.totalorder %s40, 3
    %p436 = por %p434, %p435
    %p437 = scmp.ne.s32.totalorder %s428, %s429
    %p438 = scmp.eq.s32.totalorder %s40, 0
    %p439 = por %p437, %p438
    %p440 = scmp.ne.s32.totalorder %s428, %s429
    %p441 = scmp.eq.s32.totalorder %s41, 3
    %p442 = por %p440, %p441
    %p444 = scmp.ne.s32.totalorder %s429, %s443
    %p445 = scmp.eq.s32.totalorder %s41, 0
    %p446 = por %p444, %p445
    %s448 = sadd.s32 %s447, 1
    %p451 = scmp.eq.s32.totalorder %s35, 3
    %p452 = scmp.ne.s32.totalorder %s447, %s449
    %p453 = scmp.eq.s32.totalorder %s35, 0
    %p454 = por %p452, %p453
    %p455 = scmp.ne.s32.totalorder %s447, %s449
    %p456 = scmp.eq.s32.totalorder %s40, 3
    %p457 = por %p455, %p456
    %p458 = scmp.ne.s32.totalorder %s449, %s450
    %p459 = scmp.eq.s32.totalorder %s40, 0
    %p460 = por %p458, %p459
    %p461 = scmp.ne.s32.totalorder %s449, %s450
    %p462 = scmp.eq.s32.totalorder %s41, 3
    %p463 = por %p461, %p462
    %p465 = scmp.ne.s32.totalorder %s450, %s464
    %p466 = scmp.eq.s32.totalorder %s41, 0
    %p467 = por %p465, %p466
    %s469 = sadd.s32 %s468, 1
    %p472 = scmp.eq.s32.totalorder %s35, 3
    %p473 = scmp.ne.s32.totalorder %s468, %s470
    %p474 = scmp.eq.s32.totalorder %s35, 0
    %p475 = por %p473, %p474
    %p476 = scmp.ne.s32.totalorder %s468, %s470
    %p477 = scmp.eq.s32.totalorder %s40, 3
    %p478 = por %p476, %p477
    %p479 = scmp.ne.s32.totalorder %s470, %s471
    %p480 = scmp.eq.s32.totalorder %s40, 0
    %p481 = por %p479, %p480
    %p482 = scmp.ne.s32.totalorder %s470, %s471
    %p483 = scmp.eq.s32.totalorder %s41, 3
    %p484 = por %p482, %p483
    %p486 = scmp.ne.s32.totalorder %s471, %s485
    %p487 = scmp.eq.s32.totalorder %s41, 0
    %p488 = por %p486, %p487
    %s490 = sadd.s32 %s489, 1
    %p493 = scmp.eq.s32.totalorder %s35, 3
    %p494 = scmp.ne.s32.totalorder %s489, %s491
    %p495 = scmp.eq.s32.totalorder %s35, 0
    %p496 = por %p494, %p495
    %p497 = scmp.ne.s32.totalorder %s489, %s491
    %p498 = scmp.eq.s32.totalorder %s40, 3
    %p499 = por %p497, %p498
    %p500 = scmp.ne.s32.totalorder %s491, %s492
    %p501 = scmp.eq.s32.totalorder %s40, 0
    %p502 = por %p500, %p501
    %p503 = scmp.ne.s32.totalorder %s491, %s492
    %p504 = scmp.eq.s32.totalorder %s41, 3
    %p505 = por %p503, %p504
    %p507 = scmp.ne.s32.totalorder %s492, %s506
    %p508 = scmp.eq.s32.totalorder %s41, 0
    %p509 = por %p507, %p508
    %s510 = ssub.s32 %s35, %s42
    %p511 = scmp.eq.s32.totalorder %s510, 0
    %s513 = sadd.s32 %s512, 1
    %s514 = scalar_select %p511, %s512, %s513
    %p517 = pneg %p511
    %p518 = scmp.eq.s32.totalorder %s35, 3
    %p519 = por %p517, %p518
    %p520 = scmp.ne.s32.totalorder %s512, %s515
    %p521 = scmp.eq.s32.totalorder %s35, 0
    %p522 = por %p520, %p521
    %p523 = scmp.ne.s32.totalorder %s512, %s515
    %p524 = scmp.eq.s32.totalorder %s40, 3
    %p525 = por %p523, %p524
    %p526 = scmp.ne.s32.totalorder %s515, %s516
    %p527 = scmp.eq.s32.totalorder %s40, 0
    %p528 = por %p526, %p527
    %p529 = scmp.ne.s32.totalorder %s515, %s516
    %p530 = scmp.eq.s32.totalorder %s41, 3
    %p531 = por %p529, %p530
    %p533 = scmp.ne.s32.totalorder %s516, %s532
    %p534 = scmp.eq.s32.totalorder %s41, 0
    %p535 = por %p533, %p534
    %s536 = ssub.s32 %s35, %s42
    %p537 = scmp.eq.s32.totalorder %s536, 0
    %s539 = sadd.s32 %s538, 1
    %s540 = scalar_select %p537, %s538, %s539
    %p543 = pneg %p537
    %p544 = scmp.eq.s32.totalorder %s35, 3
    %p545 = por %p543, %p544
    %p546 = scmp.ne.s32.totalorder %s538, %s541
    %p547 = scmp.eq.s32.totalorder %s35, 0
    %p548 = por %p546, %p547
    %p549 = scmp.ne.s32.totalorder %s538, %s541
    %p550 = scmp.eq.s32.totalorder %s40, 3
    %p551 = por %p549, %p550
    %p552 = scmp.ne.s32.totalorder %s541, %s542
    %p553 = scmp.eq.s32.totalorder %s40, 0
    %p554 = por %p552, %p553
    %p555 = scmp.ne.s32.totalorder %s541, %s542
    %p556 = scmp.eq.s32.totalorder %s41, 3
    %p557 = por %p555, %p556
    %p559 = scmp.ne.s32.totalorder %s542, %s558
    %p560 = scmp.eq.s32.totalorder %s41, 0
    %p561 = por %p559, %p560
    %s562 = ssub.s32 %s35, %s42
    %p563 = scmp.eq.s32.totalorder %s562, 0
    %s565 = sadd.s32 %s564, 1
    %s566 = scalar_select %p563, %s564, %s565
    %p569 = pneg %p563
    %p570 = scmp.eq.s32.totalorder %s35, 3
    %p571 = por %p569, %p570
    %p572 = scmp.ne.s32.totalorder %s564, %s567
    %p573 = scmp.eq.s32.totalorder %s35, 0
    %p574 = por %p572, %p573
    %p575 = scmp.ne.s32.totalorder %s564, %s567
    %p576 = scmp.eq.s32.totalorder %s40, 3
    %p577 = por %p575, %p576
    %p578 = scmp.ne.s32.totalorder %s567, %s568
    %p579 = scmp.eq.s32.totalorder %s40, 0
    %p580 = por %p578, %p579
    %p581 = scmp.ne.s32.totalorder %s567, %s568
    %p582 = scmp.eq.s32.totalorder %s41, 3
    %p583 = por %p581, %p582
    %p585 = scmp.ne.s32.totalorder %s568, %s584
    %p586 = scmp.eq.s32.totalorder %s41, 0
    %p587 = por %p585, %p586
    %p588 = scmp.le.s32.totalorder 1, %s35
    %p589 = scmp.lt.s32.totalorder %s35, 5
    %p590 = pnand %p588, %p589
    %p591 = pneg %p590
    // Predicated region
    $region9: #{summary_forward.11} parent=5 // pred_check
      _
    $region10: #{summary_forward.11} parent=5 // pred_check_branch
      %593 = sbr.rel (%p590) target = $region12
    $region11: #{summary_forward.11} parent=5 // pred_region
      %s594 = ssub.s32 %s35, 1
      // Predicated region
      $region13: #{summary_forward.11} parent=11 // pred_check
        %p595 = pneg %p82
      $region14: #{summary_forward.11} parent=11 // pred_check_branch
        %597 = sbr.rel (%p595) target = $region16
      $region15: #{summary_forward.11} parent=11 // pred_region
        _
      $region16: #{summary_forward.11} parent=11 // pred_fallthru
        _
      // Predicated region
      $region17: #{summary_forward.11} parent=11 // pred_check
        %p598 = pneg %p103
      $region18: #{summary_forward.11} parent=11 // pred_check_branch
        %600 = sbr.rel (%p598) target = $region20
      $region19: #{summary_forward.11} parent=11 // pred_region
        _
      $region20: #{summary_forward.11} parent=11 // pred_fallthru
        _
      // Predicated region
      $region21: #{summary_forward.11} parent=11 // pred_check
        %p601 = pneg %p124
      $region22: #{summary_forward.11} parent=11 // pred_check_branch
        %603 = sbr.rel (%p601) target = $region24
      $region23: #{summary_forward.11} parent=11 // pred_region
        _
      $region24: #{summary_forward.11} parent=11 // pred_fallthru
        _
      // Predicated region
      $region25: #{summary_forward.11} parent=11 // pred_check
        %p604 = pneg %p145
      $region26: #{summary_forward.11} parent=11 // pred_check_branch
        %606 = sbr.rel (%p604) target = $region28
      $region27: #{summary_forward.11} parent=11 // pred_region
        _
      $region28: #{summary_forward.11} parent=11 // pred_fallthru
        _
      // Predicated region
      $region29: #{summary_forward.11} parent=11 // pred_check
        %p607 = pneg %p166
      $region30: #{summary_forward.11} parent=11 // pred_check_branch
        %609 = sbr.rel (%p607) target = $region32
      $region31: #{summary_forward.11} parent=11 // pred_region
        _
      $region32: #{summary_forward.11} parent=11 // pred_fallthru
        _
      // Predicated region
      $region33: #{summary_forward.11} parent=11 // pred_check
        %p610 = pneg %p187
      $region34: #{summary_forward.11} parent=11 // pred_check_branch
        %612 = sbr.rel (%p610) target = $region36
      $region35: #{summary_forward.11} parent=11 // pred_region
        _
      $region36: #{summary_forward.11} parent=11 // pred_fallthru
        _
      // Predicated region
      $region37: #{summary_forward.11} parent=11 // pred_check
        %p613 = pneg %p208
      $region38: #{summary_forward.11} parent=11 // pred_check_branch
        %615 = sbr.rel (%p613) target = $region40
      $region39: #{summary_forward.11} parent=11 // pred_region
        _
      $region40: #{summary_forward.11} parent=11 // pred_fallthru
        _
      // Predicated region
      $region41: #{summary_forward.11} parent=11 // pred_check
        %p616 = pneg %p229
      $region42: #{summary_forward.11} parent=11 // pred_check_branch
        %618 = sbr.rel (%p616) target = $region44
      $region43: #{summary_forward.11} parent=11 // pred_region
        _
      $region44: #{summary_forward.11} parent=11 // pred_fallthru
        _
      // Predicated region
      $region45: #{summary_forward.11} parent=11 // pred_check
        %p619 = pneg %p250
      $region46: #{summary_forward.11} parent=11 // pred_check_branch
        %621 = sbr.rel (%p619) target = $region48
      $region47: #{summary_forward.11} parent=11 // pred_region
        _
      $region48: #{summary_forward.11} parent=11 // pred_fallthru
        _
      // Predicated region
      $region49: #{summary_forward.11} parent=11 // pred_check
        %p622 = pneg %p271
      $region50: #{summary_forward.11} parent=11 // pred_check_branch
        %624 = sbr.rel (%p622) target = $region52
      $region51: #{summary_forward.11} parent=11 // pred_region
        _
      $region52: #{summary_forward.11} parent=11 // pred_fallthru
        _
      // Predicated region
      $region53: #{summary_forward.11} parent=11 // pred_check
        %p625 = pneg %p292
      $region54: #{summary_forward.11} parent=11 // pred_check_branch
        %627 = sbr.rel (%p625) target = $region56
      $region55: #{summary_forward.11} parent=11 // pred_region
        _
      $region56: #{summary_forward.11} parent=11 // pred_fallthru
        _
      // Predicated region
      $region57: #{summary_forward.11} parent=11 // pred_check
        %p628 = pneg %p313
      $region58: #{summary_forward.11} parent=11 // pred_check_branch
        %630 = sbr.rel (%p628) target = $region60
      $region59: #{summary_forward.11} parent=11 // pred_region
        _
      $region60: #{summary_forward.11} parent=11 // pred_fallthru
        _
      // Predicated region
      $region61: #{summary_forward.11} parent=11 // pred_check
        %p631 = pneg %p334
      $region62: #{summary_forward.11} parent=11 // pred_check_branch
        %633 = sbr.rel (%p631) target = $region64
      $region63: #{summary_forward.11} parent=11 // pred_region
        _
      $region64: #{summary_forward.11} parent=11 // pred_fallthru
        _
      // Predicated region
      $region65: #{summary_forward.11} parent=11 // pred_check
        %p634 = pneg %p355
      $region66: #{summary_forward.11} parent=11 // pred_check_branch
        %636 = sbr.rel (%p634) target = $region68
      $region67: #{summary_forward.11} parent=11 // pred_region
        _
      $region68: #{summary_forward.11} parent=11 // pred_fallthru
        _
      // Predicated region
      $region69: #{summary_forward.11} parent=11 // pred_check
        %p637 = pneg %p376
      $region70: #{summary_forward.11} parent=11 // pred_check_branch
        %639 = sbr.rel (%p637) target = $region72
      $region71: #{summary_forward.11} parent=11 // pred_region
        _
      $region72: #{summary_forward.11} parent=11 // pred_fallthru
        _
      // Predicated region
      $region73: #{summary_forward.11} parent=11 // pred_check
        %p640 = pneg %p397
      $region74: #{summary_forward.11} parent=11 // pred_check_branch
        %642 = sbr.rel (%p640) target = $region76
      $region75: #{summary_forward.11} parent=11 // pred_region
        _
      $region76: #{summary_forward.11} parent=11 // pred_fallthru
        _
      // Predicated region
      $region77: #{summary_forward.11} parent=11 // pred_check
        %p643 = pneg %p418
      $region78: #{summary_forward.11} parent=11 // pred_check_branch
        %645 = sbr.rel (%p643) target = $region80
      $region79: #{summary_forward.11} parent=11 // pred_region
        _
      $region80: #{summary_forward.11} parent=11 // pred_fallthru
        _
      // Predicated region
      $region81: #{summary_forward.11} parent=11 // pred_check
        %p646 = pneg %p439
      $region82: #{summary_forward.11} parent=11 // pred_check_branch
        %648 = sbr.rel (%p646) target = $region84
      $region83: #{summary_forward.11} parent=11 // pred_region
        _
      $region84: #{summary_forward.11} parent=11 // pred_fallthru
        _
      // Predicated region
      $region85: #{summary_forward.11} parent=11 // pred_check
        %p649 = pneg %p460
      $region86: #{summary_forward.11} parent=11 // pred_check_branch
        %651 = sbr.rel (%p649) target = $region88
      $region87: #{summary_forward.11} parent=11 // pred_region
        _
      $region88: #{summary_forward.11} parent=11 // pred_fallthru
        _
      // Predicated region
      $region89: #{summary_forward.11} parent=11 // pred_check
        %p652 = pneg %p481
      $region90: #{summary_forward.11} parent=11 // pred_check_branch
        %654 = sbr.rel (%p652) target = $region92
      $region91: #{summary_forward.11} parent=11 // pred_region
        _
      $region92: #{summary_forward.11} parent=11 // pred_fallthru
        _
      // Predicated region
      $region93: #{summary_forward.11} parent=11 // pred_check
        %p655 = pneg %p502
      $region94: #{summary_forward.11} parent=11 // pred_check_branch
        %657 = sbr.rel (%p655) target = $region96
      $region95: #{summary_forward.11} parent=11 // pred_region
        _
      $region96: #{summary_forward.11} parent=11 // pred_fallthru
        _
    $region12: #{summary_forward.11} parent=5 // pred_fallthru
      _
    %p658 = scmp.lt.s32.totalorder %s35, 4
    // Predicated region
    $region97: #{summary_forward.11} parent=5 // pred_check
      %p659 = pneg %p658
    $region98: #{summary_forward.11} parent=5 // pred_check_branch
      %661 = sbr.rel (%p659) target = $region100
    $region99: #{summary_forward.11} parent=5 // pred_region
      // Predicated region
      $region101: #{summary_forward.11} parent=99 // pred_check
        %p662 = pneg %p55
      $region102: #{summary_forward.11} parent=99 // pred_check_branch
        %664 = sbr.rel (%p662) target = $region104
      $region103: #{summary_forward.11} parent=99 // pred_region
        %p665 = scmp.lt.s32.totalorder %s35, 3
        %s666 = scalar_select %p665, %s35, 3
        %s667 = smul.addr %s666, 2
        %s668 = scalar_lea.vmem %s0, %s667
      $region104: #{summary_forward.11} parent=99 // pred_fallthru
        _
    $region100: #{summary_forward.11} parent=5 // pred_fallthru
      _
    %p669 = scmp.le.s32.totalorder 1, %s35
    %p670 = scmp.lt.s32.totalorder %s35, 5
    %p671 = pnand %p669, %p670
    %p672 = pneg %p671
    // Predicated region
    $region105: #{summary_forward.11} parent=5 // pred_check
      _
    $region106: #{summary_forward.11} parent=5 // pred_check_branch
      %674 = sbr.rel (%p671) target = $region108
    $region107: #{summary_forward.11} parent=5 // pred_region
      %s675 = ssub.s32 %s35, 1
      %p676 = scmp.lt.s32.totalorder %s40, 3
      %s677 = scalar_select %p676, %s40, 3
      %s678 = smul.addr %s677, 2
      %s679 = scalar_lea.vmem %s0, %s678
      %p680 = pneg %p61
      %p681 = pneg %p58
      %p682 = pneg %p82
      %p683 = pneg %p79
      %p684 = pneg %p103
      %p685 = pneg %p100
      %p686 = pneg %p124
      %p687 = pneg %p121
      %p688 = pneg %p145
      %p689 = pneg %p142
      %p690 = pneg %p166
      %p691 = pneg %p163
      %p692 = pneg %p187
      %p693 = pneg %p184
      %p694 = pneg %p208
      %p695 = pneg %p205
      %p696 = pneg %p229
      %p697 = pneg %p226
      %p698 = pneg %p250
      %p699 = pneg %p247
      %p700 = pneg %p271
      %p701 = pneg %p268
      %p702 = pneg %p292
      %p703 = pneg %p289
      %p704 = pneg %p313
      %p705 = pneg %p310
      %p706 = pneg %p334
      %p707 = pneg %p331
      %p708 = pneg %p355
      %p709 = pneg %p352
      %p710 = pneg %p376
      %p711 = pneg %p373
      %p712 = pneg %p397
      %p713 = pneg %p394
      %p714 = pneg %p418
      %p715 = pneg %p415
      %p716 = pneg %p439
      %p717 = pneg %p436
      %p718 = pneg %p460
      %p719 = pneg %p457
      %p720 = pneg %p481
      %p721 = pneg %p478
      %p722 = pneg %p502
      %p723 = pneg %p499
      %p724 = pneg %p528
      %p725 = pneg %p525
      %p726 = scmp.lt.s32.totalorder %s40, 3
      %s727 = scalar_select %p726, %s40, 3
      %s728 = smul.addr %s727, 2
      %s729 = scalar_lea.vmem %s22, %s728
      %p730 = pneg %p554
      %p731 = pneg %p551
      %p732 = scmp.lt.s32.totalorder %s40, 3
      %s733 = scalar_select %p732, %s40, 3
      %s734 = smul.addr %s733, 2
      %s735 = scalar_lea.vmem %s23, %s734
      %p736 = pneg %p580
      %p737 = pneg %p577
      %p738 = scmp.lt.s32.totalorder %s40, 3
      %s739 = scalar_select %p738, %s40, 3
      %s740 = smul.addr %s739, 2
      %s741 = scalar_lea.vmem %s24, %s740
      %p742 = scmp.lt.s32.totalorder %s40, 3
      %s743 = scalar_select %p742, %s40, 3
      %s744 = smul.addr %s743, 2
      %s745 = scalar_lea.vmem %s0, %s744
      %p746 = scmp.lt.s32.totalorder %s40, 3
      %s747 = scalar_select %p746, %s40, 3
      %s748 = smul.addr %s747, 2
      %s749 = scalar_lea.vmem %s22, %s748
      %p750 = scmp.lt.s32.totalorder %s40, 3
      %s751 = scalar_select %p750, %s40, 3
      %s752 = smul.addr %s751, 2
      %s753 = scalar_lea.vmem %s23, %s752
      %p754 = scmp.lt.s32.totalorder %s40, 3
      %s755 = scalar_select %p754, %s40, 3
      %s756 = smul.addr %s755, 2
      %s757 = scalar_lea.vmem %s24, %s756
      %p758 = scmp.eq.s32.totalorder %s40, 0
      // Predicated region
      $region109: #{summary_forward.11} parent=107 // pred_check
        %p759 = pneg %p758
      $region110: #{summary_forward.11} parent=107 // pred_check_branch
        %761 = sbr.rel (%p759) target = $region112
      $region111: #{summary_forward.11} parent=107 // pred_region
        %v762 = vld [vmem:[%s1] sm:$0x3]
        %vm763 = vcmask 123904
        %764 = vst.msk [vmem:[#allocation2] sm:$0x3] %vm763, %v762
        %v765 = vld [vmem:[%s2] sm:$0x3]
        %766 = vst.msk [vmem:[#allocation3] sm:$0x3] %vm763, %v765
        %vm767 = vcmask 58368
        %768 = vst.msk [vmem:[#allocation4] sm:$0x3] %vm767, 0.0
      $region112: #{summary_forward.11} parent=107 // pred_fallthru
        _
      %v769 = vld [vmem:[%s745] sm:$0x3]
      %v770 = vld [vmem:[%s6] sm:$0xff]
      %v771 = vld [vmem:[%s6 + $0x8] sm:$0xff]
      %v772 = vld [vmem:[#allocation2] sm:$0x3]
      %v773 = vld [vmem:[%s7] sm:$0xff]
      %v774 = vld [vmem:[%s7 + $0x8] sm:$0xff]
      %vm775 = vcmask 130048
      %v777 = vsel %vm775, %v772, 0
      %779 = vmatpush.msra.mxu0 0.0
      %780 = vmatpush.msra.mxu0 0.0
      %781 = vmatpush.msra.mxu0 0.0
      %782 = vmatpush.msra.mxu0 0.0
      %783 = vmatpush.msra.mxu0 0.0
      %784 = vmatpush.msra.mxu0 0.0
      %785 = vmatpush.msra.mxu0 0.0
      %786 = vmatpush.msra.mxu0 0.0
      %787 = vmatpush.msra.mxu0 0.0
      %788 = vmatpush.msra.mxu0 0.0
      %789 = vmatpush.msra.mxu0 0.0
      %790 = vmatpush.msra.mxu0 0.0
      %791 = vmatpush.msra.mxu0 0.0
      %792 = vmatpush.msra.mxu0 0.0
      %793 = vmatpush.msra.mxu0 %v774
      %794 = vmatpush.msra.mxu0 %v773
      %795 = vmatmul.f32.gmra.mxu0 %v777
      %v796 = vpop.f32.mrf.mxu0
      %v797 = vadd.f32 0.0, %v796
      %798 = vdwg.mxu0
      %v800 = vsel %vm775, %v769, 0
      %802 = vmatpush.msra.mxu0 0.0
      %803 = vmatpush.msra.mxu0 0.0
      %804 = vmatpush.msra.mxu0 0.0
      %805 = vmatpush.msra.mxu0 0.0
      %806 = vmatpush.msra.mxu0 0.0
      %807 = vmatpush.msra.mxu0 0.0
      %808 = vmatpush.msra.mxu0 0.0
      %809 = vmatpush.msra.mxu0 0.0
      %810 = vmatpush.msra.mxu0 0.0
      %811 = vmatpush.msra.mxu0 0.0
      %812 = vmatpush.msra.mxu0 0.0
      %813 = vmatpush.msra.mxu0 0.0
      %814 = vmatpush.msra.mxu0 0.0
      %815 = vmatpush.msra.mxu0 0.0
      %816 = vmatpush.msra.mxu0 %v771
      %817 = vmatpush.msra.mxu0 %v770
      %818 = vmatmul.f32.gmra.mxu0 %v800
      %v819 = vpop.f32.mrf.mxu0
      %v820 = vadd.f32 %v797, %v819
      %821 = vdwg.mxu0
      %v822 = vld [vmem:[%s8] sm:$0x1]
      %v824 = vperm.slane %v822, 0
      %v826 = vadd.f32 %v820, %v824
      %v827 = vxor.u32 %v826, 2147483648
      %v828 = vmul.f32 %v827, 1.442695
      %v829 = vpow.pop %v828
      %v830 = vadd.f32 %v829, 1.0
      %v831 = vrcp.pop %v830
      %v832 = vmul.f32 %v830, %v831
      %v833 = vsub.f32 1.0, %v832
      %v834 = vmul.f32 %v831, %v833
      %v835 = vadd.f32 %v831, %v834
      %vm836 = vweird.f32 %v830
      %vm837 = vweird.f32 %v831
      %vm838 = vmor %vm836, %vm837
      %v839 = vsel %vm838, %v831, %v835
      %v840 = vand.u32 2147483647, %v830
      %vm841 = vcmp.eq.f32.partialorder %v840, 8.507059e+37
      %v842 = vand.u32 %v830, 2147483648
      %v843 = vor.u32 1.1754944e-38, %v842
      %v844 = vsel %vm841, %v843, %v839
      %v845 = vmul.f32 1.0, %v844
      %v846 = vtanh.pop %v826
      %v847 = vld [vmem:[#allocation3] sm:$0x3]
      %849 = vrot.lane.b32.xlu0 %v847, 16
      %v850 = vpop.permute.xlu0 %849
      %v852 = vmul.f32 %v845, %v850
      %854 = vrot.lane.b32.xlu0 %v846, 96
      %v855 = vpop.permute.xlu0 %854
      %v857 = vmul.f32 %v845, %v855
      %859 = vrot.lane.b32.xlu0 %v857, 16
      %v860 = vpop.permute.xlu0 %859
      %v862 = vadd.f32 %v852, %v860
      %v863 = vtanh.pop %v862
      %865 = vrot.lane.b32.xlu0 %v863, 32
      %v866 = vpop.permute.xlu0 %865
      %v868 = vmul.f32 %v845, %v866
      %870 = vrot.lane.b32.xlu0 %v868, 80
      %v871 = vpop.permute.xlu0 %870
      %vm873 = vcmask 123904
      %874 = vst.msk [vmem:[#allocation2] sm:$0x3] %vm873, %v871
      %876 = vrot.lane.b32.xlu0 %v862, 112
      %v877 = vpop.permute.xlu0 %876
      %879 = vst.msk [vmem:[#allocation3] sm:$0x3] %vm873, %v877
      %v880 = vld [vmem:[#allocation4] sm:$0x3]
      %v881 = vld [vmem:[%s3] sm:$0xff]
      %v882 = vld [vmem:[%s3 + $0x8] sm:$0xff]
      %v883 = vld [vmem:[%s9] sm:$0xff]
      %v884 = vld [vmem:[%s9 + $0x8] sm:$0xff]
      %v885 = vsel %vm775, %v871, 0
      %887 = vmatpush.msra.mxu0 0.0
      %888 = vmatpush.msra.mxu0 0.0
      %889 = vmatpush.msra.mxu0 0.0
      %890 = vmatpush.msra.mxu0 0.0
      %891 = vmatpush.msra.mxu0 0.0
      %892 = vmatpush.msra.mxu0 0.0
      %893 = vmatpush.msra.mxu0 0.0
      %894 = vmatpush.msra.mxu0 0.0
      %895 = vmatpush.msra.mxu0 0.0
      %896 = vmatpush.msra.mxu0 0.0
      %897 = vmatpush.msra.mxu0 0.0
      %898 = vmatpush.msra.mxu0 0.0
      %899 = vmatpush.msra.mxu0 0.0
      %900 = vmatpush.msra.mxu0 0.0
      %901 = vmatpush.msra.mxu0 %v884
      %902 = vmatpush.msra.mxu0 %v883
      %903 = vmatmul.f32.gmra.mxu0 %v885
      %v904 = vpop.f32.mrf.mxu0
      %v905 = vadd.f32 0.0, %v904
      %906 = vdwg.mxu0
      %v907 = vld [vmem:[%s4] sm:$0xff]
      %v908 = vld [vmem:[%s4 + $0x8] sm:$0xff]
      %v910 = vrot.slane %v905, 1
      %v911 = vperm.slane %v905, 0
      %v912 = vperm.slane %v910, 0
      %v915 = vadd.f32 %v907, %v911
      %v916 = vadd.f32 %v908, %v912
      %v917 = vperm.slane %v880, 0
      %v918 = vlaneseq
      %v919 = vshrl.u32 %v918, 7
      %921 = vset.pattern.permute.xlu0 %v919
      %922 = vperm.xlu0 %921, %v917
      %v923 = vpop.permute.xlu0 %922
      %v924 = vperm.slane %v880, 1
      %v925 = vlaneseq
      %v926 = vshrl.u32 %v925, 7
      %928 = vset.pattern.permute.xlu0 %v926
      %929 = vperm.xlu0 %928, %v924
      %v930 = vpop.permute.xlu0 %929
      %v931 = vld [vmem:[%s10] sm:$0x1]
      %v933 = vperm.slane %v931, 0
      %v935 = vmul.f32 %v923, %v933
      %v936 = vmul.f32 %v930, %v933
      %v937 = vadd.f32 %v915, %v935
      %v938 = vadd.f32 %v916, %v936
      %v939 = vld [vmem:[#allocation5] sm:$0x1]
      %v941 = vperm.slane %v939, 0
      %942 = vset.pattern.permute.xlu0 0
      %943 = vperm.xlu0 %942, %v941
      %v944 = vpop.permute.xlu0 %943
      %v946 = vadd.f32 %v937, %v944
      %v947 = vadd.f32 %v938, %v944
      %v948 = vtanh.pop %v946
      %v949 = vtanh.pop %v947
      %v950 = vld [vmem:[%s12] sm:$0xff]
      %v951 = vld [vmem:[%s12 + $0x8] sm:$0xff]
      %954 = vset.pattern.permute.xlu0 0
      %955 = vperm.xlu0 %954, %v950
      %v956 = vpop.permute.xlu0 %955
      %957 = vset.pattern.permute.xlu0 0
      %958 = vperm.xlu0 %957, %v951
      %v959 = vpop.permute.xlu0 %958
      %v960 = vlaneseq
      %v961 = vand.u32 %v960, 127
      %v962 = vperm.slane %v956, %v961
      %v963 = vadd.s32 %v961, 4294967288
      %v964 = vperm.slane %v959, %v963
      %vm965 = vcmask 130112
      %v966 = vsel %vm965, %v964, %v962
      %vm967 = vcmask 1041409
      %vm968 = vcmask 1042434
      %v969 = vsel %vm968, %v966, %v966
      %vm970 = vcmask 1043459
      %v971 = vsel %vm970, %v966, %v969
      %vm972 = vcmask 1044484
      %v973 = vsel %vm972, %v966, %v971
      %vm974 = vcmask 1045509
      %v975 = vsel %vm974, %v966, %v973
      %vm976 = vcmask 1046534
      %v977 = vsel %vm976, %v966, %v975
      %vm978 = vcmask 1047559
      %v979 = vsel %vm978, %v966, %v977
      %v981 = vmul.f32 %v948, %v979
      %v982 = vmul.f32 %v949, %v979
      %v983 = vsel %vm775, %v981, 0.0
      %984 = vadd.xlane.f32.xlu0 %v983
      %v985 = vpop.xlane.xlu0 %984
      %v986 = vsel %vm775, %v982, 0.0
      %987 = vadd.xlane.f32.xlu0 %v986
      %v988 = vpop.xlane.xlu0 %987
      %v989 = vld [vmem:[%s5] sm:$0x3]
      %v991 = vperm.slane %v989, 0
      %v992 = vlaneseq
      %v993 = vshrl.u32 %v992, 7
      %995 = vset.pattern.permute.xlu0 %v993
      %996 = vperm.xlu0 %995, %v991
      %v997 = vpop.permute.xlu0 %996
      %v998 = vperm.slane %v989, 1
      %v999 = vlaneseq
      %v1000 = vshrl.u32 %v999, 7
      %1002 = vset.pattern.permute.xlu0 %v1000
      %1003 = vperm.xlu0 %1002, %v998
      %v1004 = vpop.permute.xlu0 %1003
      %v1007 = vadd.f32 %v985, %v997
      %v1008 = vadd.f32 %v988, %v1004
      %1011 = vset.pattern.permute.xlu0 0
      %1012 = vperm.xlu0 %1011, %v1007
      %v1013 = vpop.permute.xlu0 %1012
      %1014 = vset.pattern.permute.xlu0 0
      %1015 = vperm.xlu0 %1014, %v1008
      %v1016 = vpop.permute.xlu0 %1015
      %v1017 = vperm.slane %v1013, %v961
      %v1018 = vperm.slane %v1016, %v961
      %v1019 = vsel %vm967, %v1018, %v1017
      %vm1021 = vcmask 58368
      %v1022 = vsel %vm1021, %v1019, -inf
      %1023 = vmax.xlane.f32.xlu0 %v1022
      %v1024 = vpop.xlane.xlu0 %1023
      %v1026 = vperm.slane %v1024, 0
      %v1027 = vperm.slane %v1024, 1
      %v1030 = vsub.f32 %v1007, %v1026
      %v1031 = vsub.f32 %v1008, %v1027
      %v1032 = vmul.f32 %v1030, 1.442695
      %v1033 = vpow.pop %v1032
      %v1034 = vmul.f32 %v1031, 1.442695
      %v1035 = vpow.pop %v1034
      %1038 = vset.pattern.permute.xlu0 0
      %1039 = vperm.xlu0 %1038, %v1033
      %v1040 = vpop.permute.xlu0 %1039
      %1041 = vset.pattern.permute.xlu0 0
      %1042 = vperm.xlu0 %1041, %v1035
      %v1043 = vpop.permute.xlu0 %1042
      %v1044 = vperm.slane %v1040, %v961
      %v1045 = vperm.slane %v1043, %v961
      %v1046 = vsel %vm967, %v1045, %v1044
      %v1048 = vsel %vm1021, %v1046, 0.0
      %1049 = vadd.xlane.f32.xlu0 %v1048
      %v1050 = vpop.xlane.xlu0 %1049
      %v1051 = vrcp.pop %v1050
      %v1053 = vperm.slane %v1051, 0
      %v1054 = vperm.slane %v1051, 1
      %v1057 = vmul.f32 %v1033, %v1053
      %v1058 = vmul.f32 %v1035, %v1054
      %1060 = vset.pattern.permute.xlu0 0
      %1061 = vperm.xlu0 %1060, %v1057
      %v1062 = vpop.permute.xlu0 %1061
      %1065 = vset.pattern.permute.xlu0 0
      %1066 = vperm.xlu0 %1065, %v1058
      %v1067 = vpop.permute.xlu0 %1066
      %v1069 = vmul.f32 %v1062, %v881
      %v1070 = vmul.f32 %v1067, %v882
      %vm1071 = vcmask 261120
      %v1072 = vsel %vm1071, %v1069, 0.0
      %v1073 = vrot.slane %v1072, 4
      %v1074 = vadd.f32 %v1072, %v1073
      %v1075 = vrot.slane %v1074, 2
      %v1076 = vadd.f32 %v1074, %v1075
      %v1077 = vrot.slane %v1076, 1
      %v1078 = vadd.f32 %v1076, %v1077
      %v1079 = vsel %vm1071, %v1070, 0.0
      %v1080 = vrot.slane %v1079, 4
      %v1081 = vadd.f32 %v1079, %v1080
      %v1082 = vrot.slane %v1081, 2
      %v1083 = vadd.f32 %v1081, %v1082
      %v1084 = vrot.slane %v1083, 1
      %v1085 = vadd.f32 %v1083, %v1084
      %v1087 = vperm.slane %v880, 0
      %v1088 = vlaneseq
      %v1089 = vshrl.u32 %v1088, 7
      %1091 = vset.pattern.permute.xlu0 %v1089
      %1092 = vperm.xlu0 %1091, %v1087
      %v1093 = vpop.permute.xlu0 %1092
      %v1094 = vperm.slane %v880, 1
      %v1095 = vlaneseq
      %v1096 = vshrl.u32 %v1095, 7
      %1098 = vset.pattern.permute.xlu0 %v1096
      %1099 = vperm.xlu0 %1098, %v1094
      %v1100 = vpop.permute.xlu0 %1099
      %v1103 = vmin.f32 %v1057, %v1093
      %v1104 = vmin.f32 %v1058, %v1100
      %1107 = vset.pattern.permute.xlu0 0
      %1108 = vperm.xlu0 %1107, %v1103
      %v1109 = vpop.permute.xlu0 %1108
      %1110 = vset.pattern.permute.xlu0 0
      %1111 = vperm.xlu0 %1110, %v1104
      %v1112 = vpop.permute.xlu0 %1111
      %v1113 = vperm.slane %v1109, %v961
      %v1114 = vperm.slane %v1112, %v961
      %v1115 = vsel %vm967, %v1114, %v1113
      %v1117 = vsel %vm1021, %v1115, 0.0
      %1118 = vadd.xlane.f32.xlu0 %v1117
      %v1119 = vpop.xlane.xlu0 %1118
      %v1120 = vperm.slane %v1062, %v961
      %v1121 = vperm.slane %v1067, %v961
      %v1122 = vsel %vm967, %v1121, %v1120
      %v1124 = vadd.f32 %v880, %v1122
      %1125 = vst.msk [vmem:[#allocation4] sm:$0x3] %vm1021, %v1124
      %v1126 = vld [vmem:[%s13] sm:$0xff]
      %v1127 = vld [vmem:[%s13 + $0x8] sm:$0xff]
      %v1128 = vld [vmem:[%s13 + $0x10] sm:$0xff]
      %v1129 = vld [vmem:[%s13 + $0x18] sm:$0xff]
      %v1130 = vld [vmem:[%s14] sm:$0xff]
      %v1131 = vld [vmem:[%s14 + $0x8] sm:$0xff]
      %1132 = vmatpush.msra.mxu0 0.0
      %1133 = vmatpush.msra.mxu0 0.0
      %1134 = vmatpush.msra.mxu0 0.0
      %1135 = vmatpush.msra.mxu0 0.0
      %1136 = vmatpush.msra.mxu0 0.0
      %1137 = vmatpush.msra.mxu0 0.0
      %1138 = vmatpush.msra.mxu0 0.0
      %1139 = vmatpush.msra.mxu0 0.0
      %1140 = vmatpush.msra.mxu0 0.0
      %1141 = vmatpush.msra.mxu0 0.0
      %1142 = vmatpush.msra.mxu0 0.0
      %1143 = vmatpush.msra.mxu0 0.0
      %1144 = vmatpush.msra.mxu0 0.0
      %1145 = vmatpush.msra.mxu0 0.0
      %1146 = vmatpush.msra.mxu0 %v1131
      %1147 = vmatpush.msra.mxu0 %v1130
      %1148 = vmatmul.f32.gmra.mxu0 %v885
      %v1149 = vpop.f32.mrf.mxu0
      %v1150 = vadd.f32 0.0, %v1149
      %1151 = vdwg.mxu0
      %v1154 = vsel %vm967, %v1085, %v1078
      %v1155 = vsel %vm1071, %v1154, 0
      %1157 = vmatpush.msra.mxu0 0.0
      %1158 = vmatpush.msra.mxu0 0.0
      %1159 = vmatpush.msra.mxu0 0.0
      %1160 = vmatpush.msra.mxu0 0.0
      %1161 = vmatpush.msra.mxu0 0.0
      %1162 = vmatpush.msra.mxu0 0.0
      %1163 = vmatpush.msra.mxu0 0.0
      %1164 = vmatpush.msra.mxu0 0.0
      %1165 = vmatpush.msra.mxu0 0.0
      %1166 = vmatpush.msra.mxu0 0.0
      %1167 = vmatpush.msra.mxu0 0.0
      %1168 = vmatpush.msra.mxu0 0.0
      %1169 = vmatpush.msra.mxu0 %v1129
      %1170 = vmatpush.msra.mxu0 %v1128
      %1171 = vmatpush.msra.mxu0 %v1127
      %1172 = vmatpush.msra.mxu0 %v1126
      %1173 = vmatmul.f32.gmra.mxu0 %v1155
      %v1174 = vpop.f32.mrf.mxu0
      %v1175 = vadd.f32 %v1150, %v1174
      %1176 = vdwg.mxu0
      %v1177 = vld [vmem:[%s15] sm:$0xff]
      %v1178 = vld [vmem:[%s15 + $0x8] sm:$0xff]
      %1179 = vmatpush.msra.mxu0 0.0
      %1180 = vmatpush.msra.mxu0 0.0
      %1181 = vmatpush.msra.mxu0 0.0
      %1182 = vmatpush.msra.mxu0 0.0
      %1183 = vmatpush.msra.mxu0 0.0
      %1184 = vmatpush.msra.mxu0 0.0
      %1185 = vmatpush.msra.mxu0 0.0
      %1186 = vmatpush.msra.mxu0 0.0
      %1187 = vmatpush.msra.mxu0 0.0
      %1188 = vmatpush.msra.mxu0 0.0
      %1189 = vmatpush.msra.mxu0 0.0
      %1190 = vmatpush.msra.mxu0 0.0
      %1191 = vmatpush.msra.mxu0 0.0
      %1192 = vmatpush.msra.mxu0 0.0
      %1193 = vmatpush.msra.mxu0 %v1178
      %1194 = vmatpush.msra.mxu0 %v1177
      %1195 = vmatmul.f32.gmra.mxu0 %v800
      %v1196 = vpop.f32.mrf.mxu0
      %v1197 = vadd.f32 0.0, %v1196
      %1198 = vdwg.mxu0
      %v1199 = vadd.f32 %v1175, %v1197
      %v1200 = vld [vmem:[#allocation6] sm:$0x1]
      %v1202 = vperm.slane %v1200, 0
      %v1204 = vadd.f32 %v1199, %v1202
      %v1205 = vxor.u32 %v1204, 2147483648
      %v1206 = vmul.f32 %v1205, 1.442695
      %v1207 = vpow.pop %v1206
      %v1208 = vadd.f32 %v1207, 1.0
      %v1209 = vrcp.pop %v1208
      %v1210 = vmul.f32 %v1208, %v1209
      %v1211 = vsub.f32 1.0, %v1210
      %v1212 = vmul.f32 %v1209, %v1211
      %v1213 = vadd.f32 %v1209, %v1212
      %vm1214 = vweird.f32 %v1208
      %vm1215 = vweird.f32 %v1209
      %vm1216 = vmor %vm1214, %vm1215
      %v1217 = vsel %vm1216, %v1209, %v1213
      %v1218 = vand.u32 2147483647, %v1208
      %vm1219 = vcmp.eq.f32.partialorder %v1218, 8.507059e+37
      %v1220 = vand.u32 %v1208, 2147483648
      %v1221 = vor.u32 1.1754944e-38, %v1220
      %v1222 = vsel %vm1219, %v1221, %v1217
      %v1223 = vmul.f32 1.0, %v1222
      %v1224 = vld [vmem:[%s17] sm:$0xff]
      %v1225 = vld [vmem:[%s17 + $0x8] sm:$0xff]
      %v1226 = vld [vmem:[%s17 + $0x10] sm:$0xff]
      %v1227 = vld [vmem:[%s17 + $0x18] sm:$0xff]
      %v1228 = vld [vmem:[%s18] sm:$0xff]
      %v1229 = vld [vmem:[%s18 + $0x8] sm:$0xff]
      %1230 = vmatpush.msra.mxu0 0.0
      %1231 = vmatpush.msra.mxu0 0.0
      %1232 = vmatpush.msra.mxu0 0.0
      %1233 = vmatpush.msra.mxu0 0.0
      %1234 = vmatpush.msra.mxu0 0.0
      %1235 = vmatpush.msra.mxu0 0.0
      %1236 = vmatpush.msra.mxu0 0.0
      %1237 = vmatpush.msra.mxu0 0.0
      %1238 = vmatpush.msra.mxu0 0.0
      %1239 = vmatpush.msra.mxu0 0.0
      %1240 = vmatpush.msra.mxu0 0.0
      %1241 = vmatpush.msra.mxu0 0.0
      %1242 = vmatpush.msra.mxu0 0.0
      %1243 = vmatpush.msra.mxu0 0.0
      %1244 = vmatpush.msra.mxu0 %v1229
      %1245 = vmatpush.msra.mxu0 %v1228
      %1246 = vmatmul.f32.gmra.mxu0 %v885
      %v1247 = vpop.f32.mrf.mxu0
      %v1248 = vadd.f32 0.0, %v1247
      %1249 = vdwg.mxu0
      %1250 = vmatpush.msra.mxu0 0.0
      %1251 = vmatpush.msra.mxu0 0.0
      %1252 = vmatpush.msra.mxu0 0.0
      %1253 = vmatpush.msra.mxu0 0.0
      %1254 = vmatpush.msra.mxu0 0.0
      %1255 = vmatpush.msra.mxu0 0.0
      %1256 = vmatpush.msra.mxu0 0.0
      %1257 = vmatpush.msra.mxu0 0.0
      %1258 = vmatpush.msra.mxu0 0.0
      %1259 = vmatpush.msra.mxu0 0.0
      %1260 = vmatpush.msra.mxu0 0.0
      %1261 = vmatpush.msra.mxu0 0.0
      %1262 = vmatpush.msra.mxu0 %v1227
      %1263 = vmatpush.msra.mxu0 %v1226
      %1264 = vmatpush.msra.mxu0 %v1225
      %1265 = vmatpush.msra.mxu0 %v1224
      %1266 = vmatmul.f32.gmra.mxu0 %v1155
      %v1267 = vpop.f32.mrf.mxu0
      %v1268 = vadd.f32 %v1248, %v1267
      %1269 = vdwg.mxu0
      %v1270 = vld [vmem:[%s19] sm:$0x1]
      %v1272 = vperm.slane %v1270, 0
      %v1274 = vadd.f32 %v1268, %v1272
      %v1275 = vld [vmem:[%s20] sm:$0xff]
      %v1276 = vld [vmem:[%s20 + $0x8] sm:$0xff]
      %v1277 = vld [vmem:[%s20 + $0x10] sm:$0xff]
      %v1278 = vld [vmem:[%s20 + $0x18] sm:$0xff]
      %v1279 = vld [vmem:[%s21] sm:$0x1]
      %v1281 = vperm.slane %v1279, 0
      %v1284 = vsel %vm1071, %v1274, 0
      %1286 = vmatpush.msra.mxu0 0.0
      %1287 = vmatpush.msra.mxu0 0.0
      %1288 = vmatpush.msra.mxu0 0.0
      %1289 = vmatpush.msra.mxu0 0.0
      %1290 = vmatpush.msra.mxu0 0.0
      %1291 = vmatpush.msra.mxu0 0.0
      %1292 = vmatpush.msra.mxu0 0.0
      %1293 = vmatpush.msra.mxu0 0.0
      %1294 = vmatpush.msra.mxu0 0.0
      %1295 = vmatpush.msra.mxu0 0.0
      %1296 = vmatpush.msra.mxu0 0.0
      %1297 = vmatpush.msra.mxu0 0.0
      %1298 = vmatpush.msra.mxu0 %v1278
      %1299 = vmatpush.msra.mxu0 %v1277
      %1300 = vmatpush.msra.mxu0 %v1276
      %1301 = vmatpush.msra.mxu0 %v1275
      %1302 = vmatmul.f32.gmra.mxu0 %v1284
      %v1303 = vpop.f32.mrf.mxu0
      %v1304 = vadd.f32 %v1281, %v1303
      %1305 = vdwg.mxu0
      %vm1306 = vcmask 254976
      %v1307 = vsel %vm1306, %v1304, -inf
      %1308 = vmax.xlane.f32.xlu0 %v1307
      %v1309 = vpop.xlane.xlu0 %1308
      %v1310 = vsub.f32 %v1304, %v1309
      %v1311 = vmul.f32 %v1310, 1.442695
      %v1312 = vpow.pop %v1311
      %v1313 = vsel %vm1306, %v1312, 0.0
      %1314 = vadd.xlane.f32.xlu0 %v1313
      %v1315 = vpop.xlane.xlu0 %1314
      %v1316 = vrcp.pop %v1315
      %v1317 = vmul.f32 %v1312, %v1316
      %1319 = vset.pattern.permute.xlu0 0
      %1320 = vperm.xlu0 %1319, %v1223
      %v1321 = vpop.permute.xlu0 %1320
      %v1323 = vmul.f32 %v1317, %v1321
      %1324 = vst.msk [vmem:[%s749] sm:$0x3] %vm1306, %v1323
      %v1325 = vsub.f32 1.0, %v1223
      %1327 = vset.pattern.permute.xlu0 0
      %1328 = vperm.xlu0 %1327, %v1325
      %v1329 = vpop.permute.xlu0 %1328
      %v1330 = vperm.slane %v1329, 0
      %v1331 = vperm.slane %v1329, 1
      %v1334 = vmul.f32 %v1057, %v1330
      %v1335 = vmul.f32 %v1058, %v1331
      %1338 = vset.pattern.permute.xlu0 0
      %1339 = vperm.xlu0 %1338, %v1334
      %v1340 = vpop.permute.xlu0 %1339
      %1341 = vset.pattern.permute.xlu0 0
      %1342 = vperm.xlu0 %1341, %v1335
      %v1343 = vpop.permute.xlu0 %1342
      %v1344 = vperm.slane %v1340, %v961
      %v1345 = vperm.slane %v1343, %v961
      %v1346 = vsel %vm967, %v1345, %v1344
      %1348 = vst.msk [vmem:[%s753] sm:$0x3] %vm1021, %v1346
      %vm1349 = vcmask 1024
      %1350 = vst.msk [vmem:[%s757] sm:$0x3] %vm1349, %v1119
      %p1351 = scmp.lt.s32.totalorder %s40, 3
      %s1352 = scalar_select %p1351, %s40, 3
      %s1353 = smul.addr %s1352, 2
      %s1354 = scalar_lea.vmem %s22, %s1353
      %p1355 = scmp.lt.s32.totalorder %s40, 3
      %s1356 = scalar_select %p1355, %s40, 3
      %s1357 = smul.addr %s1356, 2
      %s1358 = scalar_lea.vmem %s23, %s1357
      %p1359 = scmp.lt.s32.totalorder %s40, 3
      %s1360 = scalar_select %p1359, %s40, 3
      %s1361 = smul.addr %s1360, 2
      %s1362 = scalar_lea.vmem %s24, %s1361
      // Predicated region
      $region113: #{summary_forward.11} parent=107 // pred_check
        %p1363 = pneg %p525
      $region114: #{summary_forward.11} parent=107 // pred_check_branch
        %1365 = sbr.rel (%p1363) target = $region116
      $region115: #{summary_forward.11} parent=107 // pred_region
        _
      $region116: #{summary_forward.11} parent=107 // pred_fallthru
        _
      // Predicated region
      $region117: #{summary_forward.11} parent=107 // pred_check
        %p1366 = pneg %p551
      $region118: #{summary_forward.11} parent=107 // pred_check_branch
        %1368 = sbr.rel (%p1366) target = $region120
      $region119: #{summary_forward.11} parent=107 // pred_region
        _
      $region120: #{summary_forward.11} parent=107 // pred_fallthru
        _
      // Predicated region
      $region121: #{summary_forward.11} parent=107 // pred_check
        %p1369 = pneg %p577
      $region122: #{summary_forward.11} parent=107 // pred_check_branch
        %1371 = sbr.rel (%p1369) target = $region124
      $region123: #{summary_forward.11} parent=107 // pred_region
        _
      $region124: #{summary_forward.11} parent=107 // pred_fallthru
        _
    $region108: #{summary_forward.11} parent=5 // pred_fallthru
      _
    %p1372 = scmp.le.s32.totalorder 2, %s35
    // Predicated region
    $region125: #{summary_forward.11} parent=5 // pred_check
      %p1373 = pneg %p1372
    $region126: #{summary_forward.11} parent=5 // pred_check_branch
      %1375 = sbr.rel (%p1373) target = $region128
    $region127: #{summary_forward.11} parent=5 // pred_region
      %s1376 = ssub.s32 %s35, 2
      // Predicated region
      $region129: #{summary_forward.11} parent=127 // pred_check
        %p1377 = pneg %p531
      $region130: #{summary_forward.11} parent=127 // pred_check_branch
        %1379 = sbr.rel (%p1377) target = $region132
      $region131: #{summary_forward.11} parent=127 // pred_region
        %p1380 = scmp.lt.s32.totalorder %s41, 3
        %s1381 = scalar_select %p1380, %s41, 3
        %s1382 = smul.addr %s1381, 2
        %s1383 = scalar_lea.vmem %s22, %s1382
      $region132: #{summary_forward.11} parent=127 // pred_fallthru
        _
      // Predicated region
      $region133: #{summary_forward.11} parent=127 // pred_check
        %p1384 = pneg %p557
      $region134: #{summary_forward.11} parent=127 // pred_check_branch
        %1386 = sbr.rel (%p1384) target = $region136
      $region135: #{summary_forward.11} parent=127 // pred_region
        %p1387 = scmp.lt.s32.totalorder %s41, 3
        %s1388 = scalar_select %p1387, %s41, 3
        %s1389 = smul.addr %s1388, 2
        %s1390 = scalar_lea.vmem %s23, %s1389
      $region136: #{summary_forward.11} parent=127 // pred_fallthru
        _
      // Predicated region
      $region137: #{summary_forward.11} parent=127 // pred_check
        %p1391 = pneg %p583
      $region138: #{summary_forward.11} parent=127 // pred_check_branch
        %1393 = sbr.rel (%p1391) target = $region140
      $region139: #{summary_forward.11} parent=127 // pred_region
        %p1394 = scmp.lt.s32.totalorder %s41, 3
        %s1395 = scalar_select %p1394, %s41, 3
        %s1396 = smul.addr %s1395, 2
        %s1397 = scalar_lea.vmem %s24, %s1396
      $region140: #{summary_forward.11} parent=127 // pred_fallthru
        _
    $region128: #{summary_forward.11} parent=5 // pred_fallthru
      _
  $region6: #{summary_forward.11} parent=0 // loop_footer
    %s39 = sadd.s32 1, %s35
  $region7: #{summary_forward.11} parent=0 // loop_footer_branch
    %34 = sbr.rel target = $region3
  $region8: #{summary_forward.11} parent=0 // loop_exit
    _

</llo_original>
